<compile_context>
chip_gen: v6e
topology: v6e:2x2x1
jax: 0.10.0
libtpu: 0.0.40
codegen_flags: <defaults>
</compile_context>

<pallas_src>
import functools

import jax
import jax.numpy as jnp
import numpy as np
from jax import lax
from jax.experimental import pallas as pl
from jax.experimental.pallas import tpu as pltpu


def _group_select_matrices(C, G):
    """M (C,G): channel -> its group;  M.T (G,C): group value -> channels."""
    Cg = C // G
    M = np.kron(np.eye(G, dtype=np.float32), np.ones((Cg, 1), np.float32))
    return M, np.ascontiguousarray(M.T)


def _ceil_to(x, m):
    return (x + m - 1) // m * m


def _vmem_bytes(shape, dtype):
    """Sublane/lane padded VMEM footprint of one buffer of `shape`/`dtype`."""
    it = jnp.dtype(dtype).itemsize
    sub = 8 * (4 // it)                      # 8 sublanes f32, 16 for bf16
    shape = tuple(shape)
    if len(shape) < 2:
        shape = (1,) * (2 - len(shape)) + shape
    lead = int(np.prod(shape[:-2], dtype=np.int64)) if len(shape) > 2 else 1
    return int(lead * _ceil_to(shape[-2], sub) * _ceil_to(shape[-1], 128) * it)


def _fused_unet_block_kernel(xp_ref, w1_ref, w2x_ref, w2y_ref,
                             gsel_ref, gselt_ref, prm_ref,
                             o_ref, y1p_ref,
                             *, H, W, KH, KW, Cin, Cout, G, pad, eps):
    HW = H * W
    Cg = Cout // G
    n = float(HW * Cg)

    Mj = gsel_ref[...]        # (Cout, G)  0/1 group membership (numpy constant)
    MTj = gselt_ref[...]      # (G, Cout)

    # packed per-channel params: rows = [b1, g1, be1, b2, g2, be2]
    b1 = prm_ref[0:1, :]
    g1 = prm_ref[1:2, :]
    be1 = prm_ref[2:3, :]
    b2 = prm_ref[3:4, :]
    g2 = prm_ref[4:5, :]
    be2 = prm_ref[5:6, :]

    def im2col(v, C):
        # v: (1, H+2p, W+2p, C) -> (HW, KH*KW*C); column order matches
        # reshape(w_hwio, (KH*KW*C, Cout)).
        cols = []
        for kh in range(KH):
            for kw in range(KW):
                cols.append(v[:, kh:kh + H, kw:kw + W, :].reshape(HW, C))
        return jnp.concatenate(cols, axis=-1)

    def groupnorm_relu(acc, gamma, beta):
        # acc: (HW, Cout) f32, one sample.  Per-group stats over HW*Cg elems,
        # two-pass variance (no E[x^2]-E[x]^2 cancellation).
        s = jnp.sum(acc, axis=0, keepdims=True)                               # (1, Cout)
        mean_g = jnp.dot(s, Mj, preferred_element_type=jnp.float32) / n       # (1, G)
        mean_c = jnp.dot(mean_g, MTj, preferred_element_type=jnp.float32)     # (1, Cout)
        cen = acc - mean_c
        ssd = jnp.sum(cen * cen, axis=0, keepdims=True)                       # (1, Cout)
        var_g = jnp.dot(ssd, Mj, preferred_element_type=jnp.float32) / n      # (1, G)
        inv_g = lax.rsqrt(var_g + eps)
        inv_c = jnp.dot(inv_g, MTj, preferred_element_type=jnp.float32)       # (1, Cout)
        return jnp.maximum(cen * inv_c * gamma + beta, 0.0)

    # ---------------- layer 1: conv1 (one im2col matmul) ----------------
    xv = xp_ref[...]                                       # (1, Hp, Wp, Cin) bf16
    px = im2col(xv, Cin)                                   # (HW, 9*Cin) bf16
    acc1 = jnp.dot(px, w1_ref[...], preferred_element_type=jnp.float32) + b1

    # Consume px for layer 2's x-contribution NOW, before GN1 and before the
    # y1 patch matrix is built, so the largest im2col slab dies early.
    acc2x = jnp.dot(px, w2x_ref[...], preferred_element_type=jnp.float32)

    y1 = groupnorm_relu(acc1, g1, be1)                     # (HW, Cout) f32

    # ---- zero-padded VMEM scratch for y1 (no concat relayouts, no HBM) ----
    y1p_ref[...] = jnp.zeros_like(y1p_ref)
    y1p_ref[:, pad:pad + H, pad:pad + W, :] = y1.reshape(1, H, W, Cout)

    # ---- layer 2: conv2(cat(x, y1)) = conv2x(x) + conv2y(y1), GN, ReLU ----
    yv = y1p_ref[...]                                      # (1, Hp, Wp, Cout) f32
    py = im2col(yv, Cout).astype(jnp.bfloat16)             # (HW, 9*Cout) bf16
    acc2 = (acc2x
            + jnp.dot(py, w2y_ref[...], preferred_element_type=jnp.float32)
            + b2)
    y2 = groupnorm_relu(acc2, g2, be2)                     # (HW, Cout)

    o_ref[...] = y2.reshape(1, H, W, Cout)


def unet_conv_block(x_nchw, params, num_groups, padding, eps=1e-5):
    """Forward of UNetConvBlock. Input/output are NCHW like the PyTorch module."""
    B, Cin, H, W = x_nchw.shape
    w1 = params["w1"]
    KH, KW, _, Cout = w1.shape
    # the channel concat in the module implies a 'same' convolution
    assert KH == KW and 2 * padding == KH - 1
    assert num_groups > 0, "BatchNorm2d branch (num_groups == 0) not implemented"
    assert Cout % num_groups == 0, "GroupNorm requires out_channels % num_groups == 0"

    # NCHW -> NHWC, pad spatially, cast to bf16 (the MXU operands are bf16
    # anyway) so the largest HBM->VMEM DMA halves.
    x = jnp.transpose(x_nchw, (0, 2, 3, 1))
    xp = jnp.pad(x, ((0, 0), (padding, padding), (padding, padding), (0, 0))
                 ).astype(jnp.bfloat16)
    Hp, Wp = H + 2 * padding, W + 2 * padding

    # weights: flatten taps for the im2col matmul; split conv2 along its input
    # channels (first Cin -> x, next Cout -> y1); feed the MXU bf16.
    w1f = w1.reshape(KH * KW * Cin, Cout).astype(jnp.bfloat16)
    w2 = params["w2"]                                             # (KH,KW,Cin+Cout,Cout)
    w2x = w2[:, :, :Cin, :].reshape(KH * KW * Cin, Cout).astype(jnp.bfloat16)
    w2y = w2[:, :, Cin:, :].reshape(KH * KW * Cout, Cout).astype(jnp.bfloat16)

    gsel_np, gselt_np = _group_select_matrices(Cout, num_groups)  # numpy constants
    gsel = jnp.asarray(gsel_np)
    gselt = jnp.asarray(gselt_np)

    # pack the six per-channel vectors into ONE (6, Cout) input
    prm = jnp.stack([params["b1"], params["g1"], params["be1"],
                     params["b2"], params["g2"], params["be2"]],
                    axis=0).astype(jnp.float32)                   # (6, Cout)

    kernel = functools.partial(
        _fused_unet_block_kernel, H=H, W=W, KH=KH, KW=KW,
        Cin=Cin, Cout=Cout, G=num_groups, pad=padding, eps=eps)

    # --- VMEM budget derived from the actual buffers (not a flat 32 MiB) ---
    HW = H * W
    block_shapes = [
        ((1, Hp, Wp, Cin), jnp.bfloat16),          # xp block
        ((KH * KW * Cin, Cout), jnp.bfloat16),     # w1
        ((KH * KW * Cin, Cout), jnp.bfloat16),     # w2x
        ((KH * KW * Cout, Cout), jnp.bfloat16),    # w2y
        ((Cout, num_groups), jnp.float32),         # gsel
        ((num_groups, Cout), jnp.float32),         # gselt
        ((6, Cout), jnp.float32),                  # packed params
        ((1, H, W, Cout), jnp.float32),            # output block
    ]
    pipelined = 2 * sum(_vmem_bytes(s, d) for s, d in block_shapes)  # double-buffered
    scratch_b = _vmem_bytes((1, Hp, Wp, Cout), jnp.float32)
    interm = (_vmem_bytes((HW, KH * KW * Cin), jnp.bfloat16)         # px
              + _vmem_bytes((HW, KH * KW * Cout), jnp.bfloat16)      # py
              + 6 * _vmem_bytes((HW, Cout), jnp.float32))            # accs / y1 / cen
    vmem_budget = int(min(48 * 2**20,                                # v7x-safe ceiling
                          max(2 * 2**20, 2 * (pipelined + scratch_b + interm))))

    y = pl.pallas_call(
        kernel,
        out_shape=jax.ShapeDtypeStruct((B, H, W, Cout), jnp.float32),
        grid_spec=pltpu.PrefetchScalarGridSpec(
            num_scalar_prefetch=0,
            grid=(B,),                                 # one sample per grid step
            in_specs=[
                pl.BlockSpec((1, Hp, Wp, Cin), lambda b: (b, 0, 0, 0)),
                pl.BlockSpec((KH * KW * Cin, Cout), lambda b: (0, 0)),
                pl.BlockSpec((KH * KW * Cin, Cout), lambda b: (0, 0)),
                pl.BlockSpec((KH * KW * Cout, Cout), lambda b: (0, 0)),
                pl.BlockSpec((Cout, num_groups), lambda b: (0, 0)),
                pl.BlockSpec((num_groups, Cout), lambda b: (0, 0)),
                pl.BlockSpec((6, Cout), lambda b: (0, 0)),
            ],
            out_specs=pl.BlockSpec((1, H, W, Cout), lambda b: (b, 0, 0, 0)),
            scratch_shapes=[pltpu.VMEM((1, Hp, Wp, Cout), jnp.float32)],
        ),
        compiler_params=pltpu.CompilerParams(
            dimension_semantics=("parallel",),         # megacore on v7x
            vmem_limit_bytes=vmem_budget),
    )(xp, w1f, w2x, w2y, gsel, gselt, prm)

    return jnp.transpose(y, (0, 3, 1, 2))              # NHWC -> NCHW


# ---------------- pure-JAX reference (for correctness check) ----------------
def _ref_conv_gn_relu(x, w, b, g, be, G, pad, eps=1e-5):
    # mirror the kernel's bf16 MXU operands (bf16*bf16 products are exact in f32)
    xb = x.astype(jnp.bfloat16).astype(jnp.float32)
    wb = w.astype(jnp.bfloat16).astype(jnp.float32)
    y = lax.conv_general_dilated(
        xb, wb, window_strides=(1, 1), padding=[(pad, pad), (pad, pad)],
        dimension_numbers=("NHWC", "HWIO", "NHWC"),
        preferred_element_type=jnp.float32) + b
    B, H, W, C = y.shape
    yr = y.reshape(B, H * W, G, C // G)
    mean = yr.mean(axis=(1, 3), keepdims=True)
    var = yr.var(axis=(1, 3), keepdims=True)
    yn = ((yr - mean) / jnp.sqrt(var + eps)).reshape(B, H, W, C)
    return jnp.maximum(yn * g + be, 0.0)


def _ref_unet_conv_block(x_nchw, params, G, pad):
    x = jnp.transpose(x_nchw, (0, 2, 3, 1))
    y1 = _ref_conv_gn_relu(x, params["w1"], params["b1"], params["g1"], params["be1"], G, pad)
    cat = jnp.concatenate([x, y1], axis=-1)   # torch.cat([x, conv1(x)], dim=1)
    y2 = _ref_conv_gn_relu(cat, params["w2"], params["b2"], params["g2"], params["be2"], G, pad)
    return jnp.transpose(y2, (0, 3, 1, 2))


# ---------------- deterministic parameter init ----------------
def init_params(key, in_ch, out_ch, k, num_groups):
    keys = jax.random.split(key, 8)

    def conv_init(kw, kb, cin, cout):
        fan_in = cin * k * k
        bound = 1.0 / np.sqrt(fan_in)
        w = jax.random.uniform(kw, (k, k, cin, cout), jnp.float32, -bound, bound)
        b = jax.random.uniform(kb, (cout,), jnp.float32, -bound, bound)
        return w, b

    w1, b1 = conv_init(keys[0], keys[1], in_ch, out_ch)
    w2, b2 = conv_init(keys[2], keys[3], in_ch + out_ch, out_ch)
    g1 = 1.0 + 0.1 * jax.random.normal(keys[4], (out_ch,), jnp.float32)
    be1 = 0.1 * jax.random.normal(keys[5], (out_ch,), jnp.float32)
    g2 = 1.0 + 0.1 * jax.random.normal(keys[6], (out_ch,), jnp.float32)
    be2 = 0.1 * jax.random.normal(keys[7], (out_ch,), jnp.float32)
    return dict(w1=w1, b1=b1, g1=g1, be1=be1, w2=w2, b2=b2, g2=g2, be2=be2)


if __name__ == "__main__":
    B, Cin, Cout, H, W = 2, 4, 8, 16, 16
    KSIZE, PAD, NUM_GROUPS = 3, 1, 4        # num_groups > 0 -> GroupNorm branch

    key = jax.random.PRNGKey(0)
    kx, kp = jax.random.split(key)
    x = jax.random.normal(kx, (B, Cin, H, W), jnp.float32)
    params = init_params(kp, Cin, Cout, KSIZE, NUM_GROUPS)

    fwd = jax.jit(functools.partial(unet_conv_block, num_groups=NUM_GROUPS, padding=PAD))
    out = jax.block_until_ready(fwd(x, params))

    ref = jax.block_until_ready(_ref_unet_conv_block(x, params, NUM_GROUPS, PAD))
    assert out.shape == (B, Cout, H, W)
    # bf16 MXU operands (kernel and matched reference) set the tolerance
    np.testing.assert_allclose(np.asarray(out), np.asarray(ref), atol=1e-2, rtol=1e-2)

    print("KERNEL_OK")
</pallas_src>

<mosaic_0001>
module attributes {stable_mosaic.version = 11 : i64} {
  func.func @_fused_unet_block_kernel(%arg0: i32, %arg1: memref<1x18x18x4xbf16, #tpu.memory_space<vmem>>, %arg2: memref<36x8xbf16, #tpu.memory_space<vmem>>, %arg3: memref<36x8xbf16, #tpu.memory_space<vmem>>, %arg4: memref<72x8xbf16, #tpu.memory_space<vmem>>, %arg5: memref<8x4xf32, #tpu.memory_space<vmem>>, %arg6: memref<4x8xf32, #tpu.memory_space<vmem>>, %arg7: memref<6x8xf32, #tpu.memory_space<vmem>>, %arg8: memref<1x16x16x8xf32, #tpu.memory_space<vmem>>, %arg9: memref<1x18x18x8xf32, #tpu.memory_space<vmem>>) attributes {dimension_semantics = [#tpu.dimension_semantics<parallel>], iteration_bounds = array<i64: 2>, scalar_prefetch = 0 : i64, scratch_operands = 1 : i64, tpu.core_type = #tpu.core_type<tc>, window_params = [{transform_indices = @transform_0, window_bounds = array<i64: 1, 18, 18, 4>}, {pipeline_mode = #tpu.pipeline_mode<synchronous>, transform_indices = @transform_1, window_bounds = array<i64: 36, 8>}, {pipeline_mode = #tpu.pipeline_mode<synchronous>, transform_indices = @transform_2, window_bounds = array<i64: 36, 8>}, {pipeline_mode = #tpu.pipeline_mode<synchronous>, transform_indices = @transform_3, window_bounds = array<i64: 72, 8>}, {pipeline_mode = #tpu.pipeline_mode<synchronous>, transform_indices = @transform_4, window_bounds = array<i64: 8, 4>}, {pipeline_mode = #tpu.pipeline_mode<synchronous>, transform_indices = @transform_5, window_bounds = array<i64: 4, 8>}, {pipeline_mode = #tpu.pipeline_mode<synchronous>, transform_indices = @transform_6, window_bounds = array<i64: 6, 8>}, {transform_indices = @transform_7, window_bounds = array<i64: 1, 16, 16, 8>}]} {
    %c0 = arith.constant 0 : index
    %c0_0 = arith.constant 0 : index
    %0 = vector.load %arg5[%c0, %c0_0] : memref<8x4xf32, #tpu.memory_space<vmem>>, vector<8x4xf32>
    %c0_1 = arith.constant 0 : index
    %c0_2 = arith.constant 0 : index
    %1 = vector.load %arg6[%c0_1, %c0_2] : memref<4x8xf32, #tpu.memory_space<vmem>>, vector<4x8xf32>
    %c0_3 = arith.constant 0 : index
    %c0_4 = arith.constant 0 : index
    %2 = vector.load %arg7[%c0_3, %c0_4] : memref<6x8xf32, #tpu.memory_space<vmem>>, vector<1x8xf32>
    %c1 = arith.constant 1 : index
    %c0_5 = arith.constant 0 : index
    %3 = vector.load %arg7[%c1, %c0_5] : memref<6x8xf32, #tpu.memory_space<vmem>>, vector<1x8xf32>
    %c2 = arith.constant 2 : index
    %c0_6 = arith.constant 0 : index
    %4 = vector.load %arg7[%c2, %c0_6] : memref<6x8xf32, #tpu.memory_space<vmem>>, vector<1x8xf32>
    %c3 = arith.constant 3 : index
    %c0_7 = arith.constant 0 : index
    %5 = vector.load %arg7[%c3, %c0_7] : memref<6x8xf32, #tpu.memory_space<vmem>>, vector<1x8xf32>
    %c4 = arith.constant 4 : index
    %c0_8 = arith.constant 0 : index
    %6 = vector.load %arg7[%c4, %c0_8] : memref<6x8xf32, #tpu.memory_space<vmem>>, vector<1x8xf32>
    %c5 = arith.constant 5 : index
    %c0_9 = arith.constant 0 : index
    %7 = vector.load %arg7[%c5, %c0_9] : memref<6x8xf32, #tpu.memory_space<vmem>>, vector<1x8xf32>
    %c0_10 = arith.constant 0 : index
    %c0_11 = arith.constant 0 : index
    %c0_12 = arith.constant 0 : index
    %c0_13 = arith.constant 0 : index
    %8 = vector.load %arg1[%c0_10, %c0_11, %c0_12, %c0_13] : memref<1x18x18x4xbf16, #tpu.memory_space<vmem>>, vector<1x18x18x4xbf16>
    %9 = vector.extract_strided_slice %8 {offsets = [0, 0, 0, 0], sizes = [1, 16, 16, 4], strides = [1, 1, 1, 1]} : vector<1x18x18x4xbf16> to vector<1x16x16x4xbf16>
    %10 = vector.shape_cast %9 : vector<1x16x16x4xbf16> to vector<256x4xbf16>
    %11 = vector.extract_strided_slice %8 {offsets = [0, 0, 1, 0], sizes = [1, 16, 16, 4], strides = [1, 1, 1, 1]} : vector<1x18x18x4xbf16> to vector<1x16x16x4xbf16>
    %12 = vector.shape_cast %11 : vector<1x16x16x4xbf16> to vector<256x4xbf16>
    %13 = vector.extract_strided_slice %8 {offsets = [0, 0, 2, 0], sizes = [1, 16, 16, 4], strides = [1, 1, 1, 1]} : vector<1x18x18x4xbf16> to vector<1x16x16x4xbf16>
    %14 = vector.shape_cast %13 : vector<1x16x16x4xbf16> to vector<256x4xbf16>
    %15 = vector.extract_strided_slice %8 {offsets = [0, 1, 0, 0], sizes = [1, 16, 16, 4], strides = [1, 1, 1, 1]} : vector<1x18x18x4xbf16> to vector<1x16x16x4xbf16>
    %16 = vector.shape_cast %15 : vector<1x16x16x4xbf16> to vector<256x4xbf16>
    %17 = vector.extract_strided_slice %8 {offsets = [0, 1, 1, 0], sizes = [1, 16, 16, 4], strides = [1, 1, 1, 1]} : vector<1x18x18x4xbf16> to vector<1x16x16x4xbf16>
    %18 = vector.shape_cast %17 : vector<1x16x16x4xbf16> to vector<256x4xbf16>
    %19 = vector.extract_strided_slice %8 {offsets = [0, 1, 2, 0], sizes = [1, 16, 16, 4], strides = [1, 1, 1, 1]} : vector<1x18x18x4xbf16> to vector<1x16x16x4xbf16>
    %20 = vector.shape_cast %19 : vector<1x16x16x4xbf16> to vector<256x4xbf16>
    %21 = vector.extract_strided_slice %8 {offsets = [0, 2, 0, 0], sizes = [1, 16, 16, 4], strides = [1, 1, 1, 1]} : vector<1x18x18x4xbf16> to vector<1x16x16x4xbf16>
    %22 = vector.shape_cast %21 : vector<1x16x16x4xbf16> to vector<256x4xbf16>
    %23 = vector.extract_strided_slice %8 {offsets = [0, 2, 1, 0], sizes = [1, 16, 16, 4], strides = [1, 1, 1, 1]} : vector<1x18x18x4xbf16> to vector<1x16x16x4xbf16>
    %24 = vector.shape_cast %23 : vector<1x16x16x4xbf16> to vector<256x4xbf16>
    %25 = vector.extract_strided_slice %8 {offsets = [0, 2, 2, 0], sizes = [1, 16, 16, 4], strides = [1, 1, 1, 1]} : vector<1x18x18x4xbf16> to vector<1x16x16x4xbf16>
    %26 = vector.shape_cast %25 : vector<1x16x16x4xbf16> to vector<256x4xbf16>
    %27 = tpu.concatenate %10, %12, %14, %16, %18, %20, %22, %24, %26 in 1 : vector<256x4xbf16>, vector<256x4xbf16>, vector<256x4xbf16>, vector<256x4xbf16>, vector<256x4xbf16>, vector<256x4xbf16>, vector<256x4xbf16>, vector<256x4xbf16>, vector<256x4xbf16> -> vector<256x36xbf16>
    %c0_14 = arith.constant 0 : index
    %c0_15 = arith.constant 0 : index
    %28 = vector.load %arg2[%c0_14, %c0_15] : memref<36x8xbf16, #tpu.memory_space<vmem>>, vector<36x8xbf16>
    %cst = arith.constant dense<0.000000e+00> : vector<256x8xf32>
    %29 = tpu.matmul %27, %28, %cst {dimension_numbers = #tpu.dot_dimension_numbers<[1], [0], [0], [1], [0, 0, 1, 1], [], []>} : vector<256x36xbf16>, vector<36x8xbf16>, vector<256x8xf32> -> vector<256x8xf32>
    %30 = vector.broadcast %2 : vector<1x8xf32> to vector<256x8xf32>
    %31 = arith.addf %29, %30 : vector<256x8xf32>
    %c0_16 = arith.constant 0 : index
    %c0_17 = arith.constant 0 : index
    %32 = vector.load %arg3[%c0_16, %c0_17] : memref<36x8xbf16, #tpu.memory_space<vmem>>, vector<36x8xbf16>
    %cst_18 = arith.constant dense<0.000000e+00> : vector<256x8xf32>
    %33 = tpu.matmul %27, %32, %cst_18 {dimension_numbers = #tpu.dot_dimension_numbers<[1], [0], [0], [1], [0, 0, 1, 1], [], []>} : vector<256x36xbf16>, vector<36x8xbf16>, vector<256x8xf32> -> vector<256x8xf32>
    %cst_19 = arith.constant dense<0.000000e+00> : vector<8xf32>
    %34 = vector.multi_reduction <add>, %31, %cst_19 [0] : vector<256x8xf32> to vector<8xf32>
    %35 = vector.shape_cast %34 : vector<8xf32> to vector<1x8xf32>
    %cst_20 = arith.constant dense<0.000000e+00> : vector<1x4xf32>
    %36 = tpu.matmul %35, %0, %cst_20 {dimension_numbers = #tpu.dot_dimension_numbers<[1], [0], [0], [1], [0, 0, 1, 1], [], []>} : vector<1x8xf32>, vector<8x4xf32>, vector<1x4xf32> -> vector<1x4xf32>
    %cst_21 = arith.constant 5.120000e+02 : f32
    %37 = vector.broadcast %cst_21 : f32 to vector<1x4xf32>
    %38 = arith.divf %36, %37 : vector<1x4xf32>
    %cst_22 = arith.constant dense<0.000000e+00> : vector<1x8xf32>
    %39 = tpu.matmul %38, %1, %cst_22 {dimension_numbers = #tpu.dot_dimension_numbers<[1], [0], [0], [1], [0, 0, 1, 1], [], []>} : vector<1x4xf32>, vector<4x8xf32>, vector<1x8xf32> -> vector<1x8xf32>
    %40 = vector.broadcast %39 : vector<1x8xf32> to vector<256x8xf32>
    %41 = arith.subf %31, %40 : vector<256x8xf32>
    %42 = arith.mulf %41, %41 : vector<256x8xf32>
    %cst_23 = arith.constant dense<0.000000e+00> : vector<8xf32>
    %43 = vector.multi_reduction <add>, %42, %cst_23 [0] : vector<256x8xf32> to vector<8xf32>
    %44 = vector.shape_cast %43 : vector<8xf32> to vector<1x8xf32>
    %cst_24 = arith.constant dense<0.000000e+00> : vector<1x4xf32>
    %45 = tpu.matmul %44, %0, %cst_24 {dimension_numbers = #tpu.dot_dimension_numbers<[1], [0], [0], [1], [0, 0, 1, 1], [], []>} : vector<1x8xf32>, vector<8x4xf32>, vector<1x4xf32> -> vector<1x4xf32>
    %cst_25 = arith.constant 5.120000e+02 : f32
    %46 = vector.broadcast %cst_25 : f32 to vector<1x4xf32>
    %47 = arith.divf %45, %46 : vector<1x4xf32>
    %cst_26 = arith.constant 9.99999974E-6 : f32
    %48 = vector.broadcast %cst_26 : f32 to vector<1x4xf32>
    %49 = arith.addf %47, %48 : vector<1x4xf32>
    %50 = math.rsqrt %49 : vector<1x4xf32>
    %cst_27 = arith.constant dense<0.000000e+00> : vector<1x8xf32>
    %51 = tpu.matmul %50, %1, %cst_27 {dimension_numbers = #tpu.dot_dimension_numbers<[1], [0], [0], [1], [0, 0, 1, 1], [], []>} : vector<1x4xf32>, vector<4x8xf32>, vector<1x8xf32> -> vector<1x8xf32>
    %52 = vector.broadcast %51 : vector<1x8xf32> to vector<256x8xf32>
    %53 = arith.mulf %41, %52 : vector<256x8xf32>
    %54 = vector.broadcast %3 : vector<1x8xf32> to vector<256x8xf32>
    %55 = arith.mulf %53, %54 : vector<256x8xf32>
    %56 = vector.broadcast %4 : vector<1x8xf32> to vector<256x8xf32>
    %57 = arith.addf %55, %56 : vector<256x8xf32>
    %cst_28 = arith.constant 0.000000e+00 : f32
    %58 = vector.broadcast %cst_28 : f32 to vector<256x8xf32>
    %59 = arith.maximumf %57, %58 : vector<256x8xf32>
    %cst_29 = arith.constant 0.000000e+00 : f32
    %60 = vector.broadcast %cst_29 : f32 to vector<1x18x18x8xf32>
    %c0_30 = arith.constant 0 : index
    %c0_31 = arith.constant 0 : index
    %c0_32 = arith.constant 0 : index
    %c0_33 = arith.constant 0 : index
    %61 = vector.load %arg9[%c0_30, %c0_31, %c0_32, %c0_33] : memref<1x18x18x8xf32, #tpu.memory_space<vmem>>, vector<1x18x18x8xf32>
    tpu.vector_store %arg9[%c0_30, %c0_31, %c0_32, %c0_33], %60 {strides = array<i32>} : memref<1x18x18x8xf32, #tpu.memory_space<vmem>>, vector<1x18x18x8xf32>,
    %62 = vector.shape_cast %59 : vector<256x8xf32> to vector<1x16x16x8xf32>
    %c0_34 = arith.constant 0 : index
    %c1_35 = arith.constant 1 : index
    %c1_36 = arith.constant 1 : index
    %c0_37 = arith.constant 0 : index
    %63 = vector.load %arg9[%c0_34, %c1_35, %c1_36, %c0_37] : memref<1x18x18x8xf32, #tpu.memory_space<vmem>>, vector<1x16x16x8xf32>
    tpu.vector_store %arg9[%c0_34, %c1_35, %c1_36, %c0_37], %62 {strides = array<i32>} : memref<1x18x18x8xf32, #tpu.memory_space<vmem>>, vector<1x16x16x8xf32>,
    %c0_38 = arith.constant 0 : index
    %c0_39 = arith.constant 0 : index
    %c0_40 = arith.constant 0 : index
    %c0_41 = arith.constant 0 : index
    %64 = vector.load %arg9[%c0_38, %c0_39, %c0_40, %c0_41] : memref<1x18x18x8xf32, #tpu.memory_space<vmem>>, vector<1x18x18x8xf32>
    %65 = vector.extract_strided_slice %64 {offsets = [0, 0, 0, 0], sizes = [1, 16, 16, 8], strides = [1, 1, 1, 1]} : vector<1x18x18x8xf32> to vector<1x16x16x8xf32>
    %66 = vector.shape_cast %65 : vector<1x16x16x8xf32> to vector<256x8xf32>
    %67 = vector.extract_strided_slice %64 {offsets = [0, 0, 1, 0], sizes = [1, 16, 16, 8], strides = [1, 1, 1, 1]} : vector<1x18x18x8xf32> to vector<1x16x16x8xf32>
    %68 = vector.shape_cast %67 : vector<1x16x16x8xf32> to vector<256x8xf32>
    %69 = vector.extract_strided_slice %64 {offsets = [0, 0, 2, 0], sizes = [1, 16, 16, 8], strides = [1, 1, 1, 1]} : vector<1x18x18x8xf32> to vector<1x16x16x8xf32>
    %70 = vector.shape_cast %69 : vector<1x16x16x8xf32> to vector<256x8xf32>
    %71 = vector.extract_strided_slice %64 {offsets = [0, 1, 0, 0], sizes = [1, 16, 16, 8], strides = [1, 1, 1, 1]} : vector<1x18x18x8xf32> to vector<1x16x16x8xf32>
    %72 = vector.shape_cast %71 : vector<1x16x16x8xf32> to vector<256x8xf32>
    %73 = vector.extract_strided_slice %64 {offsets = [0, 1, 1, 0], sizes = [1, 16, 16, 8], strides = [1, 1, 1, 1]} : vector<1x18x18x8xf32> to vector<1x16x16x8xf32>
    %74 = vector.shape_cast %73 : vector<1x16x16x8xf32> to vector<256x8xf32>
    %75 = vector.extract_strided_slice %64 {offsets = [0, 1, 2, 0], sizes = [1, 16, 16, 8], strides = [1, 1, 1, 1]} : vector<1x18x18x8xf32> to vector<1x16x16x8xf32>
    %76 = vector.shape_cast %75 : vector<1x16x16x8xf32> to vector<256x8xf32>
    %77 = vector.extract_strided_slice %64 {offsets = [0, 2, 0, 0], sizes = [1, 16, 16, 8], strides = [1, 1, 1, 1]} : vector<1x18x18x8xf32> to vector<1x16x16x8xf32>
    %78 = vector.shape_cast %77 : vector<1x16x16x8xf32> to vector<256x8xf32>
    %79 = vector.extract_strided_slice %64 {offsets = [0, 2, 1, 0], sizes = [1, 16, 16, 8], strides = [1, 1, 1, 1]} : vector<1x18x18x8xf32> to vector<1x16x16x8xf32>
    %80 = vector.shape_cast %79 : vector<1x16x16x8xf32> to vector<256x8xf32>
    %81 = vector.extract_strided_slice %64 {offsets = [0, 2, 2, 0], sizes = [1, 16, 16, 8], strides = [1, 1, 1, 1]} : vector<1x18x18x8xf32> to vector<1x16x16x8xf32>
    %82 = vector.shape_cast %81 : vector<1x16x16x8xf32> to vector<256x8xf32>
    %83 = tpu.concatenate %66, %68, %70, %72, %74, %76, %78, %80, %82 in 1 : vector<256x8xf32>, vector<256x8xf32>, vector<256x8xf32>, vector<256x8xf32>, vector<256x8xf32>, vector<256x8xf32>, vector<256x8xf32>, vector<256x8xf32>, vector<256x8xf32> -> vector<256x72xf32>
    %84 = arith.truncf %83 : vector<256x72xf32> to vector<256x72xbf16>
    %c0_42 = arith.constant 0 : index
    %c0_43 = arith.constant 0 : index
    %85 = vector.load %arg4[%c0_42, %c0_43] : memref<72x8xbf16, #tpu.memory_space<vmem>>, vector<72x8xbf16>
    %cst_44 = arith.constant dense<0.000000e+00> : vector<256x8xf32>
    %86 = tpu.matmul %84, %85, %cst_44 {dimension_numbers = #tpu.dot_dimension_numbers<[1], [0], [0], [1], [0, 0, 1, 1], [], []>} : vector<256x72xbf16>, vector<72x8xbf16>, vector<256x8xf32> -> vector<256x8xf32>
    %87 = arith.addf %33, %86 : vector<256x8xf32>
    %88 = vector.broadcast %5 : vector<1x8xf32> to vector<256x8xf32>
    %89 = arith.addf %87, %88 : vector<256x8xf32>
    %cst_45 = arith.constant dense<0.000000e+00> : vector<8xf32>
    %90 = vector.multi_reduction <add>, %89, %cst_45 [0] : vector<256x8xf32> to vector<8xf32>
    %91 = vector.shape_cast %90 : vector<8xf32> to vector<1x8xf32>
    %cst_46 = arith.constant dense<0.000000e+00> : vector<1x4xf32>
    %92 = tpu.matmul %91, %0, %cst_46 {dimension_numbers = #tpu.dot_dimension_numbers<[1], [0], [0], [1], [0, 0, 1, 1], [], []>} : vector<1x8xf32>, vector<8x4xf32>, vector<1x4xf32> -> vector<1x4xf32>
    %cst_47 = arith.constant 5.120000e+02 : f32
    %93 = vector.broadcast %cst_47 : f32 to vector<1x4xf32>
    %94 = arith.divf %92, %93 : vector<1x4xf32>
    %cst_48 = arith.constant dense<0.000000e+00> : vector<1x8xf32>
    %95 = tpu.matmul %94, %1, %cst_48 {dimension_numbers = #tpu.dot_dimension_numbers<[1], [0], [0], [1], [0, 0, 1, 1], [], []>} : vector<1x4xf32>, vector<4x8xf32>, vector<1x8xf32> -> vector<1x8xf32>
    %96 = vector.broadcast %95 : vector<1x8xf32> to vector<256x8xf32>
    %97 = arith.subf %89, %96 : vector<256x8xf32>
    %98 = arith.mulf %97, %97 : vector<256x8xf32>
    %cst_49 = arith.constant dense<0.000000e+00> : vector<8xf32>
    %99 = vector.multi_reduction <add>, %98, %cst_49 [0] : vector<256x8xf32> to vector<8xf32>
    %100 = vector.shape_cast %99 : vector<8xf32> to vector<1x8xf32>
    %cst_50 = arith.constant dense<0.000000e+00> : vector<1x4xf32>
    %101 = tpu.matmul %100, %0, %cst_50 {dimension_numbers = #tpu.dot_dimension_numbers<[1], [0], [0], [1], [0, 0, 1, 1], [], []>} : vector<1x8xf32>, vector<8x4xf32>, vector<1x4xf32> -> vector<1x4xf32>
    %cst_51 = arith.constant 5.120000e+02 : f32
    %102 = vector.broadcast %cst_51 : f32 to vector<1x4xf32>
    %103 = arith.divf %101, %102 : vector<1x4xf32>
    %cst_52 = arith.constant 9.99999974E-6 : f32
    %104 = vector.broadcast %cst_52 : f32 to vector<1x4xf32>
    %105 = arith.addf %103, %104 : vector<1x4xf32>
    %106 = math.rsqrt %105 : vector<1x4xf32>
    %cst_53 = arith.constant dense<0.000000e+00> : vector<1x8xf32>
    %107 = tpu.matmul %106, %1, %cst_53 {dimension_numbers = #tpu.dot_dimension_numbers<[1], [0], [0], [1], [0, 0, 1, 1], [], []>} : vector<1x4xf32>, vector<4x8xf32>, vector<1x8xf32> -> vector<1x8xf32>
    %108 = vector.broadcast %107 : vector<1x8xf32> to vector<256x8xf32>
    %109 = arith.mulf %97, %108 : vector<256x8xf32>
    %110 = vector.broadcast %6 : vector<1x8xf32> to vector<256x8xf32>
    %111 = arith.mulf %109, %110 : vector<256x8xf32>
    %112 = vector.broadcast %7 : vector<1x8xf32> to vector<256x8xf32>
    %113 = arith.addf %111, %112 : vector<256x8xf32>
    %cst_54 = arith.constant 0.000000e+00 : f32
    %114 = vector.broadcast %cst_54 : f32 to vector<256x8xf32>
    %115 = arith.maximumf %113, %114 : vector<256x8xf32>
    %116 = vector.shape_cast %115 : vector<256x8xf32> to vector<1x16x16x8xf32>
    %c0_55 = arith.constant 0 : index
    %c0_56 = arith.constant 0 : index
    %c0_57 = arith.constant 0 : index
    %c0_58 = arith.constant 0 : index
    %117 = vector.load %arg8[%c0_55, %c0_56, %c0_57, %c0_58] : memref<1x16x16x8xf32, #tpu.memory_space<vmem>>, vector<1x16x16x8xf32>
    tpu.vector_store %arg8[%c0_55, %c0_56, %c0_57, %c0_58], %116 {strides = array<i32>} : memref<1x16x16x8xf32, #tpu.memory_space<vmem>>, vector<1x16x16x8xf32>,
    return
  }
  func.func @transform_0(%arg0: i32) -> (i32, i32, i32, i32) {
    %c0_i32 = arith.constant 0 : i32
    %c0_i32_0 = arith.constant 0 : i32
    %c0_i32_1 = arith.constant 0 : i32
    %c0_i32_2 = arith.constant 0 : i32
    return %arg0, %c0_i32, %c0_i32_0, %c0_i32_1 : i32, i32, i32, i32
  }
  func.func @transform_1(%arg0: i32) -> (i32, i32) {
    %c0_i32 = arith.constant 0 : i32
    %c0_i32_0 = arith.constant 0 : i32
    %c0_i32_1 = arith.constant 0 : i32
    return %c0_i32, %c0_i32_0 : i32, i32
  }
  func.func @transform_2(%arg0: i32) -> (i32, i32) {
    %c0_i32 = arith.constant 0 : i32
    %c0_i32_0 = arith.constant 0 : i32
    %c0_i32_1 = arith.constant 0 : i32
    return %c0_i32, %c0_i32_0 : i32, i32
  }
  func.func @transform_3(%arg0: i32) -> (i32, i32) {
    %c0_i32 = arith.constant 0 : i32
    %c0_i32_0 = arith.constant 0 : i32
    %c0_i32_1 = arith.constant 0 : i32
    return %c0_i32, %c0_i32_0 : i32, i32
  }
  func.func @transform_4(%arg0: i32) -> (i32, i32) {
    %c0_i32 = arith.constant 0 : i32
    %c0_i32_0 = arith.constant 0 : i32
    %c0_i32_1 = arith.constant 0 : i32
    return %c0_i32, %c0_i32_0 : i32, i32
  }
  func.func @transform_5(%arg0: i32) -> (i32, i32) {
    %c0_i32 = arith.constant 0 : i32
    %c0_i32_0 = arith.constant 0 : i32
    %c0_i32_1 = arith.constant 0 : i32
    return %c0_i32, %c0_i32_0 : i32, i32
  }
  func.func @transform_6(%arg0: i32) -> (i32, i32) {
    %c0_i32 = arith.constant 0 : i32
    %c0_i32_0 = arith.constant 0 : i32
    %c0_i32_1 = arith.constant 0 : i32
    return %c0_i32, %c0_i32_0 : i32, i32
  }
  func.func @transform_7(%arg0: i32) -> (i32, i32, i32, i32) {
    %c0_i32 = arith.constant 0 : i32
    %c0_i32_0 = arith.constant 0 : i32
    %c0_i32_1 = arith.constant 0 : i32
    %c0_i32_2 = arith.constant 0 : i32
    return %arg0, %c0_i32, %c0_i32_0, %c0_i32_1 : i32, i32, i32, i32
  }
}

</mosaic_0001>

<llo_original>
// kernel: unet_conv_block.1
$region0: #{unet_conv_block.1}
  #allocation0 [shape = 'u32[]', space=smem, size = 0x4, offset = 0x4, fixed_abs, tag = 'smem constant byte address 0x4 - core index']
  #allocation1 [shape = 'u32[144,128]{1,0:T(1,128)}', space=vmem, size = 0x12000, scoped, tag = 'internal scratch']
  #allocation2 [shape = 'f32[1,18,18,8]{3,2,1,0:T(8,128)}', space=vmem, size = 0x36000, scoped, tag = 'scratch operand']
  %s0 = inlined_call_operand.vmem [shape: bf16[2,18,18,4], index: 0, kind: input, shape index: {}]
  %s1 = inlined_call_operand.vmem [shape: bf16[36,8], index: 1, kind: input, shape index: {}]
  %s2 = inlined_call_operand.vmem [shape: bf16[36,8], index: 2, kind: input, shape index: {}]
  %s3 = inlined_call_operand.vmem [shape: bf16[72,8], index: 3, kind: input, shape index: {}]
  %s4 = inlined_call_operand.vmem [shape: f32[8,4], index: 4, kind: input, shape index: {}]
  %s5 = inlined_call_operand.vmem [shape: f32[4,8], index: 5, kind: input, shape index: {}]
  %s6 = inlined_call_operand.vmem [shape: f32[6,8], index: 6, kind: input, shape index: {}]
  %s7 = inlined_call_operand.vmem [shape: f32[2,16,16,8], index: 7, kind: output, shape index: {}]
  %s8 = sld [smem:[#allocation0]]
  $region61: #{unet_conv_block.1} parent=0
    _
  %s10 = ssub.s32 1, %s8
  %s11 = scalar_select 0, %s10, %s8
  loop: start=0, step=1, limit=4
  $region2: #{unet_conv_block.1} parent=0 // loop_pre_header
    _
  $region3: #{unet_conv_block.1} parent=0 // loop_header
    %s13 = sphi 0, %s17
    %p14 = scmp.ge.s32.totalorder %s13, 4
    %s23 = sphi 0, %s25
    %s26 = sphi 0, %s23
    %s27 = sphi 0, %s26
    %s43 = sphi 0, %s27
    %s47 = sphi 0, %s47
    %s49 = sphi 0, %s47
    %s50 = sphi 0, %s49
    %s64 = sphi 0, %s50
    %s68 = sphi 0, %s68
    %s70 = sphi 0, %s68
    %s71 = sphi 0, %s70
    %s85 = sphi 0, %s71
    %s89 = sphi 0, %s89
    %s91 = sphi 0, %s89
    %s92 = sphi 0, %s91
    %s106 = sphi 0, %s92
    %s110 = sphi 0, %s110
    %s112 = sphi 0, %s110
    %s113 = sphi 0, %s112
    %s127 = sphi 0, %s113
    %s131 = sphi 0, %s131
    %s133 = sphi 0, %s131
    %s134 = sphi 0, %s133
    %s148 = sphi 0, %s134
    %s152 = sphi 0, %s152
    %s154 = sphi 0, %s152
    %s155 = sphi 0, %s154
    %s169 = sphi 0, %s155
    %s175 = sphi 0, %s177
    %s178 = sphi 0, %s175
    %s179 = sphi 0, %s178
    %s195 = sphi 0, %s179
  $region4: #{unet_conv_block.1} parent=0 // loop_header_branch
    %16 = sbr.rel (%p14) target = $region8
  $region5: #{unet_conv_block.1} parent=0 // loop_body
    %s18 = ssub.s32 %s13, 1
    %s19 = ssub.s32 %s13, 2
    %s20 = sadd.s32 %s13, 1
    %s21 = ssub.s32 %s13, %s20
    %p22 = scmp.eq.s32.totalorder %s21, 0
    %s24 = sadd.s32 %s23, 1
    %s25 = scalar_select %p22, %s23, %s24
    %p28 = pneg %p22
    %p29 = scmp.eq.s32.totalorder %s13, 1
    %p30 = por %p28, %p29
    %p31 = scmp.ne.s32.totalorder %s23, %s26
    %p32 = scmp.eq.s32.totalorder %s13, 0
    %p33 = por %p31, %p32
    %p34 = scmp.ne.s32.totalorder %s23, %s26
    %p35 = scmp.eq.s32.totalorder %s18, 1
    %p36 = por %p34, %p35
    %p37 = scmp.ne.s32.totalorder %s26, %s27
    %p38 = scmp.eq.s32.totalorder %s18, 0
    %p39 = por %p37, %p38
    %p40 = scmp.ne.s32.totalorder %s26, %s27
    %p41 = scmp.eq.s32.totalorder %s19, 1
    %p42 = por %p40, %p41
    %p44 = scmp.ne.s32.totalorder %s27, %s43
    %p45 = scmp.eq.s32.totalorder %s19, 0
    %p46 = por %p44, %p45
    %s48 = sadd.s32 %s47, 1
    %p51 = scmp.eq.s32.totalorder %s13, 1
    %p52 = scmp.ne.s32.totalorder %s47, %s49
    %p53 = scmp.eq.s32.totalorder %s13, 0
    %p54 = por %p52, %p53
    %p55 = scmp.ne.s32.totalorder %s47, %s49
    %p56 = scmp.eq.s32.totalorder %s18, 1
    %p57 = por %p55, %p56
    %p58 = scmp.ne.s32.totalorder %s49, %s50
    %p59 = scmp.eq.s32.totalorder %s18, 0
    %p60 = por %p58, %p59
    %p61 = scmp.ne.s32.totalorder %s49, %s50
    %p62 = scmp.eq.s32.totalorder %s19, 1
    %p63 = por %p61, %p62
    %p65 = scmp.ne.s32.totalorder %s50, %s64
    %p66 = scmp.eq.s32.totalorder %s19, 0
    %p67 = por %p65, %p66
    %s69 = sadd.s32 %s68, 1
    %p72 = scmp.eq.s32.totalorder %s13, 1
    %p73 = scmp.ne.s32.totalorder %s68, %s70
    %p74 = scmp.eq.s32.totalorder %s13, 0
    %p75 = por %p73, %p74
    %p76 = scmp.ne.s32.totalorder %s68, %s70
    %p77 = scmp.eq.s32.totalorder %s18, 1
    %p78 = por %p76, %p77
    %p79 = scmp.ne.s32.totalorder %s70, %s71
    %p80 = scmp.eq.s32.totalorder %s18, 0
    %p81 = por %p79, %p80
    %p82 = scmp.ne.s32.totalorder %s70, %s71
    %p83 = scmp.eq.s32.totalorder %s19, 1
    %p84 = por %p82, %p83
    %p86 = scmp.ne.s32.totalorder %s71, %s85
    %p87 = scmp.eq.s32.totalorder %s19, 0
    %p88 = por %p86, %p87
    %s90 = sadd.s32 %s89, 1
    %p93 = scmp.eq.s32.totalorder %s13, 1
    %p94 = scmp.ne.s32.totalorder %s89, %s91
    %p95 = scmp.eq.s32.totalorder %s13, 0
    %p96 = por %p94, %p95
    %p97 = scmp.ne.s32.totalorder %s89, %s91
    %p98 = scmp.eq.s32.totalorder %s18, 1
    %p99 = por %p97, %p98
    %p100 = scmp.ne.s32.totalorder %s91, %s92
    %p101 = scmp.eq.s32.totalorder %s18, 0
    %p102 = por %p100, %p101
    %p103 = scmp.ne.s32.totalorder %s91, %s92
    %p104 = scmp.eq.s32.totalorder %s19, 1
    %p105 = por %p103, %p104
    %p107 = scmp.ne.s32.totalorder %s92, %s106
    %p108 = scmp.eq.s32.totalorder %s19, 0
    %p109 = por %p107, %p108
    %s111 = sadd.s32 %s110, 1
    %p114 = scmp.eq.s32.totalorder %s13, 1
    %p115 = scmp.ne.s32.totalorder %s110, %s112
    %p116 = scmp.eq.s32.totalorder %s13, 0
    %p117 = por %p115, %p116
    %p118 = scmp.ne.s32.totalorder %s110, %s112
    %p119 = scmp.eq.s32.totalorder %s18, 1
    %p120 = por %p118, %p119
    %p121 = scmp.ne.s32.totalorder %s112, %s113
    %p122 = scmp.eq.s32.totalorder %s18, 0
    %p123 = por %p121, %p122
    %p124 = scmp.ne.s32.totalorder %s112, %s113
    %p125 = scmp.eq.s32.totalorder %s19, 1
    %p126 = por %p124, %p125
    %p128 = scmp.ne.s32.totalorder %s113, %s127
    %p129 = scmp.eq.s32.totalorder %s19, 0
    %p130 = por %p128, %p129
    %s132 = sadd.s32 %s131, 1
    %p135 = scmp.eq.s32.totalorder %s13, 1
    %p136 = scmp.ne.s32.totalorder %s131, %s133
    %p137 = scmp.eq.s32.totalorder %s13, 0
    %p138 = por %p136, %p137
    %p139 = scmp.ne.s32.totalorder %s131, %s133
    %p140 = scmp.eq.s32.totalorder %s18, 1
    %p141 = por %p139, %p140
    %p142 = scmp.ne.s32.totalorder %s133, %s134
    %p143 = scmp.eq.s32.totalorder %s18, 0
    %p144 = por %p142, %p143
    %p145 = scmp.ne.s32.totalorder %s133, %s134
    %p146 = scmp.eq.s32.totalorder %s19, 1
    %p147 = por %p145, %p146
    %p149 = scmp.ne.s32.totalorder %s134, %s148
    %p150 = scmp.eq.s32.totalorder %s19, 0
    %p151 = por %p149, %p150
    %s153 = sadd.s32 %s152, 1
    %p156 = scmp.eq.s32.totalorder %s13, 1
    %p157 = scmp.ne.s32.totalorder %s152, %s154
    %p158 = scmp.eq.s32.totalorder %s13, 0
    %p159 = por %p157, %p158
    %p160 = scmp.ne.s32.totalorder %s152, %s154
    %p161 = scmp.eq.s32.totalorder %s18, 1
    %p162 = por %p160, %p161
    %p163 = scmp.ne.s32.totalorder %s154, %s155
    %p164 = scmp.eq.s32.totalorder %s18, 0
    %p165 = por %p163, %p164
    %p166 = scmp.ne.s32.totalorder %s154, %s155
    %p167 = scmp.eq.s32.totalorder %s19, 1
    %p168 = por %p166, %p167
    %p170 = scmp.ne.s32.totalorder %s155, %s169
    %p171 = scmp.eq.s32.totalorder %s19, 0
    %p172 = por %p170, %p171
    %s173 = ssub.s32 %s13, %s20
    %p174 = scmp.eq.s32.totalorder %s173, 0
    %s176 = sadd.s32 %s175, 1
    %s177 = scalar_select %p174, %s175, %s176
    %p180 = pneg %p174
    %p181 = scmp.eq.s32.totalorder %s13, 1
    %p182 = por %p180, %p181
    %p183 = scmp.ne.s32.totalorder %s175, %s178
    %p184 = scmp.eq.s32.totalorder %s13, 0
    %p185 = por %p183, %p184
    %p186 = scmp.ne.s32.totalorder %s175, %s178
    %p187 = scmp.eq.s32.totalorder %s18, 1
    %p188 = por %p186, %p187
    %p189 = scmp.ne.s32.totalorder %s178, %s179
    %p190 = scmp.eq.s32.totalorder %s18, 0
    %p191 = por %p189, %p190
    %p192 = scmp.ne.s32.totalorder %s178, %s179
    %p193 = scmp.eq.s32.totalorder %s19, 1
    %p194 = por %p192, %p193
    %p196 = scmp.ne.s32.totalorder %s179, %s195
    %p197 = scmp.eq.s32.totalorder %s19, 0
    %p198 = por %p196, %p197
    %p199 = scmp.le.s32.totalorder 1, %s13
    %p200 = scmp.lt.s32.totalorder %s13, 3
    %p201 = pnand %p199, %p200
    %p202 = pneg %p201
    // Predicated region
    $region9: #{unet_conv_block.1} parent=5 // pred_check
      _
    $region10: #{unet_conv_block.1} parent=5 // pred_check_branch
      %204 = sbr.rel (%p201) target = $region12
    $region11: #{unet_conv_block.1} parent=5 // pred_region
      %s205 = ssub.s32 %s13, 1
      // Predicated region
      $region13: #{unet_conv_block.1} parent=11 // pred_check
        %p206 = pneg %p60
      $region14: #{unet_conv_block.1} parent=11 // pred_check_branch
        %208 = sbr.rel (%p206) target = $region16
      $region15: #{unet_conv_block.1} parent=11 // pred_region
        _
      $region16: #{unet_conv_block.1} parent=11 // pred_fallthru
        _
      // Predicated region
      $region17: #{unet_conv_block.1} parent=11 // pred_check
        %p209 = pneg %p81
      $region18: #{unet_conv_block.1} parent=11 // pred_check_branch
        %211 = sbr.rel (%p209) target = $region20
      $region19: #{unet_conv_block.1} parent=11 // pred_region
        _
      $region20: #{unet_conv_block.1} parent=11 // pred_fallthru
        _
      // Predicated region
      $region21: #{unet_conv_block.1} parent=11 // pred_check
        %p212 = pneg %p102
      $region22: #{unet_conv_block.1} parent=11 // pred_check_branch
        %214 = sbr.rel (%p212) target = $region24
      $region23: #{unet_conv_block.1} parent=11 // pred_region
        _
      $region24: #{unet_conv_block.1} parent=11 // pred_fallthru
        _
      // Predicated region
      $region25: #{unet_conv_block.1} parent=11 // pred_check
        %p215 = pneg %p123
      $region26: #{unet_conv_block.1} parent=11 // pred_check_branch
        %217 = sbr.rel (%p215) target = $region28
      $region27: #{unet_conv_block.1} parent=11 // pred_region
        _
      $region28: #{unet_conv_block.1} parent=11 // pred_fallthru
        _
      // Predicated region
      $region29: #{unet_conv_block.1} parent=11 // pred_check
        %p218 = pneg %p144
      $region30: #{unet_conv_block.1} parent=11 // pred_check_branch
        %220 = sbr.rel (%p218) target = $region32
      $region31: #{unet_conv_block.1} parent=11 // pred_region
        _
      $region32: #{unet_conv_block.1} parent=11 // pred_fallthru
        _
      // Predicated region
      $region33: #{unet_conv_block.1} parent=11 // pred_check
        %p221 = pneg %p165
      $region34: #{unet_conv_block.1} parent=11 // pred_check_branch
        %223 = sbr.rel (%p221) target = $region36
      $region35: #{unet_conv_block.1} parent=11 // pred_region
        _
      $region36: #{unet_conv_block.1} parent=11 // pred_fallthru
        _
    $region12: #{unet_conv_block.1} parent=5 // pred_fallthru
      _
    %p224 = scmp.lt.s32.totalorder %s13, 2
    // Predicated region
    $region37: #{unet_conv_block.1} parent=5 // pred_check
      %p225 = pneg %p224
    $region38: #{unet_conv_block.1} parent=5 // pred_check_branch
      %227 = sbr.rel (%p225) target = $region40
    $region39: #{unet_conv_block.1} parent=5 // pred_region
      // Predicated region
      $region41: #{unet_conv_block.1} parent=39 // pred_check
        %p228 = pneg %p33
      $region42: #{unet_conv_block.1} parent=39 // pred_check_branch
        %230 = sbr.rel (%p228) target = $region44
      $region43: #{unet_conv_block.1} parent=39 // pred_region
        %p231 = scmp.lt.s32.totalorder %s13, 1
        %s232 = scalar_select %p231, %s13, 1
        %s233 = smul.addr %s232, 54
        %s234 = smul.addr %s233, 4
        %s235 = scalar_lea.vmem %s0, %s234
      $region44: #{unet_conv_block.1} parent=39 // pred_fallthru
        _
    $region40: #{unet_conv_block.1} parent=5 // pred_fallthru
      _
    %p236 = scmp.le.s32.totalorder 1, %s13
    %p237 = scmp.lt.s32.totalorder %s13, 3
    %p238 = pnand %p236, %p237
    %p239 = pneg %p238
    // Predicated region
    $region45: #{unet_conv_block.1} parent=5 // pred_check
      _
    $region46: #{unet_conv_block.1} parent=5 // pred_check_branch
      %241 = sbr.rel (%p238) target = $region48
    $region47: #{unet_conv_block.1} parent=5 // pred_region
      %s242 = ssub.s32 %s13, 1
      %p243 = scmp.lt.s32.totalorder %s18, 1
      %s244 = scalar_select %p243, %s18, 1
      %s245 = smul.addr %s244, 54
      %s246 = smul.addr %s245, 4
      %s247 = scalar_lea.vmem %s0, %s246
      %p248 = pneg %p39
      %p249 = pneg %p36
      %p250 = pneg %p60
      %p251 = pneg %p57
      %p252 = pneg %p81
      %p253 = pneg %p78
      %p254 = pneg %p102
      %p255 = pneg %p99
      %p256 = pneg %p123
      %p257 = pneg %p120
      %p258 = pneg %p144
      %p259 = pneg %p141
      %p260 = pneg %p165
      %p261 = pneg %p162
      %p262 = pneg %p191
      %p263 = pneg %p188
      %p264 = scmp.lt.s32.totalorder %s18, 1
      %s265 = scalar_select %p264, %s18, 1
      %s266 = smul.addr %s265, 32
      %s267 = smul.addr %s266, 8
      %s268 = scalar_lea.vmem %s7, %s267
      %p269 = scmp.lt.s32.totalorder %s18, 1
      %s270 = scalar_select %p269, %s18, 1
      %s271 = smul.addr %s270, 54
      %s272 = smul.addr %s271, 4
      %s273 = scalar_lea.vmem %s0, %s272
      %p274 = scmp.lt.s32.totalorder %s18, 1
      %s275 = scalar_select %p274, %s18, 1
      %s276 = smul.addr %s275, 32
      %s277 = smul.addr %s276, 8
      %s278 = scalar_lea.vmem %s7, %s277
      %v280 = vld [vmem:[%s4] sm:$0xff]
      %v281 = vld [vmem:[%s5] sm:$0xf]
      %v282 = vld [vmem:[%s6] sm:$0x1]
      %v283 = vld [vmem:[%s6 + $0x1] sm:$0x1]
      %v284 = vld [vmem:[%s6 + $0x2] sm:$0x1]
      %v285 = vld [vmem:[%s6 + $0x3] sm:$0x1]
      %v286 = vld [vmem:[%s6 + $0x4] sm:$0x1]
      %v287 = vld [vmem:[%s6 + $0x5] sm:$0x1]
      %v288 = vld [vmem:[%s273] sm:$0xf]
      %v289 = vld [vmem:[%s273 + $0x4] sm:$0xf]
      %v290 = vld [vmem:[%s273 + $0x8] sm:$0x1]
      %v291 = vld [vmem:[%s273 + $0xc] sm:$0xf]
      %v292 = vld [vmem:[%s273 + $0x10] sm:$0xf]
      %v293 = vld [vmem:[%s273 + $0x14] sm:$0x1]
      %v294 = vld [vmem:[%s273 + $0x18] sm:$0xf]
      %v295 = vld [vmem:[%s273 + $0x1c] sm:$0xf]
      %v296 = vld [vmem:[%s273 + $0x20] sm:$0x1]
      %v297 = vld [vmem:[%s273 + $0x24] sm:$0xf]
      %v298 = vld [vmem:[%s273 + $0x28] sm:$0xf]
      %v299 = vld [vmem:[%s273 + $0x2c] sm:$0x1]
      %v300 = vld [vmem:[%s273 + $0x30] sm:$0xf]
      %v301 = vld [vmem:[%s273 + $0x34] sm:$0xf]
      %v302 = vld [vmem:[%s273 + $0x38] sm:$0x1]
      %v303 = vld [vmem:[%s273 + $0x3c] sm:$0xf]
      %v304 = vld [vmem:[%s273 + $0x40] sm:$0xf]
      %v305 = vld [vmem:[%s273 + $0x44] sm:$0x1]
      %v306 = vld [vmem:[%s273 + $0x48] sm:$0xf]
      %v307 = vld [vmem:[%s273 + $0x4c] sm:$0xf]
      %v308 = vld [vmem:[%s273 + $0x50] sm:$0x1]
      %v309 = vld [vmem:[%s273 + $0x54] sm:$0xf]
      %v310 = vld [vmem:[%s273 + $0x58] sm:$0xf]
      %v311 = vld [vmem:[%s273 + $0x5c] sm:$0x1]
      %v312 = vld [vmem:[%s273 + $0x60] sm:$0xf]
      %v313 = vld [vmem:[%s273 + $0x64] sm:$0xf]
      %v314 = vld [vmem:[%s273 + $0x68] sm:$0x1]
      %v315 = vld [vmem:[%s273 + $0x6c] sm:$0xf]
      %v316 = vld [vmem:[%s273 + $0x70] sm:$0xf]
      %v317 = vld [vmem:[%s273 + $0x74] sm:$0x1]
      %v318 = vld [vmem:[%s273 + $0x78] sm:$0xf]
      %v319 = vld [vmem:[%s273 + $0x7c] sm:$0xf]
      %v320 = vld [vmem:[%s273 + $0x80] sm:$0x1]
      %v321 = vld [vmem:[%s273 + $0x84] sm:$0xf]
      %v322 = vld [vmem:[%s273 + $0x88] sm:$0xf]
      %v323 = vld [vmem:[%s273 + $0x8c] sm:$0x1]
      %v324 = vld [vmem:[%s273 + $0x90] sm:$0xf]
      %v325 = vld [vmem:[%s273 + $0x94] sm:$0xf]
      %v326 = vld [vmem:[%s273 + $0x98] sm:$0x1]
      %v327 = vld [vmem:[%s273 + $0x9c] sm:$0xf]
      %v328 = vld [vmem:[%s273 + $0xa0] sm:$0xf]
      %v329 = vld [vmem:[%s273 + $0xa4] sm:$0x1]
      %v330 = vld [vmem:[%s273 + $0xa8] sm:$0xf]
      %v331 = vld [vmem:[%s273 + $0xac] sm:$0xf]
      %v332 = vld [vmem:[%s273 + $0xb0] sm:$0x1]
      %v333 = vld [vmem:[%s273 + $0xb4] sm:$0xf]
      %v334 = vld [vmem:[%s273 + $0xb8] sm:$0xf]
      %v335 = vld [vmem:[%s273 + $0xbc] sm:$0x1]
      %v336 = vld [vmem:[%s273 + $0xc0] sm:$0xf]
      %v337 = vld [vmem:[%s273 + $0xc4] sm:$0xf]
      %v338 = vld [vmem:[%s273 + $0xc8] sm:$0x1]
      %v339 = vld [vmem:[%s273 + $0xcc] sm:$0xf]
      %v340 = vld [vmem:[%s273 + $0xd0] sm:$0xf]
      %v341 = vld [vmem:[%s273 + $0xd4] sm:$0x1]
      %vm342 = vsmask.f32 3328
      %vm343 = vsmask.f32 7440
      %vm344 = vmor %vm342, %vm343
      %v346 = vshrl.u32 %v288, 16
      %v348 = vrot.slane %v346, 4
      %v349 = vshll.u32 %v288, 16
      %v351 = vrot.slane %v349, 5
      %v352 = vor.u32 %v348, %v351
      %v353 = vrot.slane %v352, 4
      %v355 = vshll.u32 %v289, 16
      %v357 = vrot.slane %v355, 5
      %v358 = vsel %vm344, %v353, %v357
      %v359 = vshrl.u32 %v289, 16
      %v361 = vrot.slane %v359, 4
      %v362 = vor.u32 %v361, %v357
      %v363 = vrot.slane %v362, 4
      %v365 = vshll.u32 %v290, 16
      %v367 = vrot.slane %v365, 5
      %v368 = vsel %vm344, %v363, %v367
      %v370 = vshrl.u32 %v291, 16
      %v372 = vrot.slane %v370, 4
      %v373 = vshll.u32 %v291, 16
      %v375 = vrot.slane %v373, 5
      %v376 = vor.u32 %v372, %v375
      %v377 = vrot.slane %v376, 4
      %v379 = vshll.u32 %v292, 16
      %v381 = vrot.slane %v379, 5
      %v382 = vsel %vm344, %v377, %v381
      %v383 = vshrl.u32 %v292, 16
      %v385 = vrot.slane %v383, 4
      %v386 = vor.u32 %v385, %v381
      %v387 = vrot.slane %v386, 4
      %v389 = vshll.u32 %v293, 16
      %v391 = vrot.slane %v389, 5
      %v392 = vsel %vm344, %v387, %v391
      %v394 = vshrl.u32 %v294, 16
      %v396 = vrot.slane %v394, 4
      %v397 = vshll.u32 %v294, 16
      %v399 = vrot.slane %v397, 5
      %v400 = vor.u32 %v396, %v399
      %v401 = vrot.slane %v400, 4
      %v403 = vshll.u32 %v295, 16
      %v405 = vrot.slane %v403, 5
      %v406 = vsel %vm344, %v401, %v405
      %v407 = vshrl.u32 %v295, 16
      %v409 = vrot.slane %v407, 4
      %v410 = vor.u32 %v409, %v405
      %v411 = vrot.slane %v410, 4
      %v413 = vshll.u32 %v296, 16
      %v415 = vrot.slane %v413, 5
      %v416 = vsel %vm344, %v411, %v415
      %v418 = vshrl.u32 %v297, 16
      %v420 = vrot.slane %v418, 4
      %v421 = vshll.u32 %v297, 16
      %v423 = vrot.slane %v421, 5
      %v424 = vor.u32 %v420, %v423
      %v425 = vrot.slane %v424, 4
      %v427 = vshll.u32 %v298, 16
      %v429 = vrot.slane %v427, 5
      %v430 = vsel %vm344, %v425, %v429
      %v431 = vshrl.u32 %v298, 16
      %v433 = vrot.slane %v431, 4
      %v434 = vor.u32 %v433, %v429
      %v435 = vrot.slane %v434, 4
      %v437 = vshll.u32 %v299, 16
      %v439 = vrot.slane %v437, 5
      %v440 = vsel %vm344, %v435, %v439
      %v442 = vshrl.u32 %v300, 16
      %v444 = vrot.slane %v442, 4
      %v445 = vshll.u32 %v300, 16
      %v447 = vrot.slane %v445, 5
      %v448 = vor.u32 %v444, %v447
      %v449 = vrot.slane %v448, 4
      %v451 = vshll.u32 %v301, 16
      %v453 = vrot.slane %v451, 5
      %v454 = vsel %vm344, %v449, %v453
      %v455 = vshrl.u32 %v301, 16
      %v457 = vrot.slane %v455, 4
      %v458 = vor.u32 %v457, %v453
      %v459 = vrot.slane %v458, 4
      %v461 = vshll.u32 %v302, 16
      %v463 = vrot.slane %v461, 5
      %v464 = vsel %vm344, %v459, %v463
      %v466 = vshrl.u32 %v303, 16
      %v468 = vrot.slane %v466, 4
      %v469 = vshll.u32 %v303, 16
      %v471 = vrot.slane %v469, 5
      %v472 = vor.u32 %v468, %v471
      %v473 = vrot.slane %v472, 4
      %v475 = vshll.u32 %v304, 16
      %v477 = vrot.slane %v475, 5
      %v478 = vsel %vm344, %v473, %v477
      %v479 = vshrl.u32 %v304, 16
      %v481 = vrot.slane %v479, 4
      %v482 = vor.u32 %v481, %v477
      %v483 = vrot.slane %v482, 4
      %v485 = vshll.u32 %v305, 16
      %v487 = vrot.slane %v485, 5
      %v488 = vsel %vm344, %v483, %v487
      %v490 = vshrl.u32 %v306, 16
      %v492 = vrot.slane %v490, 4
      %v493 = vshll.u32 %v306, 16
      %v495 = vrot.slane %v493, 5
      %v496 = vor.u32 %v492, %v495
      %v497 = vrot.slane %v496, 4
      %v499 = vshll.u32 %v307, 16
      %v501 = vrot.slane %v499, 5
      %v502 = vsel %vm344, %v497, %v501
      %v503 = vshrl.u32 %v307, 16
      %v505 = vrot.slane %v503, 4
      %v506 = vor.u32 %v505, %v501
      %v507 = vrot.slane %v506, 4
      %v509 = vshll.u32 %v308, 16
      %v511 = vrot.slane %v509, 5
      %v512 = vsel %vm344, %v507, %v511
      %v514 = vshrl.u32 %v309, 16
      %v516 = vrot.slane %v514, 4
      %v517 = vshll.u32 %v309, 16
      %v519 = vrot.slane %v517, 5
      %v520 = vor.u32 %v516, %v519
      %v521 = vrot.slane %v520, 4
      %v523 = vshll.u32 %v310, 16
      %v525 = vrot.slane %v523, 5
      %v526 = vsel %vm344, %v521, %v525
      %v527 = vshrl.u32 %v310, 16
      %v529 = vrot.slane %v527, 4
      %v530 = vor.u32 %v529, %v525
      %v531 = vrot.slane %v530, 4
      %v533 = vshll.u32 %v311, 16
      %v535 = vrot.slane %v533, 5
      %v536 = vsel %vm344, %v531, %v535
      %v538 = vshrl.u32 %v312, 16
      %v540 = vrot.slane %v538, 4
      %v541 = vshll.u32 %v312, 16
      %v543 = vrot.slane %v541, 5
      %v544 = vor.u32 %v540, %v543
      %v545 = vrot.slane %v544, 4
      %v547 = vshll.u32 %v313, 16
      %v549 = vrot.slane %v547, 5
      %v550 = vsel %vm344, %v545, %v549
      %v551 = vshrl.u32 %v313, 16
      %v553 = vrot.slane %v551, 4
      %v554 = vor.u32 %v553, %v549
      %v555 = vrot.slane %v554, 4
      %v557 = vshll.u32 %v314, 16
      %v559 = vrot.slane %v557, 5
      %v560 = vsel %vm344, %v555, %v559
      %v562 = vshrl.u32 %v315, 16
      %v564 = vrot.slane %v562, 4
      %v565 = vshll.u32 %v315, 16
      %v567 = vrot.slane %v565, 5
      %v568 = vor.u32 %v564, %v567
      %v569 = vrot.slane %v568, 4
      %v571 = vshll.u32 %v316, 16
      %v573 = vrot.slane %v571, 5
      %v574 = vsel %vm344, %v569, %v573
      %v575 = vshrl.u32 %v316, 16
      %v577 = vrot.slane %v575, 4
      %v578 = vor.u32 %v577, %v573
      %v579 = vrot.slane %v578, 4
      %v581 = vshll.u32 %v317, 16
      %v583 = vrot.slane %v581, 5
      %v584 = vsel %vm344, %v579, %v583
      %v586 = vshrl.u32 %v318, 16
      %v588 = vrot.slane %v586, 4
      %v589 = vshll.u32 %v318, 16
      %v591 = vrot.slane %v589, 5
      %v592 = vor.u32 %v588, %v591
      %v593 = vrot.slane %v592, 4
      %v595 = vshll.u32 %v319, 16
      %v597 = vrot.slane %v595, 5
      %v598 = vsel %vm344, %v593, %v597
      %v599 = vshrl.u32 %v319, 16
      %v601 = vrot.slane %v599, 4
      %v602 = vor.u32 %v601, %v597
      %v603 = vrot.slane %v602, 4
      %v605 = vshll.u32 %v320, 16
      %v607 = vrot.slane %v605, 5
      %v608 = vsel %vm344, %v603, %v607
      %v610 = vshrl.u32 %v321, 16
      %v612 = vrot.slane %v610, 4
      %v613 = vshll.u32 %v321, 16
      %v615 = vrot.slane %v613, 5
      %v616 = vor.u32 %v612, %v615
      %v617 = vrot.slane %v616, 4
      %v619 = vshll.u32 %v322, 16
      %v621 = vrot.slane %v619, 5
      %v622 = vsel %vm344, %v617, %v621
      %v623 = vshrl.u32 %v322, 16
      %v625 = vrot.slane %v623, 4
      %v626 = vor.u32 %v625, %v621
      %v627 = vrot.slane %v626, 4
      %v629 = vshll.u32 %v323, 16
      %v631 = vrot.slane %v629, 5
      %v632 = vsel %vm344, %v627, %v631
      %v634 = vshrl.u32 %v324, 16
      %v636 = vrot.slane %v634, 4
      %v637 = vshll.u32 %v324, 16
      %v639 = vrot.slane %v637, 5
      %v640 = vor.u32 %v636, %v639
      %v641 = vrot.slane %v640, 4
      %v643 = vshll.u32 %v325, 16
      %v645 = vrot.slane %v643, 5
      %v646 = vsel %vm344, %v641, %v645
      %v647 = vshrl.u32 %v325, 16
      %v649 = vrot.slane %v647, 4
      %v650 = vor.u32 %v649, %v645
      %v651 = vrot.slane %v650, 4
      %v653 = vshll.u32 %v326, 16
      %v655 = vrot.slane %v653, 5
      %v656 = vsel %vm344, %v651, %v655
      %v658 = vshrl.u32 %v327, 16
      %v660 = vrot.slane %v658, 4
      %v661 = vshll.u32 %v327, 16
      %v663 = vrot.slane %v661, 5
      %v664 = vor.u32 %v660, %v663
      %v665 = vrot.slane %v664, 4
      %v667 = vshll.u32 %v328, 16
      %v669 = vrot.slane %v667, 5
      %v670 = vsel %vm344, %v665, %v669
      %v671 = vshrl.u32 %v328, 16
      %v673 = vrot.slane %v671, 4
      %v674 = vor.u32 %v673, %v669
      %v675 = vrot.slane %v674, 4
      %v677 = vshll.u32 %v329, 16
      %v679 = vrot.slane %v677, 5
      %v680 = vsel %vm344, %v675, %v679
      %v682 = vshrl.u32 %v330, 16
      %v684 = vrot.slane %v682, 4
      %v685 = vshll.u32 %v330, 16
      %v687 = vrot.slane %v685, 5
      %v688 = vor.u32 %v684, %v687
      %v689 = vrot.slane %v688, 4
      %v691 = vshll.u32 %v331, 16
      %v693 = vrot.slane %v691, 5
      %v694 = vsel %vm344, %v689, %v693
      %v695 = vshrl.u32 %v331, 16
      %v697 = vrot.slane %v695, 4
      %v698 = vor.u32 %v697, %v693
      %v699 = vrot.slane %v698, 4
      %v701 = vshll.u32 %v332, 16
      %v703 = vrot.slane %v701, 5
      %v704 = vsel %vm344, %v699, %v703
      %v706 = vshrl.u32 %v333, 16
      %v708 = vrot.slane %v706, 4
      %v709 = vshll.u32 %v333, 16
      %v711 = vrot.slane %v709, 5
      %v712 = vor.u32 %v708, %v711
      %v713 = vrot.slane %v712, 4
      %v715 = vshll.u32 %v334, 16
      %v717 = vrot.slane %v715, 5
      %v718 = vsel %vm344, %v713, %v717
      %v719 = vshrl.u32 %v334, 16
      %v721 = vrot.slane %v719, 4
      %v722 = vor.u32 %v721, %v717
      %v723 = vrot.slane %v722, 4
      %v725 = vshll.u32 %v335, 16
      %v727 = vrot.slane %v725, 5
      %v728 = vsel %vm344, %v723, %v727
      %vm777 = vcmask 1042432
      %vm778 = vcmask 1046532
      %vm779 = vmor %vm777, %vm778
      %v780 = vrot.slane %v288, 5
      %v781 = vrot.slane %v780, 4
      %v782 = vrot.slane %v289, 5
      %v783 = vsel %vm779, %v781, %v782
      %v784 = vrot.slane %v782, 4
      %v785 = vrot.slane %v290, 5
      %v786 = vsel %vm779, %v784, %v785
      %v787 = vrot.slane %v291, 5
      %v788 = vrot.slane %v787, 4
      %v789 = vrot.slane %v292, 5
      %v790 = vsel %vm779, %v788, %v789
      %v791 = vrot.slane %v789, 4
      %v792 = vrot.slane %v293, 5
      %v793 = vsel %vm779, %v791, %v792
      %v794 = vrot.slane %v294, 5
      %v795 = vrot.slane %v794, 4
      %v796 = vrot.slane %v295, 5
      %v797 = vsel %vm779, %v795, %v796
      %v798 = vrot.slane %v796, 4
      %v799 = vrot.slane %v296, 5
      %v800 = vsel %vm779, %v798, %v799
      %v801 = vrot.slane %v297, 5
      %v802 = vrot.slane %v801, 4
      %v803 = vrot.slane %v298, 5
      %v804 = vsel %vm779, %v802, %v803
      %v805 = vrot.slane %v803, 4
      %v806 = vrot.slane %v299, 5
      %v807 = vsel %vm779, %v805, %v806
      %v808 = vrot.slane %v300, 5
      %v809 = vrot.slane %v808, 4
      %v810 = vrot.slane %v301, 5
      %v811 = vsel %vm779, %v809, %v810
      %v812 = vrot.slane %v810, 4
      %v813 = vrot.slane %v302, 5
      %v814 = vsel %vm779, %v812, %v813
      %v815 = vrot.slane %v303, 5
      %v816 = vrot.slane %v815, 4
      %v817 = vrot.slane %v304, 5
      %v818 = vsel %vm779, %v816, %v817
      %v819 = vrot.slane %v817, 4
      %v820 = vrot.slane %v305, 5
      %v821 = vsel %vm779, %v819, %v820
      %v822 = vrot.slane %v306, 5
      %v823 = vrot.slane %v822, 4
      %v824 = vrot.slane %v307, 5
      %v825 = vsel %vm779, %v823, %v824
      %v826 = vrot.slane %v824, 4
      %v827 = vrot.slane %v308, 5
      %v828 = vsel %vm779, %v826, %v827
      %v829 = vrot.slane %v309, 5
      %v830 = vrot.slane %v829, 4
      %v831 = vrot.slane %v310, 5
      %v832 = vsel %vm779, %v830, %v831
      %v833 = vrot.slane %v831, 4
      %v834 = vrot.slane %v311, 5
      %v835 = vsel %vm779, %v833, %v834
      %v836 = vrot.slane %v312, 5
      %v837 = vrot.slane %v836, 4
      %v838 = vrot.slane %v313, 5
      %v839 = vsel %vm779, %v837, %v838
      %v840 = vrot.slane %v838, 4
      %v841 = vrot.slane %v314, 5
      %v842 = vsel %vm779, %v840, %v841
      %v843 = vrot.slane %v315, 5
      %v844 = vrot.slane %v843, 4
      %v845 = vrot.slane %v316, 5
      %v846 = vsel %vm779, %v844, %v845
      %v847 = vrot.slane %v845, 4
      %v848 = vrot.slane %v317, 5
      %v849 = vsel %vm779, %v847, %v848
      %v850 = vrot.slane %v318, 5
      %v851 = vrot.slane %v850, 4
      %v852 = vrot.slane %v319, 5
      %v853 = vsel %vm779, %v851, %v852
      %v854 = vrot.slane %v852, 4
      %v855 = vrot.slane %v320, 5
      %v856 = vsel %vm779, %v854, %v855
      %v857 = vrot.slane %v321, 5
      %v858 = vrot.slane %v857, 4
      %v859 = vrot.slane %v322, 5
      %v860 = vsel %vm779, %v858, %v859
      %v861 = vrot.slane %v859, 4
      %v862 = vrot.slane %v323, 5
      %v863 = vsel %vm779, %v861, %v862
      %v864 = vrot.slane %v324, 5
      %v865 = vrot.slane %v864, 4
      %v866 = vrot.slane %v325, 5
      %v867 = vsel %vm779, %v865, %v866
      %v868 = vrot.slane %v866, 4
      %v869 = vrot.slane %v326, 5
      %v870 = vsel %vm779, %v868, %v869
      %v871 = vrot.slane %v327, 5
      %v872 = vrot.slane %v871, 4
      %v873 = vrot.slane %v328, 5
      %v874 = vsel %vm779, %v872, %v873
      %v875 = vrot.slane %v873, 4
      %v876 = vrot.slane %v329, 5
      %v877 = vsel %vm779, %v875, %v876
      %v878 = vrot.slane %v330, 5
      %v879 = vrot.slane %v878, 4
      %v880 = vrot.slane %v331, 5
      %v881 = vsel %vm779, %v879, %v880
      %v882 = vrot.slane %v880, 4
      %v883 = vrot.slane %v332, 5
      %v884 = vsel %vm779, %v882, %v883
      %v885 = vrot.slane %v333, 5
      %v886 = vrot.slane %v885, 4
      %v887 = vrot.slane %v334, 5
      %v888 = vsel %vm779, %v886, %v887
      %v889 = vrot.slane %v887, 4
      %v890 = vrot.slane %v335, 5
      %v891 = vsel %vm779, %v889, %v890
      %v893 = vshrl.u32 %v336, 16
      %v895 = vrot.slane %v893, 4
      %v896 = vshll.u32 %v336, 16
      %v898 = vrot.slane %v896, 5
      %v899 = vor.u32 %v895, %v898
      %v900 = vrot.slane %v899, 4
      %v902 = vshll.u32 %v337, 16
      %v904 = vrot.slane %v902, 5
      %v905 = vsel %vm344, %v900, %v904
      %v906 = vshrl.u32 %v337, 16
      %v908 = vrot.slane %v906, 4
      %v909 = vor.u32 %v908, %v904
      %v910 = vrot.slane %v909, 4
      %v912 = vshll.u32 %v338, 16
      %v914 = vrot.slane %v912, 5
      %v915 = vsel %vm344, %v910, %v914
      %v919 = vrot.slane %v336, 5
      %v920 = vrot.slane %v919, 4
      %v921 = vrot.slane %v337, 5
      %v922 = vsel %vm779, %v920, %v921
      %v923 = vrot.slane %v921, 4
      %v924 = vrot.slane %v338, 5
      %v925 = vsel %vm779, %v923, %v924
      %v927 = vshrl.u32 %v339, 16
      %v929 = vrot.slane %v927, 4
      %v930 = vshll.u32 %v339, 16
      %v932 = vrot.slane %v930, 5
      %v933 = vor.u32 %v929, %v932
      %v934 = vrot.slane %v933, 4
      %v936 = vshll.u32 %v340, 16
      %v938 = vrot.slane %v936, 5
      %v939 = vsel %vm344, %v934, %v938
      %v940 = vshrl.u32 %v340, 16
      %v942 = vrot.slane %v940, 4
      %v943 = vor.u32 %v942, %v938
      %v944 = vrot.slane %v943, 4
      %v946 = vshll.u32 %v341, 16
      %v948 = vrot.slane %v946, 5
      %v949 = vsel %vm344, %v944, %v948
      %v953 = vrot.slane %v339, 5
      %v954 = vrot.slane %v953, 4
      %v955 = vrot.slane %v340, 5
      %v956 = vsel %vm779, %v954, %v955
      %v957 = vrot.slane %v955, 4
      %v958 = vrot.slane %v341, 5
      %v959 = vsel %vm779, %v957, %v958
      %v960 = vunpack.c.l.b16 %v288
      %v961 = vunpack.c.l.b16 %v289
      %v962 = vunpack.c.l.b16 %v291
      %v963 = vunpack.c.l.b16 %v292
      %v964 = vunpack.c.l.b16 %v294
      %v965 = vunpack.c.l.b16 %v295
      %v966 = vunpack.c.l.b16 %v297
      %v967 = vunpack.c.l.b16 %v298
      %v968 = vunpack.c.l.b16 %v300
      %v969 = vunpack.c.l.b16 %v301
      %v970 = vunpack.c.l.b16 %v303
      %v971 = vunpack.c.l.b16 %v304
      %v972 = vunpack.c.l.b16 %v306
      %v973 = vunpack.c.l.b16 %v307
      %v974 = vunpack.c.l.b16 %v309
      %v975 = vunpack.c.l.b16 %v310
      %v976 = vunpack.c.l.b16 %v312
      %v977 = vunpack.c.l.b16 %v313
      %v978 = vunpack.c.l.b16 %v315
      %v979 = vunpack.c.l.b16 %v316
      %v980 = vunpack.c.l.b16 %v318
      %v981 = vunpack.c.l.b16 %v319
      %v982 = vunpack.c.l.b16 %v321
      %v983 = vunpack.c.l.b16 %v322
      %v984 = vunpack.c.l.b16 %v324
      %v985 = vunpack.c.l.b16 %v325
      %v986 = vunpack.c.l.b16 %v327
      %v987 = vunpack.c.l.b16 %v328
      %v988 = vunpack.c.l.b16 %v330
      %v989 = vunpack.c.l.b16 %v331
      %v990 = vunpack.c.l.b16 %v333
      %v991 = vunpack.c.l.b16 %v334
      %v992 = vpack.c.b16 %v961, %v960
      %v993 = vpack.c.b16 %v963, %v962
      %v994 = vpack.c.b16 %v965, %v964
      %v995 = vpack.c.b16 %v967, %v966
      %v996 = vpack.c.b16 %v969, %v968
      %v997 = vpack.c.b16 %v971, %v970
      %v998 = vpack.c.b16 %v973, %v972
      %v999 = vpack.c.b16 %v975, %v974
      %v1000 = vpack.c.b16 %v977, %v976
      %v1001 = vpack.c.b16 %v979, %v978
      %v1002 = vpack.c.b16 %v981, %v980
      %v1003 = vpack.c.b16 %v983, %v982
      %v1004 = vpack.c.b16 %v985, %v984
      %v1005 = vpack.c.b16 %v987, %v986
      %v1006 = vpack.c.b16 %v989, %v988
      %v1007 = vpack.c.b16 %v991, %v990
      %v1008 = vunpack.c.l.b16 %v358
      %v1009 = vunpack.c.l.b16 %v368
      %v1010 = vunpack.c.l.b16 %v382
      %v1011 = vunpack.c.l.b16 %v392
      %v1012 = vunpack.c.l.b16 %v406
      %v1013 = vunpack.c.l.b16 %v416
      %v1014 = vunpack.c.l.b16 %v430
      %v1015 = vunpack.c.l.b16 %v440
      %v1016 = vunpack.c.l.b16 %v454
      %v1017 = vunpack.c.l.b16 %v464
      %v1018 = vunpack.c.l.b16 %v478
      %v1019 = vunpack.c.l.b16 %v488
      %v1020 = vunpack.c.l.b16 %v502
      %v1021 = vunpack.c.l.b16 %v512
      %v1022 = vunpack.c.l.b16 %v526
      %v1023 = vunpack.c.l.b16 %v536
      %v1024 = vunpack.c.l.b16 %v550
      %v1025 = vunpack.c.l.b16 %v560
      %v1026 = vunpack.c.l.b16 %v574
      %v1027 = vunpack.c.l.b16 %v584
      %v1028 = vunpack.c.l.b16 %v598
      %v1029 = vunpack.c.l.b16 %v608
      %v1030 = vunpack.c.l.b16 %v622
      %v1031 = vunpack.c.l.b16 %v632
      %v1032 = vunpack.c.l.b16 %v646
      %v1033 = vunpack.c.l.b16 %v656
      %v1034 = vunpack.c.l.b16 %v670
      %v1035 = vunpack.c.l.b16 %v680
      %v1036 = vunpack.c.l.b16 %v694
      %v1037 = vunpack.c.l.b16 %v704
      %v1038 = vunpack.c.l.b16 %v718
      %v1039 = vunpack.c.l.b16 %v728
      %v1040 = vpack.c.b16 %v1009, %v1008
      %v1041 = vpack.c.b16 %v1011, %v1010
      %v1042 = vpack.c.b16 %v1013, %v1012
      %v1043 = vpack.c.b16 %v1015, %v1014
      %v1044 = vpack.c.b16 %v1017, %v1016
      %v1045 = vpack.c.b16 %v1019, %v1018
      %v1046 = vpack.c.b16 %v1021, %v1020
      %v1047 = vpack.c.b16 %v1023, %v1022
      %v1048 = vpack.c.b16 %v1025, %v1024
      %v1049 = vpack.c.b16 %v1027, %v1026
      %v1050 = vpack.c.b16 %v1029, %v1028
      %v1051 = vpack.c.b16 %v1031, %v1030
      %v1052 = vpack.c.b16 %v1033, %v1032
      %v1053 = vpack.c.b16 %v1035, %v1034
      %v1054 = vpack.c.b16 %v1037, %v1036
      %v1055 = vpack.c.b16 %v1039, %v1038
      %1056 = vrot.lane.b32.xlu0 %v1040, 4
      %v1057 = vpop.permute.xlu0 %1056
      %1058 = vrot.lane.b32.xlu0 %v1041, 4
      %v1059 = vpop.permute.xlu0 %1058
      %1060 = vrot.lane.b32.xlu0 %v1042, 4
      %v1061 = vpop.permute.xlu0 %1060
      %1062 = vrot.lane.b32.xlu0 %v1043, 4
      %v1063 = vpop.permute.xlu0 %1062
      %1064 = vrot.lane.b32.xlu0 %v1044, 4
      %v1065 = vpop.permute.xlu0 %1064
      %1066 = vrot.lane.b32.xlu0 %v1045, 4
      %v1067 = vpop.permute.xlu0 %1066
      %1068 = vrot.lane.b32.xlu0 %v1046, 4
      %v1069 = vpop.permute.xlu0 %1068
      %1070 = vrot.lane.b32.xlu0 %v1047, 4
      %v1071 = vpop.permute.xlu0 %1070
      %1072 = vrot.lane.b32.xlu0 %v1048, 4
      %v1073 = vpop.permute.xlu0 %1072
      %1074 = vrot.lane.b32.xlu0 %v1049, 4
      %v1075 = vpop.permute.xlu0 %1074
      %1076 = vrot.lane.b32.xlu0 %v1050, 4
      %v1077 = vpop.permute.xlu0 %1076
      %1078 = vrot.lane.b32.xlu0 %v1051, 4
      %v1079 = vpop.permute.xlu0 %1078
      %1080 = vrot.lane.b32.xlu0 %v1052, 4
      %v1081 = vpop.permute.xlu0 %1080
      %1082 = vrot.lane.b32.xlu0 %v1053, 4
      %v1083 = vpop.permute.xlu0 %1082
      %1084 = vrot.lane.b32.xlu0 %v1054, 4
      %v1085 = vpop.permute.xlu0 %1084
      %1086 = vrot.lane.b32.xlu0 %v1055, 4
      %v1087 = vpop.permute.xlu0 %1086
      %v1088 = vunpack.c.l.b16 %v783
      %v1089 = vunpack.c.l.b16 %v786
      %v1090 = vunpack.c.l.b16 %v790
      %v1091 = vunpack.c.l.b16 %v793
      %v1092 = vunpack.c.l.b16 %v797
      %v1093 = vunpack.c.l.b16 %v800
      %v1094 = vunpack.c.l.b16 %v804
      %v1095 = vunpack.c.l.b16 %v807
      %v1096 = vunpack.c.l.b16 %v811
      %v1097 = vunpack.c.l.b16 %v814
      %v1098 = vunpack.c.l.b16 %v818
      %v1099 = vunpack.c.l.b16 %v821
      %v1100 = vunpack.c.l.b16 %v825
      %v1101 = vunpack.c.l.b16 %v828
      %v1102 = vunpack.c.l.b16 %v832
      %v1103 = vunpack.c.l.b16 %v835
      %v1104 = vunpack.c.l.b16 %v839
      %v1105 = vunpack.c.l.b16 %v842
      %v1106 = vunpack.c.l.b16 %v846
      %v1107 = vunpack.c.l.b16 %v849
      %v1108 = vunpack.c.l.b16 %v853
      %v1109 = vunpack.c.l.b16 %v856
      %v1110 = vunpack.c.l.b16 %v860
      %v1111 = vunpack.c.l.b16 %v863
      %v1112 = vunpack.c.l.b16 %v867
      %v1113 = vunpack.c.l.b16 %v870
      %v1114 = vunpack.c.l.b16 %v874
      %v1115 = vunpack.c.l.b16 %v877
      %v1116 = vunpack.c.l.b16 %v881
      %v1117 = vunpack.c.l.b16 %v884
      %v1118 = vunpack.c.l.b16 %v888
      %v1119 = vunpack.c.l.b16 %v891
      %v1120 = vpack.c.b16 %v1089, %v1088
      %v1121 = vpack.c.b16 %v1091, %v1090
      %v1122 = vpack.c.b16 %v1093, %v1092
      %v1123 = vpack.c.b16 %v1095, %v1094
      %v1124 = vpack.c.b16 %v1097, %v1096
      %v1125 = vpack.c.b16 %v1099, %v1098
      %v1126 = vpack.c.b16 %v1101, %v1100
      %v1127 = vpack.c.b16 %v1103, %v1102
      %v1128 = vpack.c.b16 %v1105, %v1104
      %v1129 = vpack.c.b16 %v1107, %v1106
      %v1130 = vpack.c.b16 %v1109, %v1108
      %v1131 = vpack.c.b16 %v1111, %v1110
      %v1132 = vpack.c.b16 %v1113, %v1112
      %v1133 = vpack.c.b16 %v1115, %v1114
      %v1134 = vpack.c.b16 %v1117, %v1116
      %v1135 = vpack.c.b16 %v1119, %v1118
      %1136 = vrot.lane.b32.xlu0 %v1120, 8
      %v1137 = vpop.permute.xlu0 %1136
      %1138 = vrot.lane.b32.xlu0 %v1121, 8
      %v1139 = vpop.permute.xlu0 %1138
      %1140 = vrot.lane.b32.xlu0 %v1122, 8
      %v1141 = vpop.permute.xlu0 %1140
      %1142 = vrot.lane.b32.xlu0 %v1123, 8
      %v1143 = vpop.permute.xlu0 %1142
      %1144 = vrot.lane.b32.xlu0 %v1124, 8
      %v1145 = vpop.permute.xlu0 %1144
      %1146 = vrot.lane.b32.xlu0 %v1125, 8
      %v1147 = vpop.permute.xlu0 %1146
      %1148 = vrot.lane.b32.xlu0 %v1126, 8
      %v1149 = vpop.permute.xlu0 %1148
      %1150 = vrot.lane.b32.xlu0 %v1127, 8
      %v1151 = vpop.permute.xlu0 %1150
      %1152 = vrot.lane.b32.xlu0 %v1128, 8
      %v1153 = vpop.permute.xlu0 %1152
      %1154 = vrot.lane.b32.xlu0 %v1129, 8
      %v1155 = vpop.permute.xlu0 %1154
      %1156 = vrot.lane.b32.xlu0 %v1130, 8
      %v1157 = vpop.permute.xlu0 %1156
      %1158 = vrot.lane.b32.xlu0 %v1131, 8
      %v1159 = vpop.permute.xlu0 %1158
      %1160 = vrot.lane.b32.xlu0 %v1132, 8
      %v1161 = vpop.permute.xlu0 %1160
      %1162 = vrot.lane.b32.xlu0 %v1133, 8
      %v1163 = vpop.permute.xlu0 %1162
      %1164 = vrot.lane.b32.xlu0 %v1134, 8
      %v1165 = vpop.permute.xlu0 %1164
      %1166 = vrot.lane.b32.xlu0 %v1135, 8
      %v1167 = vpop.permute.xlu0 %1166
      %v1168 = vunpack.c.l.b16 %v336
      %v1169 = vunpack.c.l.b16 %v337
      %v1170 = vpack.c.b16 %v1169, %v1168
      %1171 = vrot.lane.b32.xlu0 %v993, 12
      %v1172 = vpop.permute.xlu0 %1171
      %1173 = vrot.lane.b32.xlu0 %v994, 12
      %v1174 = vpop.permute.xlu0 %1173
      %1175 = vrot.lane.b32.xlu0 %v995, 12
      %v1176 = vpop.permute.xlu0 %1175
      %1177 = vrot.lane.b32.xlu0 %v996, 12
      %v1178 = vpop.permute.xlu0 %1177
      %1179 = vrot.lane.b32.xlu0 %v997, 12
      %v1180 = vpop.permute.xlu0 %1179
      %1181 = vrot.lane.b32.xlu0 %v998, 12
      %v1182 = vpop.permute.xlu0 %1181
      %1183 = vrot.lane.b32.xlu0 %v999, 12
      %v1184 = vpop.permute.xlu0 %1183
      %1185 = vrot.lane.b32.xlu0 %v1000, 12
      %v1186 = vpop.permute.xlu0 %1185
      %1187 = vrot.lane.b32.xlu0 %v1001, 12
      %v1188 = vpop.permute.xlu0 %1187
      %1189 = vrot.lane.b32.xlu0 %v1002, 12
      %v1190 = vpop.permute.xlu0 %1189
      %1191 = vrot.lane.b32.xlu0 %v1003, 12
      %v1192 = vpop.permute.xlu0 %1191
      %1193 = vrot.lane.b32.xlu0 %v1004, 12
      %v1194 = vpop.permute.xlu0 %1193
      %1195 = vrot.lane.b32.xlu0 %v1005, 12
      %v1196 = vpop.permute.xlu0 %1195
      %1197 = vrot.lane.b32.xlu0 %v1006, 12
      %v1198 = vpop.permute.xlu0 %1197
      %1199 = vrot.lane.b32.xlu0 %v1007, 12
      %v1200 = vpop.permute.xlu0 %1199
      %1201 = vrot.lane.b32.xlu0 %v1170, 12
      %v1202 = vpop.permute.xlu0 %1201
      %v1203 = vunpack.c.l.b16 %v905
      %v1204 = vunpack.c.l.b16 %v915
      %v1205 = vpack.c.b16 %v1204, %v1203
      %1206 = vrot.lane.b32.xlu0 %v1041, 16
      %v1207 = vpop.permute.xlu0 %1206
      %1208 = vrot.lane.b32.xlu0 %v1042, 16
      %v1209 = vpop.permute.xlu0 %1208
      %1210 = vrot.lane.b32.xlu0 %v1043, 16
      %v1211 = vpop.permute.xlu0 %1210
      %1212 = vrot.lane.b32.xlu0 %v1044, 16
      %v1213 = vpop.permute.xlu0 %1212
      %1214 = vrot.lane.b32.xlu0 %v1045, 16
      %v1215 = vpop.permute.xlu0 %1214
      %1216 = vrot.lane.b32.xlu0 %v1046, 16
      %v1217 = vpop.permute.xlu0 %1216
      %1218 = vrot.lane.b32.xlu0 %v1047, 16
      %v1219 = vpop.permute.xlu0 %1218
      %1220 = vrot.lane.b32.xlu0 %v1048, 16
      %v1221 = vpop.permute.xlu0 %1220
      %1222 = vrot.lane.b32.xlu0 %v1049, 16
      %v1223 = vpop.permute.xlu0 %1222
      %1224 = vrot.lane.b32.xlu0 %v1050, 16
      %v1225 = vpop.permute.xlu0 %1224
      %1226 = vrot.lane.b32.xlu0 %v1051, 16
      %v1227 = vpop.permute.xlu0 %1226
      %1228 = vrot.lane.b32.xlu0 %v1052, 16
      %v1229 = vpop.permute.xlu0 %1228
      %1230 = vrot.lane.b32.xlu0 %v1053, 16
      %v1231 = vpop.permute.xlu0 %1230
      %1232 = vrot.lane.b32.xlu0 %v1054, 16
      %v1233 = vpop.permute.xlu0 %1232
      %1234 = vrot.lane.b32.xlu0 %v1055, 16
      %v1235 = vpop.permute.xlu0 %1234
      %1236 = vrot.lane.b32.xlu0 %v1205, 16
      %v1237 = vpop.permute.xlu0 %1236
      %v1238 = vunpack.c.l.b16 %v922
      %v1239 = vunpack.c.l.b16 %v925
      %v1240 = vpack.c.b16 %v1239, %v1238
      %1241 = vrot.lane.b32.xlu0 %v1121, 20
      %v1242 = vpop.permute.xlu0 %1241
      %1243 = vrot.lane.b32.xlu0 %v1122, 20
      %v1244 = vpop.permute.xlu0 %1243
      %1245 = vrot.lane.b32.xlu0 %v1123, 20
      %v1246 = vpop.permute.xlu0 %1245
      %1247 = vrot.lane.b32.xlu0 %v1124, 20
      %v1248 = vpop.permute.xlu0 %1247
      %1249 = vrot.lane.b32.xlu0 %v1125, 20
      %v1250 = vpop.permute.xlu0 %1249
      %1251 = vrot.lane.b32.xlu0 %v1126, 20
      %v1252 = vpop.permute.xlu0 %1251
      %1253 = vrot.lane.b32.xlu0 %v1127, 20
      %v1254 = vpop.permute.xlu0 %1253
      %1255 = vrot.lane.b32.xlu0 %v1128, 20
      %v1256 = vpop.permute.xlu0 %1255
      %1257 = vrot.lane.b32.xlu0 %v1129, 20
      %v1258 = vpop.permute.xlu0 %1257
      %1259 = vrot.lane.b32.xlu0 %v1130, 20
      %v1260 = vpop.permute.xlu0 %1259
      %1261 = vrot.lane.b32.xlu0 %v1131, 20
      %v1262 = vpop.permute.xlu0 %1261
      %1263 = vrot.lane.b32.xlu0 %v1132, 20
      %v1264 = vpop.permute.xlu0 %1263
      %1265 = vrot.lane.b32.xlu0 %v1133, 20
      %v1266 = vpop.permute.xlu0 %1265
      %1267 = vrot.lane.b32.xlu0 %v1134, 20
      %v1268 = vpop.permute.xlu0 %1267
      %1269 = vrot.lane.b32.xlu0 %v1135, 20
      %v1270 = vpop.permute.xlu0 %1269
      %1271 = vrot.lane.b32.xlu0 %v1240, 20
      %v1272 = vpop.permute.xlu0 %1271
      %v1273 = vunpack.c.l.b16 %v339
      %v1274 = vunpack.c.l.b16 %v340
      %v1275 = vpack.c.b16 %v1274, %v1273
      %1276 = vrot.lane.b32.xlu0 %v994, 24
      %v1277 = vpop.permute.xlu0 %1276
      %1278 = vrot.lane.b32.xlu0 %v995, 24
      %v1279 = vpop.permute.xlu0 %1278
      %1280 = vrot.lane.b32.xlu0 %v996, 24
      %v1281 = vpop.permute.xlu0 %1280
      %1282 = vrot.lane.b32.xlu0 %v997, 24
      %v1283 = vpop.permute.xlu0 %1282
      %1284 = vrot.lane.b32.xlu0 %v998, 24
      %v1285 = vpop.permute.xlu0 %1284
      %1286 = vrot.lane.b32.xlu0 %v999, 24
      %v1287 = vpop.permute.xlu0 %1286
      %1288 = vrot.lane.b32.xlu0 %v1000, 24
      %v1289 = vpop.permute.xlu0 %1288
      %1290 = vrot.lane.b32.xlu0 %v1001, 24
      %v1291 = vpop.permute.xlu0 %1290
      %1292 = vrot.lane.b32.xlu0 %v1002, 24
      %v1293 = vpop.permute.xlu0 %1292
      %1294 = vrot.lane.b32.xlu0 %v1003, 24
      %v1295 = vpop.permute.xlu0 %1294
      %1296 = vrot.lane.b32.xlu0 %v1004, 24
      %v1297 = vpop.permute.xlu0 %1296
      %1298 = vrot.lane.b32.xlu0 %v1005, 24
      %v1299 = vpop.permute.xlu0 %1298
      %1300 = vrot.lane.b32.xlu0 %v1006, 24
      %v1301 = vpop.permute.xlu0 %1300
      %1302 = vrot.lane.b32.xlu0 %v1007, 24
      %v1303 = vpop.permute.xlu0 %1302
      %1304 = vrot.lane.b32.xlu0 %v1170, 24
      %v1305 = vpop.permute.xlu0 %1304
      %1306 = vrot.lane.b32.xlu0 %v1275, 24
      %v1307 = vpop.permute.xlu0 %1306
      %v1308 = vunpack.c.l.b16 %v939
      %v1309 = vunpack.c.l.b16 %v949
      %v1310 = vpack.c.b16 %v1309, %v1308
      %1311 = vrot.lane.b32.xlu0 %v1042, 28
      %v1312 = vpop.permute.xlu0 %1311
      %1313 = vrot.lane.b32.xlu0 %v1043, 28
      %v1314 = vpop.permute.xlu0 %1313
      %1315 = vrot.lane.b32.xlu0 %v1044, 28
      %v1316 = vpop.permute.xlu0 %1315
      %1317 = vrot.lane.b32.xlu0 %v1045, 28
      %v1318 = vpop.permute.xlu0 %1317
      %1319 = vrot.lane.b32.xlu0 %v1046, 28
      %v1320 = vpop.permute.xlu0 %1319
      %1321 = vrot.lane.b32.xlu0 %v1047, 28
      %v1322 = vpop.permute.xlu0 %1321
      %1323 = vrot.lane.b32.xlu0 %v1048, 28
      %v1324 = vpop.permute.xlu0 %1323
      %1325 = vrot.lane.b32.xlu0 %v1049, 28
      %v1326 = vpop.permute.xlu0 %1325
      %1327 = vrot.lane.b32.xlu0 %v1050, 28
      %v1328 = vpop.permute.xlu0 %1327
      %1329 = vrot.lane.b32.xlu0 %v1051, 28
      %v1330 = vpop.permute.xlu0 %1329
      %1331 = vrot.lane.b32.xlu0 %v1052, 28
      %v1332 = vpop.permute.xlu0 %1331
      %1333 = vrot.lane.b32.xlu0 %v1053, 28
      %v1334 = vpop.permute.xlu0 %1333
      %1335 = vrot.lane.b32.xlu0 %v1054, 28
      %v1336 = vpop.permute.xlu0 %1335
      %1337 = vrot.lane.b32.xlu0 %v1055, 28
      %v1338 = vpop.permute.xlu0 %1337
      %1339 = vrot.lane.b32.xlu0 %v1205, 28
      %v1340 = vpop.permute.xlu0 %1339
      %1341 = vrot.lane.b32.xlu0 %v1310, 28
      %v1342 = vpop.permute.xlu0 %1341
      %v1343 = vunpack.c.l.b16 %v956
      %v1344 = vunpack.c.l.b16 %v959
      %v1345 = vpack.c.b16 %v1344, %v1343
      %1346 = vrot.lane.b32.xlu0 %v1122, 32
      %v1347 = vpop.permute.xlu0 %1346
      %1348 = vrot.lane.b32.xlu0 %v1123, 32
      %v1349 = vpop.permute.xlu0 %1348
      %1350 = vrot.lane.b32.xlu0 %v1124, 32
      %v1351 = vpop.permute.xlu0 %1350
      %1352 = vrot.lane.b32.xlu0 %v1125, 32
      %v1353 = vpop.permute.xlu0 %1352
      %1354 = vrot.lane.b32.xlu0 %v1126, 32
      %v1355 = vpop.permute.xlu0 %1354
      %1356 = vrot.lane.b32.xlu0 %v1127, 32
      %v1357 = vpop.permute.xlu0 %1356
      %1358 = vrot.lane.b32.xlu0 %v1128, 32
      %v1359 = vpop.permute.xlu0 %1358
      %1360 = vrot.lane.b32.xlu0 %v1129, 32
      %v1361 = vpop.permute.xlu0 %1360
      %1362 = vrot.lane.b32.xlu0 %v1130, 32
      %v1363 = vpop.permute.xlu0 %1362
      %1364 = vrot.lane.b32.xlu0 %v1131, 32
      %v1365 = vpop.permute.xlu0 %1364
      %1366 = vrot.lane.b32.xlu0 %v1132, 32
      %v1367 = vpop.permute.xlu0 %1366
      %1368 = vrot.lane.b32.xlu0 %v1133, 32
      %v1369 = vpop.permute.xlu0 %1368
      %1370 = vrot.lane.b32.xlu0 %v1134, 32
      %v1371 = vpop.permute.xlu0 %1370
      %1372 = vrot.lane.b32.xlu0 %v1135, 32
      %v1373 = vpop.permute.xlu0 %1372
      %1374 = vrot.lane.b32.xlu0 %v1240, 32
      %v1375 = vpop.permute.xlu0 %1374
      %1376 = vrot.lane.b32.xlu0 %v1345, 32
      %v1377 = vpop.permute.xlu0 %1376
      %vm1378 = vcmask 31744
      %v1381 = vsel %vm1378, %v992, %v1057
      %v1384 = vsel %vm1378, %v993, %v1059
      %v1387 = vsel %vm1378, %v994, %v1061
      %v1390 = vsel %vm1378, %v995, %v1063
      %v1393 = vsel %vm1378, %v996, %v1065
      %v1396 = vsel %vm1378, %v997, %v1067
      %v1399 = vsel %vm1378, %v998, %v1069
      %v1402 = vsel %vm1378, %v999, %v1071
      %v1405 = vsel %vm1378, %v1000, %v1073
      %v1408 = vsel %vm1378, %v1001, %v1075
      %v1411 = vsel %vm1378, %v1002, %v1077
      %v1414 = vsel %vm1378, %v1003, %v1079
      %v1417 = vsel %vm1378, %v1004, %v1081
      %v1420 = vsel %vm1378, %v1005, %v1083
      %v1423 = vsel %vm1378, %v1006, %v1085
      %v1426 = vsel %vm1378, %v1007, %v1087
      %vm1427 = vcmask 64512
      %v1429 = vsel %vm1427, %v1381, %v1137
      %v1431 = vsel %vm1427, %v1384, %v1139
      %v1433 = vsel %vm1427, %v1387, %v1141
      %v1435 = vsel %vm1427, %v1390, %v1143
      %v1437 = vsel %vm1427, %v1393, %v1145
      %v1439 = vsel %vm1427, %v1396, %v1147
      %v1441 = vsel %vm1427, %v1399, %v1149
      %v1443 = vsel %vm1427, %v1402, %v1151
      %v1445 = vsel %vm1427, %v1405, %v1153
      %v1447 = vsel %vm1427, %v1408, %v1155
      %v1449 = vsel %vm1427, %v1411, %v1157
      %v1451 = vsel %vm1427, %v1414, %v1159
      %v1453 = vsel %vm1427, %v1417, %v1161
      %v1455 = vsel %vm1427, %v1420, %v1163
      %v1457 = vsel %vm1427, %v1423, %v1165
      %v1459 = vsel %vm1427, %v1426, %v1167
      %vm1460 = vcmask 97280
      %v1462 = vsel %vm1460, %v1429, %v1172
      %v1464 = vsel %vm1460, %v1431, %v1174
      %v1466 = vsel %vm1460, %v1433, %v1176
      %v1468 = vsel %vm1460, %v1435, %v1178
      %v1470 = vsel %vm1460, %v1437, %v1180
      %v1472 = vsel %vm1460, %v1439, %v1182
      %v1474 = vsel %vm1460, %v1441, %v1184
      %v1476 = vsel %vm1460, %v1443, %v1186
      %v1478 = vsel %vm1460, %v1445, %v1188
      %v1480 = vsel %vm1460, %v1447, %v1190
      %v1482 = vsel %vm1460, %v1449, %v1192
      %v1484 = vsel %vm1460, %v1451, %v1194
      %v1486 = vsel %vm1460, %v1453, %v1196
      %v1488 = vsel %vm1460, %v1455, %v1198
      %v1490 = vsel %vm1460, %v1457, %v1200
      %v1492 = vsel %vm1460, %v1459, %v1202
      %vm1493 = vcmask 130048
      %v1495 = vsel %vm1493, %v1462, %v1207
      %v1497 = vsel %vm1493, %v1464, %v1209
      %v1499 = vsel %vm1493, %v1466, %v1211
      %v1501 = vsel %vm1493, %v1468, %v1213
      %v1503 = vsel %vm1493, %v1470, %v1215
      %v1505 = vsel %vm1493, %v1472, %v1217
      %v1507 = vsel %vm1493, %v1474, %v1219
      %v1509 = vsel %vm1493, %v1476, %v1221
      %v1511 = vsel %vm1493, %v1478, %v1223
      %v1513 = vsel %vm1493, %v1480, %v1225
      %v1515 = vsel %vm1493, %v1482, %v1227
      %v1517 = vsel %vm1493, %v1484, %v1229
      %v1519 = vsel %vm1493, %v1486, %v1231
      %v1521 = vsel %vm1493, %v1488, %v1233
      %v1523 = vsel %vm1493, %v1490, %v1235
      %v1525 = vsel %vm1493, %v1492, %v1237
      %vm1526 = vcmask 162816
      %v1528 = vsel %vm1526, %v1495, %v1242
      %v1530 = vsel %vm1526, %v1497, %v1244
      %v1532 = vsel %vm1526, %v1499, %v1246
      %v1534 = vsel %vm1526, %v1501, %v1248
      %v1536 = vsel %vm1526, %v1503, %v1250
      %v1538 = vsel %vm1526, %v1505, %v1252
      %v1540 = vsel %vm1526, %v1507, %v1254
      %v1542 = vsel %vm1526, %v1509, %v1256
      %v1544 = vsel %vm1526, %v1511, %v1258
      %v1546 = vsel %vm1526, %v1513, %v1260
      %v1548 = vsel %vm1526, %v1515, %v1262
      %v1550 = vsel %vm1526, %v1517, %v1264
      %v1552 = vsel %vm1526, %v1519, %v1266
      %v1554 = vsel %vm1526, %v1521, %v1268
      %v1556 = vsel %vm1526, %v1523, %v1270
      %v1558 = vsel %vm1526, %v1525, %v1272
      %vm1559 = vcmask 195584
      %v1561 = vsel %vm1559, %v1528, %v1277
      %v1563 = vsel %vm1559, %v1530, %v1279
      %v1565 = vsel %vm1559, %v1532, %v1281
      %v1567 = vsel %vm1559, %v1534, %v1283
      %v1569 = vsel %vm1559, %v1536, %v1285
      %v1571 = vsel %vm1559, %v1538, %v1287
      %v1573 = vsel %vm1559, %v1540, %v1289
      %v1575 = vsel %vm1559, %v1542, %v1291
      %v1577 = vsel %vm1559, %v1544, %v1293
      %v1579 = vsel %vm1559, %v1546, %v1295
      %v1581 = vsel %vm1559, %v1548, %v1297
      %v1583 = vsel %vm1559, %v1550, %v1299
      %v1585 = vsel %vm1559, %v1552, %v1301
      %v1587 = vsel %vm1559, %v1554, %v1303
      %v1589 = vsel %vm1559, %v1556, %v1305
      %v1591 = vsel %vm1559, %v1558, %v1307
      %vm1592 = vcmask 228352
      %v1594 = vsel %vm1592, %v1561, %v1312
      %v1596 = vsel %vm1592, %v1563, %v1314
      %v1598 = vsel %vm1592, %v1565, %v1316
      %v1600 = vsel %vm1592, %v1567, %v1318
      %v1602 = vsel %vm1592, %v1569, %v1320
      %v1604 = vsel %vm1592, %v1571, %v1322
      %v1606 = vsel %vm1592, %v1573, %v1324
      %v1608 = vsel %vm1592, %v1575, %v1326
      %v1610 = vsel %vm1592, %v1577, %v1328
      %v1612 = vsel %vm1592, %v1579, %v1330
      %v1614 = vsel %vm1592, %v1581, %v1332
      %v1616 = vsel %vm1592, %v1583, %v1334
      %v1618 = vsel %vm1592, %v1585, %v1336
      %v1620 = vsel %vm1592, %v1587, %v1338
      %v1622 = vsel %vm1592, %v1589, %v1340
      %v1624 = vsel %vm1592, %v1591, %v1342
      %vm1625 = vcmask 261120
      %v1627 = vsel %vm1625, %v1594, %v1347
      %v1629 = vsel %vm1625, %v1596, %v1349
      %v1631 = vsel %vm1625, %v1598, %v1351
      %v1633 = vsel %vm1625, %v1600, %v1353
      %v1635 = vsel %vm1625, %v1602, %v1355
      %v1637 = vsel %vm1625, %v1604, %v1357
      %v1639 = vsel %vm1625, %v1606, %v1359
      %v1641 = vsel %vm1625, %v1608, %v1361
      %v1643 = vsel %vm1625, %v1610, %v1363
      %v1645 = vsel %vm1625, %v1612, %v1365
      %v1647 = vsel %vm1625, %v1614, %v1367
      %v1649 = vsel %vm1625, %v1616, %v1369
      %v1651 = vsel %vm1625, %v1618, %v1371
      %v1653 = vsel %vm1625, %v1620, %v1373
      %v1655 = vsel %vm1625, %v1622, %v1375
      %v1657 = vsel %vm1625, %v1624, %v1377
      %v1658 = vld [vmem:[%s1] sm:$0xf]
      %v1659 = vld [vmem:[%s1 + $0x4] sm:$0xf]
      %v1660 = vld [vmem:[%s1 + $0x8] sm:$0xf]
      %v1661 = vld [vmem:[%s1 + $0xc] sm:$0xf]
      %v1662 = vld [vmem:[%s1 + $0x10] sm:$0x3]
      %v1663 = vlaneseq
      %v1664 = vshrl.u32 %v1663, 7
      %v1665 = vsub.s32 0, %v1664
      %v1666 = vrot.slane %v282, %v1665
      %v1672 = vunpack.c.l.b16 %v1658
      %v1673 = vunpack.c.l.b16 %v1659
      %v1674 = vunpack.c.l.b16 %v1660
      %v1675 = vunpack.c.l.b16 %v1661
      %v1676 = vunpack.c.l.b16 %v1662
      %v1677 = vpack.c.b16 %v1673, %v1672
      %v1678 = vpack.c.b16 %v1675, %v1674
      %v1679 = vpack.c.b16 %v1676, %v1676
      %vm1682 = vcmask 293888
      %v1683 = vsel %vm1682, %v1627, 0
      %v1685 = vsel %vm1682, %v1629, 0
      %v1687 = vsel %vm1682, %v1631, 0
      %v1689 = vsel %vm1682, %v1633, 0
      %v1691 = vsel %vm1682, %v1635, 0
      %v1693 = vsel %vm1682, %v1637, 0
      %v1695 = vsel %vm1682, %v1639, 0
      %v1697 = vsel %vm1682, %v1641, 0
      %v1699 = vsel %vm1682, %v1643, 0
      %v1701 = vsel %vm1682, %v1645, 0
      %v1703 = vsel %vm1682, %v1647, 0
      %v1705 = vsel %vm1682, %v1649, 0
      %v1707 = vsel %vm1682, %v1651, 0
      %v1709 = vsel %vm1682, %v1653, 0
      %v1711 = vsel %vm1682, %v1655, 0
      %v1713 = vsel %vm1682, %v1657, 0
      %vm1715 = vcmask 1041408
      %v1717 = vsel %vm1715, %v1679, 0
      %1719 = vmatprep.subr.bf16.mxu0 0
      %1720 = vmatpush1.bf16.msra.mxu0 0
      %1721 = vmatprep.subr.bf16.mxu0 0
      %1722 = vmatpush1.bf16.msra.mxu0 0
      %1723 = vmatprep.subr.bf16.mxu0 0
      %1724 = vmatpush1.bf16.msra.mxu0 0
      %1725 = vmatprep.subr.bf16.mxu0 0
      %1726 = vmatpush1.bf16.msra.mxu0 0
      %1727 = vmatprep.subr.bf16.mxu0 0
      %1728 = vmatpush1.bf16.msra.mxu0 0
      %1729 = vmatprep.subr.bf16.mxu0 0
      %1730 = vmatpush1.bf16.msra.mxu0 %v1717
      %1731 = vmatprep.subr.bf16.mxu0 0
      %1732 = vmatpush1.bf16.msra.mxu0 %v1678
      %1733 = vmatprep.subr.bf16.mxu0 0
      %1734 = vmatpush1.bf16.msra.mxu0 %v1677
      %1735 = vmatprep.subr.bf16.mxu0 0
      %1736 = vmatpush2.bf16.msra.mxu0 0
      %1737 = vmatprep.subr.bf16.mxu0 0
      %1738 = vmatpush2.bf16.msra.mxu0 0
      %1739 = vmatprep.subr.bf16.mxu0 0
      %1740 = vmatpush2.bf16.msra.mxu0 0
      %1741 = vmatprep.subr.bf16.mxu0 0
      %1742 = vmatpush2.bf16.msra.mxu0 0
      %1743 = vmatprep.subr.bf16.mxu0 0
      %1744 = vmatpush2.bf16.msra.mxu0 0
      %1745 = vmatprep.subr.bf16.mxu0 0
      %1746 = vmatpush2.bf16.msra.mxu0 0
      %1747 = vmatprep.subr.bf16.mxu0 0
      %1748 = vmatpush2.bf16.msra.mxu0 0
      %1749 = vmatprep.subr.bf16.mxu0 0
      %1750 = vmatpush2.bf16.msra.mxu0 0
      %1751 = vmatprep.mubr.bf16.mxu0 0
      %1752 = vmatmul.mubr.bf16.gmra.mxu0 %v1683
      %v1753 = vpop.f32.mrf.mxu0
      %v1754 = vadd.f32 %v1666, %v1753
      %v1755 = vpop.f32.mrf.mxu0
      %v1756 = vpop.f32.mrf.mxu0
      %v1757 = vadd.f32 %v1666, %v1756
      %v1758 = vpop.f32.mrf.mxu0
      %1759 = vmatprep.mubr.bf16.mxu0 0
      %1760 = vmatmul.mubr.bf16.gmra.mxu0 %v1685
      %v1761 = vpop.f32.mrf.mxu0
      %v1762 = vadd.f32 %v1666, %v1761
      %v1763 = vpop.f32.mrf.mxu0
      %v1764 = vpop.f32.mrf.mxu0
      %v1765 = vadd.f32 %v1666, %v1764
      %v1766 = vpop.f32.mrf.mxu0
      %1767 = vmatprep.mubr.bf16.mxu0 0
      %1768 = vmatmul.mubr.bf16.gmra.mxu0 %v1687
      %v1769 = vpop.f32.mrf.mxu0
      %v1770 = vadd.f32 %v1666, %v1769
      %v1771 = vpop.f32.mrf.mxu0
      %v1772 = vpop.f32.mrf.mxu0
      %v1773 = vadd.f32 %v1666, %v1772
      %v1774 = vpop.f32.mrf.mxu0
      %1775 = vmatprep.mubr.bf16.mxu0 0
      %1776 = vmatmul.mubr.bf16.gmra.mxu0 %v1689
      %v1777 = vpop.f32.mrf.mxu0
      %v1778 = vadd.f32 %v1666, %v1777
      %v1779 = vpop.f32.mrf.mxu0
      %v1780 = vpop.f32.mrf.mxu0
      %v1781 = vadd.f32 %v1666, %v1780
      %v1782 = vpop.f32.mrf.mxu0
      %1783 = vmatprep.mubr.bf16.mxu0 0
      %1784 = vmatmul.mubr.bf16.gmra.mxu0 %v1691
      %v1785 = vpop.f32.mrf.mxu0
      %v1786 = vadd.f32 %v1666, %v1785
      %v1787 = vpop.f32.mrf.mxu0
      %v1788 = vpop.f32.mrf.mxu0
      %v1789 = vadd.f32 %v1666, %v1788
      %v1790 = vpop.f32.mrf.mxu0
      %1791 = vmatprep.mubr.bf16.mxu0 0
      %1792 = vmatmul.mubr.bf16.gmra.mxu0 %v1693
      %v1793 = vpop.f32.mrf.mxu0
      %v1794 = vadd.f32 %v1666, %v1793
      %v1795 = vpop.f32.mrf.mxu0
      %v1796 = vpop.f32.mrf.mxu0
      %v1797 = vadd.f32 %v1666, %v1796
      %v1798 = vpop.f32.mrf.mxu0
      %1799 = vmatprep.mubr.bf16.mxu0 0
      %1800 = vmatmul.mubr.bf16.gmra.mxu0 %v1695
      %v1801 = vpop.f32.mrf.mxu0
      %v1802 = vadd.f32 %v1666, %v1801
      %v1803 = vpop.f32.mrf.mxu0
      %v1804 = vpop.f32.mrf.mxu0
      %v1805 = vadd.f32 %v1666, %v1804
      %v1806 = vpop.f32.mrf.mxu0
      %1807 = vmatprep.mubr.bf16.mxu0 0
      %1808 = vmatmul.mubr.bf16.gmra.mxu0 %v1697
      %v1809 = vpop.f32.mrf.mxu0
      %v1810 = vadd.f32 %v1666, %v1809
      %v1811 = vpop.f32.mrf.mxu0
      %v1812 = vpop.f32.mrf.mxu0
      %v1813 = vadd.f32 %v1666, %v1812
      %v1814 = vpop.f32.mrf.mxu0
      %1815 = vmatprep.mubr.bf16.mxu0 0
      %1816 = vmatmul.mubr.bf16.gmra.mxu0 %v1699
      %v1817 = vpop.f32.mrf.mxu0
      %v1818 = vadd.f32 %v1666, %v1817
      %v1819 = vpop.f32.mrf.mxu0
      %v1820 = vpop.f32.mrf.mxu0
      %v1821 = vadd.f32 %v1666, %v1820
      %v1822 = vpop.f32.mrf.mxu0
      %1823 = vmatprep.mubr.bf16.mxu0 0
      %1824 = vmatmul.mubr.bf16.gmra.mxu0 %v1701
      %v1825 = vpop.f32.mrf.mxu0
      %v1826 = vadd.f32 %v1666, %v1825
      %v1827 = vpop.f32.mrf.mxu0
      %v1828 = vpop.f32.mrf.mxu0
      %v1829 = vadd.f32 %v1666, %v1828
      %v1830 = vpop.f32.mrf.mxu0
      %1831 = vmatprep.mubr.bf16.mxu0 0
      %1832 = vmatmul.mubr.bf16.gmra.mxu0 %v1703
      %v1833 = vpop.f32.mrf.mxu0
      %v1834 = vadd.f32 %v1666, %v1833
      %v1835 = vpop.f32.mrf.mxu0
      %v1836 = vpop.f32.mrf.mxu0
      %v1837 = vadd.f32 %v1666, %v1836
      %v1838 = vpop.f32.mrf.mxu0
      %1839 = vmatprep.mubr.bf16.mxu0 0
      %1840 = vmatmul.mubr.bf16.gmra.mxu0 %v1705
      %v1841 = vpop.f32.mrf.mxu0
      %v1842 = vadd.f32 %v1666, %v1841
      %v1843 = vpop.f32.mrf.mxu0
      %v1844 = vpop.f32.mrf.mxu0
      %v1845 = vadd.f32 %v1666, %v1844
      %v1846 = vpop.f32.mrf.mxu0
      %1847 = vmatprep.mubr.bf16.mxu0 0
      %1848 = vmatmul.mubr.bf16.gmra.mxu0 %v1707
      %v1849 = vpop.f32.mrf.mxu0
      %v1850 = vadd.f32 %v1666, %v1849
      %v1851 = vpop.f32.mrf.mxu0
      %v1852 = vpop.f32.mrf.mxu0
      %v1853 = vadd.f32 %v1666, %v1852
      %v1854 = vpop.f32.mrf.mxu0
      %1855 = vmatprep.mubr.bf16.mxu0 0
      %1856 = vmatmul.mubr.bf16.gmra.mxu0 %v1709
      %v1857 = vpop.f32.mrf.mxu0
      %v1858 = vadd.f32 %v1666, %v1857
      %v1859 = vpop.f32.mrf.mxu0
      %v1860 = vpop.f32.mrf.mxu0
      %v1861 = vadd.f32 %v1666, %v1860
      %v1862 = vpop.f32.mrf.mxu0
      %1863 = vmatprep.mubr.bf16.mxu0 0
      %1864 = vmatmul.mubr.bf16.gmra.mxu0 %v1711
      %v1865 = vpop.f32.mrf.mxu0
      %v1866 = vadd.f32 %v1666, %v1865
      %v1867 = vpop.f32.mrf.mxu0
      %v1868 = vpop.f32.mrf.mxu0
      %v1869 = vadd.f32 %v1666, %v1868
      %v1870 = vpop.f32.mrf.mxu0
      %1871 = vmatprep.mubr.bf16.mxu0 0
      %1872 = vmatmul.mubr.bf16.gmra.mxu0 %v1713
      %v1873 = vpop.f32.mrf.mxu0
      %v1874 = vadd.f32 %v1666, %v1873
      %v1875 = vpop.f32.mrf.mxu0
      %v1876 = vpop.f32.mrf.mxu0
      %v1877 = vadd.f32 %v1666, %v1876
      %v1878 = vpop.f32.mrf.mxu0
      %1879 = vdwg.mxu0
      %v1880 = vld [vmem:[%s2] sm:$0xf]
      %v1881 = vld [vmem:[%s2 + $0x4] sm:$0xf]
      %v1882 = vld [vmem:[%s2 + $0x8] sm:$0xf]
      %v1883 = vld [vmem:[%s2 + $0xc] sm:$0xf]
      %v1884 = vld [vmem:[%s2 + $0x10] sm:$0x3]
      %v1885 = vsel %vm1427, %v1754, 0.0
      %v1886 = vsel %vm1427, %v1757, 0.0
      %v1887 = vadd.f32 %v1885, %v1886
      %v1888 = vsel %vm1427, %v1762, 0.0
      %v1889 = vadd.f32 %v1887, %v1888
      %v1890 = vsel %vm1427, %v1765, 0.0
      %v1891 = vadd.f32 %v1889, %v1890
      %v1892 = vsel %vm1427, %v1770, 0.0
      %v1893 = vadd.f32 %v1891, %v1892
      %v1894 = vsel %vm1427, %v1773, 0.0
      %v1895 = vadd.f32 %v1893, %v1894
      %v1896 = vsel %vm1427, %v1778, 0.0
      %v1897 = vadd.f32 %v1895, %v1896
      %v1898 = vsel %vm1427, %v1781, 0.0
      %v1899 = vadd.f32 %v1897, %v1898
      %v1900 = vsel %vm1427, %v1786, 0.0
      %v1901 = vadd.f32 %v1899, %v1900
      %v1902 = vsel %vm1427, %v1789, 0.0
      %v1903 = vadd.f32 %v1901, %v1902
      %v1904 = vsel %vm1427, %v1794, 0.0
      %v1905 = vadd.f32 %v1903, %v1904
      %v1906 = vsel %vm1427, %v1797, 0.0
      %v1907 = vadd.f32 %v1905, %v1906
      %v1908 = vsel %vm1427, %v1802, 0.0
      %v1909 = vadd.f32 %v1907, %v1908
      %v1910 = vsel %vm1427, %v1805, 0.0
      %v1911 = vadd.f32 %v1909, %v1910
      %v1912 = vsel %vm1427, %v1810, 0.0
      %v1913 = vadd.f32 %v1911, %v1912
      %v1914 = vsel %vm1427, %v1813, 0.0
      %v1915 = vadd.f32 %v1913, %v1914
      %v1916 = vsel %vm1427, %v1818, 0.0
      %v1917 = vadd.f32 %v1915, %v1916
      %v1918 = vsel %vm1427, %v1821, 0.0
      %v1919 = vadd.f32 %v1917, %v1918
      %v1920 = vsel %vm1427, %v1826, 0.0
      %v1921 = vadd.f32 %v1919, %v1920
      %v1922 = vsel %vm1427, %v1829, 0.0
      %v1923 = vadd.f32 %v1921, %v1922
      %v1924 = vsel %vm1427, %v1834, 0.0
      %v1925 = vadd.f32 %v1923, %v1924
      %v1926 = vsel %vm1427, %v1837, 0.0
      %v1927 = vadd.f32 %v1925, %v1926
      %v1928 = vsel %vm1427, %v1842, 0.0
      %v1929 = vadd.f32 %v1927, %v1928
      %v1930 = vsel %vm1427, %v1845, 0.0
      %v1931 = vadd.f32 %v1929, %v1930
      %v1932 = vsel %vm1427, %v1850, 0.0
      %v1933 = vadd.f32 %v1931, %v1932
      %v1934 = vsel %vm1427, %v1853, 0.0
      %v1935 = vadd.f32 %v1933, %v1934
      %v1936 = vsel %vm1427, %v1858, 0.0
      %v1937 = vadd.f32 %v1935, %v1936
      %v1938 = vsel %vm1427, %v1861, 0.0
      %v1939 = vadd.f32 %v1937, %v1938
      %v1940 = vsel %vm1427, %v1866, 0.0
      %v1941 = vadd.f32 %v1939, %v1940
      %v1942 = vsel %vm1427, %v1869, 0.0
      %v1943 = vadd.f32 %v1941, %v1942
      %v1944 = vsel %vm1427, %v1874, 0.0
      %v1945 = vadd.f32 %v1943, %v1944
      %v1946 = vsel %vm1427, %v1877, 0.0
      %v1947 = vadd.f32 %v1945, %v1946
      %v1948 = vrot.slane %v1947, 4
      %v1949 = vadd.f32 %v1947, %v1948
      %v1950 = vrot.slane %v1949, 2
      %v1951 = vadd.f32 %v1949, %v1950
      %v1952 = vrot.slane %v1951, 1
      %v1953 = vadd.f32 %v1951, %v1952
      %v1955 = vsel %vm1427, %v1953, 0
      %1957 = vmatprep.subr.mxu0 0.0
      %1958 = vmatpush1.msra.mxu0 0.0
      %1959 = vmatprep.subr.mxu0 0.0
      %1960 = vmatpush1.msra.mxu0 0.0
      %1961 = vmatprep.subr.mxu0 0.0
      %1962 = vmatpush1.msra.mxu0 0.0
      %1963 = vmatprep.subr.mxu0 0.0
      %1964 = vmatpush1.msra.mxu0 0.0
      %1965 = vmatprep.subr.mxu0 0.0
      %1966 = vmatpush1.msra.mxu0 0.0
      %1967 = vmatprep.subr.mxu0 0.0
      %1968 = vmatpush1.msra.mxu0 0.0
      %1969 = vmatprep.subr.mxu0 0.0
      %1970 = vmatpush1.msra.mxu0 0.0
      %1971 = vmatprep.subr.mxu0 0.0
      %1972 = vmatpush1.msra.mxu0 0.0
      %1973 = vmatprep.subr.mxu0 0.0
      %1974 = vmatpush1.msra.mxu0 0.0
      %1975 = vmatprep.subr.mxu0 0.0
      %1976 = vmatpush1.msra.mxu0 0.0
      %1977 = vmatprep.subr.mxu0 0.0
      %1978 = vmatpush1.msra.mxu0 0.0
      %1979 = vmatprep.subr.mxu0 0.0
      %1980 = vmatpush1.msra.mxu0 0.0
      %1981 = vmatprep.subr.mxu0 0.0
      %1982 = vmatpush1.msra.mxu0 0.0
      %1983 = vmatprep.subr.mxu0 0.0
      %1984 = vmatpush1.msra.mxu0 0.0
      %1985 = vmatprep.subr.mxu0 0.0
      %1986 = vmatpush1.msra.mxu0 0.0
      %1987 = vmatprep.subr.mxu0 0.0
      %1988 = vmatpush1.msra.mxu0 %v280
      %1989 = vmatprep.subr.mxu0 0.0
      %1990 = vmatpush2.msra.mxu0 0.0
      %1991 = vmatprep.subr.mxu0 0.0
      %1992 = vmatpush2.msra.mxu0 0.0
      %1993 = vmatprep.subr.mxu0 0.0
      %1994 = vmatpush2.msra.mxu0 0.0
      %1995 = vmatprep.subr.mxu0 0.0
      %1996 = vmatpush2.msra.mxu0 0.0
      %1997 = vmatprep.subr.mxu0 0.0
      %1998 = vmatpush2.msra.mxu0 0.0
      %1999 = vmatprep.subr.mxu0 0.0
      %2000 = vmatpush2.msra.mxu0 0.0
      %2001 = vmatprep.subr.mxu0 0.0
      %2002 = vmatpush2.msra.mxu0 0.0
      %2003 = vmatprep.subr.mxu0 0.0
      %2004 = vmatpush2.msra.mxu0 0.0
      %2005 = vmatprep.subr.mxu0 0.0
      %2006 = vmatpush2.msra.mxu0 0.0
      %2007 = vmatprep.subr.mxu0 0.0
      %2008 = vmatpush2.msra.mxu0 0.0
      %2009 = vmatprep.subr.mxu0 0.0
      %2010 = vmatpush2.msra.mxu0 0.0
      %2011 = vmatprep.subr.mxu0 0.0
      %2012 = vmatpush2.msra.mxu0 0.0
      %2013 = vmatprep.subr.mxu0 0.0
      %2014 = vmatpush2.msra.mxu0 0.0
      %2015 = vmatprep.subr.mxu0 0.0
      %2016 = vmatpush2.msra.mxu0 0.0
      %2017 = vmatprep.subr.mxu0 0.0
      %2018 = vmatpush2.msra.mxu0 0.0
      %2019 = vmatprep.subr.mxu0 0.0
      %2020 = vmatpush2.msra.mxu0 0.0
      %2021 = vmatprep.mubr.f32.mxu0 0.0
      %2022 = vmatmul.mubr.f32.gmra.mxu0 %v1955
      %v2023 = vpop.f32.mrf.mxu0
      %v2024 = vadd.f32 0.0, %v2023
      %v2025 = vpop.f32.mrf.mxu0
      %2026 = vdwg.mxu0
      %v2027 = vrcp.pop 512.0
      %v2028 = vmul.f32 %v2024, %v2027
      %v2030 = vsel %vm1378, %v2028, 0
      %vm2032 = vcmask 1043456
      %v2034 = vsel %vm2032, %v281, 0
      %2036 = vmatprep.subr.mxu0 0.0
      %2037 = vmatpush1.msra.mxu0 0.0
      %2038 = vmatprep.subr.mxu0 0.0
      %2039 = vmatpush1.msra.mxu0 0.0
      %2040 = vmatprep.subr.mxu0 0.0
      %2041 = vmatpush1.msra.mxu0 0.0
      %2042 = vmatprep.subr.mxu0 0.0
      %2043 = vmatpush1.msra.mxu0 0.0
      %2044 = vmatprep.subr.mxu0 0.0
      %2045 = vmatpush1.msra.mxu0 0.0
      %2046 = vmatprep.subr.mxu0 0.0
      %2047 = vmatpush1.msra.mxu0 0.0
      %2048 = vmatprep.subr.mxu0 0.0
      %2049 = vmatpush1.msra.mxu0 0.0
      %2050 = vmatprep.subr.mxu0 0.0
      %2051 = vmatpush1.msra.mxu0 0.0
      %2052 = vmatprep.subr.mxu0 0.0
      %2053 = vmatpush1.msra.mxu0 0.0
      %2054 = vmatprep.subr.mxu0 0.0
      %2055 = vmatpush1.msra.mxu0 0.0
      %2056 = vmatprep.subr.mxu0 0.0
      %2057 = vmatpush1.msra.mxu0 0.0
      %2058 = vmatprep.subr.mxu0 0.0
      %2059 = vmatpush1.msra.mxu0 0.0
      %2060 = vmatprep.subr.mxu0 0.0
      %2061 = vmatpush1.msra.mxu0 0.0
      %2062 = vmatprep.subr.mxu0 0.0
      %2063 = vmatpush1.msra.mxu0 0.0
      %2064 = vmatprep.subr.mxu0 0.0
      %2065 = vmatpush1.msra.mxu0 0.0
      %2066 = vmatprep.subr.mxu0 0.0
      %2067 = vmatpush1.msra.mxu0 %v2034
      %2068 = vmatprep.subr.mxu0 0.0
      %2069 = vmatpush2.msra.mxu0 0.0
      %2070 = vmatprep.subr.mxu0 0.0
      %2071 = vmatpush2.msra.mxu0 0.0
      %2072 = vmatprep.subr.mxu0 0.0
      %2073 = vmatpush2.msra.mxu0 0.0
      %2074 = vmatprep.subr.mxu0 0.0
      %2075 = vmatpush2.msra.mxu0 0.0
      %2076 = vmatprep.subr.mxu0 0.0
      %2077 = vmatpush2.msra.mxu0 0.0
      %2078 = vmatprep.subr.mxu0 0.0
      %2079 = vmatpush2.msra.mxu0 0.0
      %2080 = vmatprep.subr.mxu0 0.0
      %2081 = vmatpush2.msra.mxu0 0.0
      %2082 = vmatprep.subr.mxu0 0.0
      %2083 = vmatpush2.msra.mxu0 0.0
      %2084 = vmatprep.subr.mxu0 0.0
      %2085 = vmatpush2.msra.mxu0 0.0
      %2086 = vmatprep.subr.mxu0 0.0
      %2087 = vmatpush2.msra.mxu0 0.0
      %2088 = vmatprep.subr.mxu0 0.0
      %2089 = vmatpush2.msra.mxu0 0.0
      %2090 = vmatprep.subr.mxu0 0.0
      %2091 = vmatpush2.msra.mxu0 0.0
      %2092 = vmatprep.subr.mxu0 0.0
      %2093 = vmatpush2.msra.mxu0 0.0
      %2094 = vmatprep.subr.mxu0 0.0
      %2095 = vmatpush2.msra.mxu0 0.0
      %2096 = vmatprep.subr.mxu0 0.0
      %2097 = vmatpush2.msra.mxu0 0.0
      %2098 = vmatprep.subr.mxu0 0.0
      %2099 = vmatpush2.msra.mxu0 0.0
      %2100 = vmatprep.mubr.f32.mxu0 0.0
      %2101 = vmatmul.mubr.f32.gmra.mxu0 %v2030
      %v2102 = vpop.f32.mrf.mxu0
      %v2103 = vadd.f32 0.0, %v2102
      %v2104 = vpop.f32.mrf.mxu0
      %2105 = vdwg.mxu0
      %v2106 = vlaneseq
      %v2107 = vshrl.u32 %v2106, 7
      %v2108 = vsub.s32 0, %v2107
      %v2109 = vrot.slane %v2103, %v2108
      %v2110 = vsub.f32 %v1754, %v2109
      %v2111 = vsub.f32 %v1757, %v2109
      %v2112 = vsub.f32 %v1762, %v2109
      %v2113 = vsub.f32 %v1765, %v2109
      %v2114 = vsub.f32 %v1770, %v2109
      %v2115 = vsub.f32 %v1773, %v2109
      %v2116 = vsub.f32 %v1778, %v2109
      %v2117 = vsub.f32 %v1781, %v2109
      %v2118 = vsub.f32 %v1786, %v2109
      %v2119 = vsub.f32 %v1789, %v2109
      %v2120 = vsub.f32 %v1794, %v2109
      %v2121 = vsub.f32 %v1797, %v2109
      %v2122 = vsub.f32 %v1802, %v2109
      %v2123 = vsub.f32 %v1805, %v2109
      %v2124 = vsub.f32 %v1810, %v2109
      %v2125 = vsub.f32 %v1813, %v2109
      %v2126 = vsub.f32 %v1818, %v2109
      %v2127 = vsub.f32 %v1821, %v2109
      %v2128 = vsub.f32 %v1826, %v2109
      %v2129 = vsub.f32 %v1829, %v2109
      %v2130 = vsub.f32 %v1834, %v2109
      %v2131 = vsub.f32 %v1837, %v2109
      %v2132 = vsub.f32 %v1842, %v2109
      %v2133 = vsub.f32 %v1845, %v2109
      %v2134 = vsub.f32 %v1850, %v2109
      %v2135 = vsub.f32 %v1853, %v2109
      %v2136 = vsub.f32 %v1858, %v2109
      %v2137 = vsub.f32 %v1861, %v2109
      %v2138 = vsub.f32 %v1866, %v2109
      %v2139 = vsub.f32 %v1869, %v2109
      %v2140 = vsub.f32 %v1874, %v2109
      %v2141 = vsub.f32 %v1877, %v2109
      %v2142 = vmul.f32 %v2110, %v2110
      %v2143 = vmul.f32 %v2111, %v2111
      %v2144 = vmul.f32 %v2112, %v2112
      %v2145 = vmul.f32 %v2113, %v2113
      %v2146 = vmul.f32 %v2114, %v2114
      %v2147 = vmul.f32 %v2115, %v2115
      %v2148 = vmul.f32 %v2116, %v2116
      %v2149 = vmul.f32 %v2117, %v2117
      %v2150 = vmul.f32 %v2118, %v2118
      %v2151 = vmul.f32 %v2119, %v2119
      %v2152 = vmul.f32 %v2120, %v2120
      %v2153 = vmul.f32 %v2121, %v2121
      %v2154 = vmul.f32 %v2122, %v2122
      %v2155 = vmul.f32 %v2123, %v2123
      %v2156 = vmul.f32 %v2124, %v2124
      %v2157 = vmul.f32 %v2125, %v2125
      %v2158 = vmul.f32 %v2126, %v2126
      %v2159 = vmul.f32 %v2127, %v2127
      %v2160 = vmul.f32 %v2128, %v2128
      %v2161 = vmul.f32 %v2129, %v2129
      %v2162 = vmul.f32 %v2130, %v2130
      %v2163 = vmul.f32 %v2131, %v2131
      %v2164 = vmul.f32 %v2132, %v2132
      %v2165 = vmul.f32 %v2133, %v2133
      %v2166 = vmul.f32 %v2134, %v2134
      %v2167 = vmul.f32 %v2135, %v2135
      %v2168 = vmul.f32 %v2136, %v2136
      %v2169 = vmul.f32 %v2137, %v2137
      %v2170 = vmul.f32 %v2138, %v2138
      %v2171 = vmul.f32 %v2139, %v2139
      %v2172 = vmul.f32 %v2140, %v2140
      %v2173 = vmul.f32 %v2141, %v2141
      %v2174 = vsel %vm1427, %v2142, 0.0
      %v2175 = vsel %vm1427, %v2143, 0.0
      %v2176 = vadd.f32 %v2174, %v2175
      %v2177 = vsel %vm1427, %v2144, 0.0
      %v2178 = vadd.f32 %v2176, %v2177
      %v2179 = vsel %vm1427, %v2145, 0.0
      %v2180 = vadd.f32 %v2178, %v2179
      %v2181 = vsel %vm1427, %v2146, 0.0
      %v2182 = vadd.f32 %v2180, %v2181
      %v2183 = vsel %vm1427, %v2147, 0.0
      %v2184 = vadd.f32 %v2182, %v2183
      %v2185 = vsel %vm1427, %v2148, 0.0
      %v2186 = vadd.f32 %v2184, %v2185
      %v2187 = vsel %vm1427, %v2149, 0.0
      %v2188 = vadd.f32 %v2186, %v2187
      %v2189 = vsel %vm1427, %v2150, 0.0
      %v2190 = vadd.f32 %v2188, %v2189
      %v2191 = vsel %vm1427, %v2151, 0.0
      %v2192 = vadd.f32 %v2190, %v2191
      %v2193 = vsel %vm1427, %v2152, 0.0
      %v2194 = vadd.f32 %v2192, %v2193
      %v2195 = vsel %vm1427, %v2153, 0.0
      %v2196 = vadd.f32 %v2194, %v2195
      %v2197 = vsel %vm1427, %v2154, 0.0
      %v2198 = vadd.f32 %v2196, %v2197
      %v2199 = vsel %vm1427, %v2155, 0.0
      %v2200 = vadd.f32 %v2198, %v2199
      %v2201 = vsel %vm1427, %v2156, 0.0
      %v2202 = vadd.f32 %v2200, %v2201
      %v2203 = vsel %vm1427, %v2157, 0.0
      %v2204 = vadd.f32 %v2202, %v2203
      %v2205 = vsel %vm1427, %v2158, 0.0
      %v2206 = vadd.f32 %v2204, %v2205
      %v2207 = vsel %vm1427, %v2159, 0.0
      %v2208 = vadd.f32 %v2206, %v2207
      %v2209 = vsel %vm1427, %v2160, 0.0
      %v2210 = vadd.f32 %v2208, %v2209
      %v2211 = vsel %vm1427, %v2161, 0.0
      %v2212 = vadd.f32 %v2210, %v2211
      %v2213 = vsel %vm1427, %v2162, 0.0
      %v2214 = vadd.f32 %v2212, %v2213
      %v2215 = vsel %vm1427, %v2163, 0.0
      %v2216 = vadd.f32 %v2214, %v2215
      %v2217 = vsel %vm1427, %v2164, 0.0
      %v2218 = vadd.f32 %v2216, %v2217
      %v2219 = vsel %vm1427, %v2165, 0.0
      %v2220 = vadd.f32 %v2218, %v2219
      %v2221 = vsel %vm1427, %v2166, 0.0
      %v2222 = vadd.f32 %v2220, %v2221
      %v2223 = vsel %vm1427, %v2167, 0.0
      %v2224 = vadd.f32 %v2222, %v2223
      %v2225 = vsel %vm1427, %v2168, 0.0
      %v2226 = vadd.f32 %v2224, %v2225
      %v2227 = vsel %vm1427, %v2169, 0.0
      %v2228 = vadd.f32 %v2226, %v2227
      %v2229 = vsel %vm1427, %v2170, 0.0
      %v2230 = vadd.f32 %v2228, %v2229
      %v2231 = vsel %vm1427, %v2171, 0.0
      %v2232 = vadd.f32 %v2230, %v2231
      %v2233 = vsel %vm1427, %v2172, 0.0
      %v2234 = vadd.f32 %v2232, %v2233
      %v2235 = vsel %vm1427, %v2173, 0.0
      %v2236 = vadd.f32 %v2234, %v2235
      %v2237 = vrot.slane %v2236, 4
      %v2238 = vadd.f32 %v2236, %v2237
      %v2239 = vrot.slane %v2238, 2
      %v2240 = vadd.f32 %v2238, %v2239
      %v2241 = vrot.slane %v2240, 1
      %v2242 = vadd.f32 %v2240, %v2241
      %v2244 = vsel %vm1427, %v2242, 0
      %2246 = vmatprep.subr.mxu0 0.0
      %2247 = vmatpush1.msra.mxu0 0.0
      %2248 = vmatprep.subr.mxu0 0.0
      %2249 = vmatpush1.msra.mxu0 0.0
      %2250 = vmatprep.subr.mxu0 0.0
      %2251 = vmatpush1.msra.mxu0 0.0
      %2252 = vmatprep.subr.mxu0 0.0
      %2253 = vmatpush1.msra.mxu0 0.0
      %2254 = vmatprep.subr.mxu0 0.0
      %2255 = vmatpush1.msra.mxu0 0.0
      %2256 = vmatprep.subr.mxu0 0.0
      %2257 = vmatpush1.msra.mxu0 0.0
      %2258 = vmatprep.subr.mxu0 0.0
      %2259 = vmatpush1.msra.mxu0 0.0
      %2260 = vmatprep.subr.mxu0 0.0
      %2261 = vmatpush1.msra.mxu0 0.0
      %2262 = vmatprep.subr.mxu0 0.0
      %2263 = vmatpush1.msra.mxu0 0.0
      %2264 = vmatprep.subr.mxu0 0.0
      %2265 = vmatpush1.msra.mxu0 0.0
      %2266 = vmatprep.subr.mxu0 0.0
      %2267 = vmatpush1.msra.mxu0 0.0
      %2268 = vmatprep.subr.mxu0 0.0
      %2269 = vmatpush1.msra.mxu0 0.0
      %2270 = vmatprep.subr.mxu0 0.0
      %2271 = vmatpush1.msra.mxu0 0.0
      %2272 = vmatprep.subr.mxu0 0.0
      %2273 = vmatpush1.msra.mxu0 0.0
      %2274 = vmatprep.subr.mxu0 0.0
      %2275 = vmatpush1.msra.mxu0 0.0
      %2276 = vmatprep.subr.mxu0 0.0
      %2277 = vmatpush1.msra.mxu0 %v280
      %2278 = vmatprep.subr.mxu0 0.0
      %2279 = vmatpush2.msra.mxu0 0.0
      %2280 = vmatprep.subr.mxu0 0.0
      %2281 = vmatpush2.msra.mxu0 0.0
      %2282 = vmatprep.subr.mxu0 0.0
      %2283 = vmatpush2.msra.mxu0 0.0
      %2284 = vmatprep.subr.mxu0 0.0
      %2285 = vmatpush2.msra.mxu0 0.0
      %2286 = vmatprep.subr.mxu0 0.0
      %2287 = vmatpush2.msra.mxu0 0.0
      %2288 = vmatprep.subr.mxu0 0.0
      %2289 = vmatpush2.msra.mxu0 0.0
      %2290 = vmatprep.subr.mxu0 0.0
      %2291 = vmatpush2.msra.mxu0 0.0
      %2292 = vmatprep.subr.mxu0 0.0
      %2293 = vmatpush2.msra.mxu0 0.0
      %2294 = vmatprep.subr.mxu0 0.0
      %2295 = vmatpush2.msra.mxu0 0.0
      %2296 = vmatprep.subr.mxu0 0.0
      %2297 = vmatpush2.msra.mxu0 0.0
      %2298 = vmatprep.subr.mxu0 0.0
      %2299 = vmatpush2.msra.mxu0 0.0
      %2300 = vmatprep.subr.mxu0 0.0
      %2301 = vmatpush2.msra.mxu0 0.0
      %2302 = vmatprep.subr.mxu0 0.0
      %2303 = vmatpush2.msra.mxu0 0.0
      %2304 = vmatprep.subr.mxu0 0.0
      %2305 = vmatpush2.msra.mxu0 0.0
      %2306 = vmatprep.subr.mxu0 0.0
      %2307 = vmatpush2.msra.mxu0 0.0
      %2308 = vmatprep.subr.mxu0 0.0
      %2309 = vmatpush2.msra.mxu0 0.0
      %2310 = vmatprep.mubr.f32.mxu0 0.0
      %2311 = vmatmul.mubr.f32.gmra.mxu0 %v2244
      %v2312 = vpop.f32.mrf.mxu0
      %v2313 = vadd.f32 0.0, %v2312
      %v2314 = vpop.f32.mrf.mxu0
      %2315 = vdwg.mxu0
      %v2316 = vmul.f32 %v2313, %v2027
      %v2317 = vadd.f32 %v2316, 1e-05
      %v2318 = vrsqrt.pop %v2317
      %v2320 = vsel %vm1378, %v2318, 0
      %2322 = vmatprep.subr.mxu0 0.0
      %2323 = vmatpush1.msra.mxu0 0.0
      %2324 = vmatprep.subr.mxu0 0.0
      %2325 = vmatpush1.msra.mxu0 0.0
      %2326 = vmatprep.subr.mxu0 0.0
      %2327 = vmatpush1.msra.mxu0 0.0
      %2328 = vmatprep.subr.mxu0 0.0
      %2329 = vmatpush1.msra.mxu0 0.0
      %2330 = vmatprep.subr.mxu0 0.0
      %2331 = vmatpush1.msra.mxu0 0.0
      %2332 = vmatprep.subr.mxu0 0.0
      %2333 = vmatpush1.msra.mxu0 0.0
      %2334 = vmatprep.subr.mxu0 0.0
      %2335 = vmatpush1.msra.mxu0 0.0
      %2336 = vmatprep.subr.mxu0 0.0
      %2337 = vmatpush1.msra.mxu0 0.0
      %2338 = vmatprep.subr.mxu0 0.0
      %2339 = vmatpush1.msra.mxu0 0.0
      %2340 = vmatprep.subr.mxu0 0.0
      %2341 = vmatpush1.msra.mxu0 0.0
      %2342 = vmatprep.subr.mxu0 0.0
      %2343 = vmatpush1.msra.mxu0 0.0
      %2344 = vmatprep.subr.mxu0 0.0
      %2345 = vmatpush1.msra.mxu0 0.0
      %2346 = vmatprep.subr.mxu0 0.0
      %2347 = vmatpush1.msra.mxu0 0.0
      %2348 = vmatprep.subr.mxu0 0.0
      %2349 = vmatpush1.msra.mxu0 0.0
      %2350 = vmatprep.subr.mxu0 0.0
      %2351 = vmatpush1.msra.mxu0 0.0
      %2352 = vmatprep.subr.mxu0 0.0
      %2353 = vmatpush1.msra.mxu0 %v2034
      %2354 = vmatprep.subr.mxu0 0.0
      %2355 = vmatpush2.msra.mxu0 0.0
      %2356 = vmatprep.subr.mxu0 0.0
      %2357 = vmatpush2.msra.mxu0 0.0
      %2358 = vmatprep.subr.mxu0 0.0
      %2359 = vmatpush2.msra.mxu0 0.0
      %2360 = vmatprep.subr.mxu0 0.0
      %2361 = vmatpush2.msra.mxu0 0.0
      %2362 = vmatprep.subr.mxu0 0.0
      %2363 = vmatpush2.msra.mxu0 0.0
      %2364 = vmatprep.subr.mxu0 0.0
      %2365 = vmatpush2.msra.mxu0 0.0
      %2366 = vmatprep.subr.mxu0 0.0
      %2367 = vmatpush2.msra.mxu0 0.0
      %2368 = vmatprep.subr.mxu0 0.0
      %2369 = vmatpush2.msra.mxu0 0.0
      %2370 = vmatprep.subr.mxu0 0.0
      %2371 = vmatpush2.msra.mxu0 0.0
      %2372 = vmatprep.subr.mxu0 0.0
      %2373 = vmatpush2.msra.mxu0 0.0
      %2374 = vmatprep.subr.mxu0 0.0
      %2375 = vmatpush2.msra.mxu0 0.0
      %2376 = vmatprep.subr.mxu0 0.0
      %2377 = vmatpush2.msra.mxu0 0.0
      %2378 = vmatprep.subr.mxu0 0.0
      %2379 = vmatpush2.msra.mxu0 0.0
      %2380 = vmatprep.subr.mxu0 0.0
      %2381 = vmatpush2.msra.mxu0 0.0
      %2382 = vmatprep.subr.mxu0 0.0
      %2383 = vmatpush2.msra.mxu0 0.0
      %2384 = vmatprep.subr.mxu0 0.0
      %2385 = vmatpush2.msra.mxu0 0.0
      %2386 = vmatprep.mubr.f32.mxu0 0.0
      %2387 = vmatmul.mubr.f32.gmra.mxu0 %v2320
      %v2388 = vpop.f32.mrf.mxu0
      %v2389 = vadd.f32 0.0, %v2388
      %v2390 = vpop.f32.mrf.mxu0
      %2391 = vdwg.mxu0
      %v2392 = vlaneseq
      %v2393 = vshrl.u32 %v2392, 7
      %v2394 = vsub.s32 0, %v2393
      %v2395 = vrot.slane %v2389, %v2394
      %v2396 = vmul.f32 %v2110, %v2395
      %v2397 = vmul.f32 %v2111, %v2395
      %v2398 = vmul.f32 %v2112, %v2395
      %v2399 = vmul.f32 %v2113, %v2395
      %v2400 = vmul.f32 %v2114, %v2395
      %v2401 = vmul.f32 %v2115, %v2395
      %v2402 = vmul.f32 %v2116, %v2395
      %v2403 = vmul.f32 %v2117, %v2395
      %v2404 = vmul.f32 %v2118, %v2395
      %v2405 = vmul.f32 %v2119, %v2395
      %v2406 = vmul.f32 %v2120, %v2395
      %v2407 = vmul.f32 %v2121, %v2395
      %v2408 = vmul.f32 %v2122, %v2395
      %v2409 = vmul.f32 %v2123, %v2395
      %v2410 = vmul.f32 %v2124, %v2395
      %v2411 = vmul.f32 %v2125, %v2395
      %v2412 = vmul.f32 %v2126, %v2395
      %v2413 = vmul.f32 %v2127, %v2395
      %v2414 = vmul.f32 %v2128, %v2395
      %v2415 = vmul.f32 %v2129, %v2395
      %v2416 = vmul.f32 %v2130, %v2395
      %v2417 = vmul.f32 %v2131, %v2395
      %v2418 = vmul.f32 %v2132, %v2395
      %v2419 = vmul.f32 %v2133, %v2395
      %v2420 = vmul.f32 %v2134, %v2395
      %v2421 = vmul.f32 %v2135, %v2395
      %v2422 = vmul.f32 %v2136, %v2395
      %v2423 = vmul.f32 %v2137, %v2395
      %v2424 = vmul.f32 %v2138, %v2395
      %v2425 = vmul.f32 %v2139, %v2395
      %v2426 = vmul.f32 %v2140, %v2395
      %v2427 = vmul.f32 %v2141, %v2395
      %v2428 = vlaneseq
      %v2429 = vshrl.u32 %v2428, 7
      %v2430 = vsub.s32 0, %v2429
      %v2431 = vrot.slane %v283, %v2430
      %v2432 = vmul.f32 %v2396, %v2431
      %v2433 = vmul.f32 %v2397, %v2431
      %v2434 = vmul.f32 %v2398, %v2431
      %v2435 = vmul.f32 %v2399, %v2431
      %v2436 = vmul.f32 %v2400, %v2431
      %v2437 = vmul.f32 %v2401, %v2431
      %v2438 = vmul.f32 %v2402, %v2431
      %v2439 = vmul.f32 %v2403, %v2431
      %v2440 = vmul.f32 %v2404, %v2431
      %v2441 = vmul.f32 %v2405, %v2431
      %v2442 = vmul.f32 %v2406, %v2431
      %v2443 = vmul.f32 %v2407, %v2431
      %v2444 = vmul.f32 %v2408, %v2431
      %v2445 = vmul.f32 %v2409, %v2431
      %v2446 = vmul.f32 %v2410, %v2431
      %v2447 = vmul.f32 %v2411, %v2431
      %v2448 = vmul.f32 %v2412, %v2431
      %v2449 = vmul.f32 %v2413, %v2431
      %v2450 = vmul.f32 %v2414, %v2431
      %v2451 = vmul.f32 %v2415, %v2431
      %v2452 = vmul.f32 %v2416, %v2431
      %v2453 = vmul.f32 %v2417, %v2431
      %v2454 = vmul.f32 %v2418, %v2431
      %v2455 = vmul.f32 %v2419, %v2431
      %v2456 = vmul.f32 %v2420, %v2431
      %v2457 = vmul.f32 %v2421, %v2431
      %v2458 = vmul.f32 %v2422, %v2431
      %v2459 = vmul.f32 %v2423, %v2431
      %v2460 = vmul.f32 %v2424, %v2431
      %v2461 = vmul.f32 %v2425, %v2431
      %v2462 = vmul.f32 %v2426, %v2431
      %v2463 = vmul.f32 %v2427, %v2431
      %v2464 = vlaneseq
      %v2465 = vshrl.u32 %v2464, 7
      %v2466 = vsub.s32 0, %v2465
      %v2467 = vrot.slane %v284, %v2466
      %v2468 = vadd.f32 %v2432, %v2467
      %v2469 = vadd.f32 %v2433, %v2467
      %v2470 = vadd.f32 %v2434, %v2467
      %v2471 = vadd.f32 %v2435, %v2467
      %v2472 = vadd.f32 %v2436, %v2467
      %v2473 = vadd.f32 %v2437, %v2467
      %v2474 = vadd.f32 %v2438, %v2467
      %v2475 = vadd.f32 %v2439, %v2467
      %v2476 = vadd.f32 %v2440, %v2467
      %v2477 = vadd.f32 %v2441, %v2467
      %v2478 = vadd.f32 %v2442, %v2467
      %v2479 = vadd.f32 %v2443, %v2467
      %v2480 = vadd.f32 %v2444, %v2467
      %v2481 = vadd.f32 %v2445, %v2467
      %v2482 = vadd.f32 %v2446, %v2467
      %v2483 = vadd.f32 %v2447, %v2467
      %v2484 = vadd.f32 %v2448, %v2467
      %v2485 = vadd.f32 %v2449, %v2467
      %v2486 = vadd.f32 %v2450, %v2467
      %v2487 = vadd.f32 %v2451, %v2467
      %v2488 = vadd.f32 %v2452, %v2467
      %v2489 = vadd.f32 %v2453, %v2467
      %v2490 = vadd.f32 %v2454, %v2467
      %v2491 = vadd.f32 %v2455, %v2467
      %v2492 = vadd.f32 %v2456, %v2467
      %v2493 = vadd.f32 %v2457, %v2467
      %v2494 = vadd.f32 %v2458, %v2467
      %v2495 = vadd.f32 %v2459, %v2467
      %v2496 = vadd.f32 %v2460, %v2467
      %v2497 = vadd.f32 %v2461, %v2467
      %v2498 = vadd.f32 %v2462, %v2467
      %v2499 = vadd.f32 %v2463, %v2467
      %v2500 = vmax.f32 %v2468, 0.0
      %v2501 = vmax.f32 %v2469, 0.0
      %v2502 = vmax.f32 %v2470, 0.0
      %v2503 = vmax.f32 %v2471, 0.0
      %v2504 = vmax.f32 %v2472, 0.0
      %v2505 = vmax.f32 %v2473, 0.0
      %v2506 = vmax.f32 %v2474, 0.0
      %v2507 = vmax.f32 %v2475, 0.0
      %v2508 = vmax.f32 %v2476, 0.0
      %v2509 = vmax.f32 %v2477, 0.0
      %v2510 = vmax.f32 %v2478, 0.0
      %v2511 = vmax.f32 %v2479, 0.0
      %v2512 = vmax.f32 %v2480, 0.0
      %v2513 = vmax.f32 %v2481, 0.0
      %v2514 = vmax.f32 %v2482, 0.0
      %v2515 = vmax.f32 %v2483, 0.0
      %v2516 = vmax.f32 %v2484, 0.0
      %v2517 = vmax.f32 %v2485, 0.0
      %v2518 = vmax.f32 %v2486, 0.0
      %v2519 = vmax.f32 %v2487, 0.0
      %v2520 = vmax.f32 %v2488, 0.0
      %v2521 = vmax.f32 %v2489, 0.0
      %v2522 = vmax.f32 %v2490, 0.0
      %v2523 = vmax.f32 %v2491, 0.0
      %v2524 = vmax.f32 %v2492, 0.0
      %v2525 = vmax.f32 %v2493, 0.0
      %v2526 = vmax.f32 %v2494, 0.0
      %v2527 = vmax.f32 %v2495, 0.0
      %v2528 = vmax.f32 %v2496, 0.0
      %v2529 = vmax.f32 %v2497, 0.0
      %v2530 = vmax.f32 %v2498, 0.0
      %v2531 = vmax.f32 %v2499, 0.0
      %2532 = vst.msk [vmem:[#allocation2] sm:$0xff] %vm1427, 0.0
      %2533 = vst.msk [vmem:[#allocation2 + $0x8] sm:$0xff] %vm1427, 0.0
      %vm2534 = vcmask 58368
      %2535 = vst.msk [vmem:[#allocation2 + $0x10] sm:$0x3] %vm2534, 0.0
      %2536 = vst.msk [vmem:[#allocation2 + $0x18] sm:$0xff] %vm1427, 0.0
      %2537 = vst.msk [vmem:[#allocation2 + $0x20] sm:$0xff] %vm1427, 0.0
      %2538 = vst.msk [vmem:[#allocation2 + $0x28] sm:$0x3] %vm2534, 0.0
      %2539 = vst.msk [vmem:[#allocation2 + $0x30] sm:$0xff] %vm1427, 0.0
      %2540 = vst.msk [vmem:[#allocation2 + $0x38] sm:$0xff] %vm1427, 0.0
      %2541 = vst.msk [vmem:[#allocation2 + $0x40] sm:$0x3] %vm2534, 0.0
      %2542 = vst.msk [vmem:[#allocation2 + $0x48] sm:$0xff] %vm1427, 0.0
      %2543 = vst.msk [vmem:[#allocation2 + $0x50] sm:$0xff] %vm1427, 0.0
      %2544 = vst.msk [vmem:[#allocation2 + $0x58] sm:$0x3] %vm2534, 0.0
      %2545 = vst.msk [vmem:[#allocation2 + $0x60] sm:$0xff] %vm1427, 0.0
      %2546 = vst.msk [vmem:[#allocation2 + $0x68] sm:$0xff] %vm1427, 0.0
      %2547 = vst.msk [vmem:[#allocation2 + $0x70] sm:$0x3] %vm2534, 0.0
      %2548 = vst.msk [vmem:[#allocation2 + $0x78] sm:$0xff] %vm1427, 0.0
      %2549 = vst.msk [vmem:[#allocation2 + $0x80] sm:$0xff] %vm1427, 0.0
      %2550 = vst.msk [vmem:[#allocation2 + $0x88] sm:$0x3] %vm2534, 0.0
      %2551 = vst.msk [vmem:[#allocation2 + $0x90] sm:$0xff] %vm1427, 0.0
      %2552 = vst.msk [vmem:[#allocation2 + $0x98] sm:$0xff] %vm1427, 0.0
      %2553 = vst.msk [vmem:[#allocation2 + $0xa0] sm:$0x3] %vm2534, 0.0
      %2554 = vst.msk [vmem:[#allocation2 + $0xa8] sm:$0xff] %vm1427, 0.0
      %2555 = vst.msk [vmem:[#allocation2 + $0xb0] sm:$0xff] %vm1427, 0.0
      %2556 = vst.msk [vmem:[#allocation2 + $0xb8] sm:$0x3] %vm2534, 0.0
      %2557 = vst.msk [vmem:[#allocation2 + $0xc0] sm:$0xff] %vm1427, 0.0
      %2558 = vst.msk [vmem:[#allocation2 + $0xc8] sm:$0xff] %vm1427, 0.0
      %2559 = vst.msk [vmem:[#allocation2 + $0xd0] sm:$0x3] %vm2534, 0.0
      %2560 = vst.msk [vmem:[#allocation2 + $0xd8] sm:$0xff] %vm1427, 0.0
      %2561 = vst.msk [vmem:[#allocation2 + $0xe0] sm:$0xff] %vm1427, 0.0
      %2562 = vst.msk [vmem:[#allocation2 + $0xe8] sm:$0x3] %vm2534, 0.0
      %2563 = vst.msk [vmem:[#allocation2 + $0xf0] sm:$0xff] %vm1427, 0.0
      %2564 = vst.msk [vmem:[#allocation2 + $0xf8] sm:$0xff] %vm1427, 0.0
      %2565 = vst.msk [vmem:[#allocation2 + $0x100] sm:$0x3] %vm2534, 0.0
      %2566 = vst.msk [vmem:[#allocation2 + $0x108] sm:$0xff] %vm1427, 0.0
      %2567 = vst.msk [vmem:[#allocation2 + $0x110] sm:$0xff] %vm1427, 0.0
      %2568 = vst.msk [vmem:[#allocation2 + $0x118] sm:$0x3] %vm2534, 0.0
      %2569 = vst.msk [vmem:[#allocation2 + $0x120] sm:$0xff] %vm1427, 0.0
      %2570 = vst.msk [vmem:[#allocation2 + $0x128] sm:$0xff] %vm1427, 0.0
      %2571 = vst.msk [vmem:[#allocation2 + $0x130] sm:$0x3] %vm2534, 0.0
      %2572 = vst.msk [vmem:[#allocation2 + $0x138] sm:$0xff] %vm1427, 0.0
      %2573 = vst.msk [vmem:[#allocation2 + $0x140] sm:$0xff] %vm1427, 0.0
      %2574 = vst.msk [vmem:[#allocation2 + $0x148] sm:$0x3] %vm2534, 0.0
      %2575 = vst.msk [vmem:[#allocation2 + $0x150] sm:$0xff] %vm1427, 0.0
      %2576 = vst.msk [vmem:[#allocation2 + $0x158] sm:$0xff] %vm1427, 0.0
      %2577 = vst.msk [vmem:[#allocation2 + $0x160] sm:$0x3] %vm2534, 0.0
      %2578 = vst.msk [vmem:[#allocation2 + $0x168] sm:$0xff] %vm1427, 0.0
      %2579 = vst.msk [vmem:[#allocation2 + $0x170] sm:$0xff] %vm1427, 0.0
      %2580 = vst.msk [vmem:[#allocation2 + $0x178] sm:$0x3] %vm2534, 0.0
      %2581 = vst.msk [vmem:[#allocation2 + $0x180] sm:$0xff] %vm1427, 0.0
      %2582 = vst.msk [vmem:[#allocation2 + $0x188] sm:$0xff] %vm1427, 0.0
      %2583 = vst.msk [vmem:[#allocation2 + $0x190] sm:$0x3] %vm2534, 0.0
      %2584 = vst.msk [vmem:[#allocation2 + $0x198] sm:$0xff] %vm1427, 0.0
      %2585 = vst.msk [vmem:[#allocation2 + $0x1a0] sm:$0xff] %vm1427, 0.0
      %2586 = vst.msk [vmem:[#allocation2 + $0x1a8] sm:$0x3] %vm2534, 0.0
      %s2587 = scalar_lea.vmem [#allocation2], 24
      %2588 = vst.msk [vmem:[%s2587 + $0x1] sm:$0xff] %vm1427, %v2500
      %2589 = vst.msk [vmem:[%s2587 + $0x9] sm:$0xff] %vm1427, %v2501
      %2590 = vst.msk [vmem:[%s2587 + $0x19] sm:$0xff] %vm1427, %v2502
      %2591 = vst.msk [vmem:[%s2587 + $0x21] sm:$0xff] %vm1427, %v2503
      %2592 = vst.msk [vmem:[%s2587 + $0x31] sm:$0xff] %vm1427, %v2504
      %2593 = vst.msk [vmem:[%s2587 + $0x39] sm:$0xff] %vm1427, %v2505
      %2594 = vst.msk [vmem:[%s2587 + $0x49] sm:$0xff] %vm1427, %v2506
      %2595 = vst.msk [vmem:[%s2587 + $0x51] sm:$0xff] %vm1427, %v2507
      %2596 = vst.msk [vmem:[%s2587 + $0x61] sm:$0xff] %vm1427, %v2508
      %2597 = vst.msk [vmem:[%s2587 + $0x69] sm:$0xff] %vm1427, %v2509
      %2598 = vst.msk [vmem:[%s2587 + $0x79] sm:$0xff] %vm1427, %v2510
      %2599 = vst.msk [vmem:[%s2587 + $0x81] sm:$0xff] %vm1427, %v2511
      %2600 = vst.msk [vmem:[%s2587 + $0x91] sm:$0xff] %vm1427, %v2512
      %2601 = vst.msk [vmem:[%s2587 + $0x99] sm:$0xff] %vm1427, %v2513
      %2602 = vst.msk [vmem:[%s2587 + $0xa9] sm:$0xff] %vm1427, %v2514
      %2603 = vst.msk [vmem:[%s2587 + $0xb1] sm:$0xff] %vm1427, %v2515
      %2604 = vst.msk [vmem:[%s2587 + $0xc1] sm:$0xff] %vm1427, %v2516
      %2605 = vst.msk [vmem:[%s2587 + $0xc9] sm:$0xff] %vm1427, %v2517
      %2606 = vst.msk [vmem:[%s2587 + $0xd9] sm:$0xff] %vm1427, %v2518
      %2607 = vst.msk [vmem:[%s2587 + $0xe1] sm:$0xff] %vm1427, %v2519
      %2608 = vst.msk [vmem:[%s2587 + $0xf1] sm:$0xff] %vm1427, %v2520
      %2609 = vst.msk [vmem:[%s2587 + $0xf9] sm:$0xff] %vm1427, %v2521
      %2610 = vst.msk [vmem:[%s2587 + $0x109] sm:$0xff] %vm1427, %v2522
      %2611 = vst.msk [vmem:[%s2587 + $0x111] sm:$0xff] %vm1427, %v2523
      %2612 = vst.msk [vmem:[%s2587 + $0x121] sm:$0xff] %vm1427, %v2524
      %2613 = vst.msk [vmem:[%s2587 + $0x129] sm:$0xff] %vm1427, %v2525
      %2614 = vst.msk [vmem:[%s2587 + $0x139] sm:$0xff] %vm1427, %v2526
      %2615 = vst.msk [vmem:[%s2587 + $0x141] sm:$0xff] %vm1427, %v2527
      %2616 = vst.msk [vmem:[%s2587 + $0x151] sm:$0xff] %vm1427, %v2528
      %2617 = vst.msk [vmem:[%s2587 + $0x159] sm:$0xff] %vm1427, %v2529
      %2618 = vst.msk [vmem:[%s2587 + $0x169] sm:$0xff] %vm1427, %v2530
      %2619 = vst.msk [vmem:[%s2587 + $0x171] sm:$0xff] %vm1427, %v2531
      %v2620 = vld [vmem:[#allocation2] sm:$0xff]
      %v2621 = vld [vmem:[#allocation2 + $0x8] sm:$0xff]
      %v2622 = vld [vmem:[#allocation2 + $0x10] sm:$0x3]
      %v2623 = vld [vmem:[#allocation2 + $0x18] sm:$0xff]
      %v2624 = vld [vmem:[#allocation2 + $0x20] sm:$0xff]
      %v2625 = vld [vmem:[#allocation2 + $0x28] sm:$0x3]
      %v2626 = vld [vmem:[#allocation2 + $0x30] sm:$0xff]
      %v2627 = vld [vmem:[#allocation2 + $0x38] sm:$0xff]
      %v2628 = vld [vmem:[#allocation2 + $0x40] sm:$0x3]
      %v2629 = vld [vmem:[#allocation2 + $0x48] sm:$0xff]
      %v2630 = vld [vmem:[#allocation2 + $0x50] sm:$0xff]
      %v2631 = vld [vmem:[#allocation2 + $0x58] sm:$0x3]
      %v2632 = vld [vmem:[#allocation2 + $0x60] sm:$0xff]
      %v2633 = vld [vmem:[#allocation2 + $0x68] sm:$0xff]
      %v2634 = vld [vmem:[#allocation2 + $0x70] sm:$0x3]
      %v2635 = vld [vmem:[#allocation2 + $0x78] sm:$0xff]
      %v2636 = vld [vmem:[#allocation2 + $0x80] sm:$0xff]
      %v2637 = vld [vmem:[#allocation2 + $0x88] sm:$0x3]
      %v2638 = vld [vmem:[#allocation2 + $0x90] sm:$0xff]
      %v2639 = vld [vmem:[#allocation2 + $0x98] sm:$0xff]
      %v2640 = vld [vmem:[#allocation2 + $0xa0] sm:$0x3]
      %v2641 = vld [vmem:[#allocation2 + $0xa8] sm:$0xff]
      %v2642 = vld [vmem:[#allocation2 + $0xb0] sm:$0xff]
      %v2643 = vld [vmem:[#allocation2 + $0xb8] sm:$0x3]
      %v2644 = vld [vmem:[#allocation2 + $0xc0] sm:$0xff]
      %v2645 = vld [vmem:[#allocation2 + $0xc8] sm:$0xff]
      %v2646 = vld [vmem:[#allocation2 + $0xd0] sm:$0x3]
      %v2647 = vld [vmem:[#allocation2 + $0xd8] sm:$0xff]
      %v2648 = vld [vmem:[#allocation2 + $0xe0] sm:$0xff]
      %v2649 = vld [vmem:[#allocation2 + $0xe8] sm:$0x3]
      %v2650 = vld [vmem:[#allocation2 + $0xf0] sm:$0xff]
      %v2651 = vld [vmem:[#allocation2 + $0xf8] sm:$0xff]
      %v2652 = vld [vmem:[#allocation2 + $0x100] sm:$0x3]
      %v2653 = vld [vmem:[#allocation2 + $0x108] sm:$0xff]
      %v2654 = vld [vmem:[#allocation2 + $0x110] sm:$0xff]
      %v2655 = vld [vmem:[#allocation2 + $0x118] sm:$0x3]
      %v2656 = vld [vmem:[#allocation2 + $0x120] sm:$0xff]
      %v2657 = vld [vmem:[#allocation2 + $0x128] sm:$0xff]
      %v2658 = vld [vmem:[#allocation2 + $0x130] sm:$0x3]
      %v2659 = vld [vmem:[#allocation2 + $0x138] sm:$0xff]
      %v2660 = vld [vmem:[#allocation2 + $0x140] sm:$0xff]
      %v2661 = vld [vmem:[#allocation2 + $0x148] sm:$0x3]
      %v2662 = vld [vmem:[#allocation2 + $0x150] sm:$0xff]
      %v2663 = vld [vmem:[#allocation2 + $0x158] sm:$0xff]
      %v2664 = vld [vmem:[#allocation2 + $0x160] sm:$0x3]
      %v2665 = vld [vmem:[#allocation2 + $0x168] sm:$0xff]
      %v2666 = vld [vmem:[#allocation2 + $0x170] sm:$0xff]
      %v2667 = vld [vmem:[#allocation2 + $0x178] sm:$0x3]
      %v2668 = vld [vmem:[#allocation2 + $0x180] sm:$0xff]
      %v2669 = vld [vmem:[#allocation2 + $0x188] sm:$0xff]
      %v2670 = vld [vmem:[#allocation2 + $0x190] sm:$0x3]
      %v2671 = vld [vmem:[#allocation2 + $0x198] sm:$0xff]
      %v2672 = vld [vmem:[#allocation2 + $0x1a0] sm:$0xff]
      %v2673 = vld [vmem:[#allocation2 + $0x1a8] sm:$0x3]
      %vm2722 = vcmask 1046528
      %v2723 = vrot.slane %v2620, 1
      %v2724 = vrot.slane %v2621, 1
      %v2725 = vsel %vm2722, %v2723, %v2724
      %v2726 = vrot.slane %v2622, 1
      %v2727 = vsel %vm2722, %v2724, %v2726
      %v2728 = vrot.slane %v2623, 1
      %v2729 = vrot.slane %v2624, 1
      %v2730 = vsel %vm2722, %v2728, %v2729
      %v2731 = vrot.slane %v2625, 1
      %v2732 = vsel %vm2722, %v2729, %v2731
      %v2733 = vrot.slane %v2626, 1
      %v2734 = vrot.slane %v2627, 1
      %v2735 = vsel %vm2722, %v2733, %v2734
      %v2736 = vrot.slane %v2628, 1
      %v2737 = vsel %vm2722, %v2734, %v2736
      %v2738 = vrot.slane %v2629, 1
      %v2739 = vrot.slane %v2630, 1
      %v2740 = vsel %vm2722, %v2738, %v2739
      %v2741 = vrot.slane %v2631, 1
      %v2742 = vsel %vm2722, %v2739, %v2741
      %v2743 = vrot.slane %v2632, 1
      %v2744 = vrot.slane %v2633, 1
      %v2745 = vsel %vm2722, %v2743, %v2744
      %v2746 = vrot.slane %v2634, 1
      %v2747 = vsel %vm2722, %v2744, %v2746
      %v2748 = vrot.slane %v2635, 1
      %v2749 = vrot.slane %v2636, 1
      %v2750 = vsel %vm2722, %v2748, %v2749
      %v2751 = vrot.slane %v2637, 1
      %v2752 = vsel %vm2722, %v2749, %v2751
      %v2753 = vrot.slane %v2638, 1
      %v2754 = vrot.slane %v2639, 1
      %v2755 = vsel %vm2722, %v2753, %v2754
      %v2756 = vrot.slane %v2640, 1
      %v2757 = vsel %vm2722, %v2754, %v2756
      %v2758 = vrot.slane %v2641, 1
      %v2759 = vrot.slane %v2642, 1
      %v2760 = vsel %vm2722, %v2758, %v2759
      %v2761 = vrot.slane %v2643, 1
      %v2762 = vsel %vm2722, %v2759, %v2761
      %v2763 = vrot.slane %v2644, 1
      %v2764 = vrot.slane %v2645, 1
      %v2765 = vsel %vm2722, %v2763, %v2764
      %v2766 = vrot.slane %v2646, 1
      %v2767 = vsel %vm2722, %v2764, %v2766
      %v2768 = vrot.slane %v2647, 1
      %v2769 = vrot.slane %v2648, 1
      %v2770 = vsel %vm2722, %v2768, %v2769
      %v2771 = vrot.slane %v2649, 1
      %v2772 = vsel %vm2722, %v2769, %v2771
      %v2773 = vrot.slane %v2650, 1
      %v2774 = vrot.slane %v2651, 1
      %v2775 = vsel %vm2722, %v2773, %v2774
      %v2776 = vrot.slane %v2652, 1
      %v2777 = vsel %vm2722, %v2774, %v2776
      %v2778 = vrot.slane %v2653, 1
      %v2779 = vrot.slane %v2654, 1
      %v2780 = vsel %vm2722, %v2778, %v2779
      %v2781 = vrot.slane %v2655, 1
      %v2782 = vsel %vm2722, %v2779, %v2781
      %v2783 = vrot.slane %v2656, 1
      %v2784 = vrot.slane %v2657, 1
      %v2785 = vsel %vm2722, %v2783, %v2784
      %v2786 = vrot.slane %v2658, 1
      %v2787 = vsel %vm2722, %v2784, %v2786
      %v2788 = vrot.slane %v2659, 1
      %v2789 = vrot.slane %v2660, 1
      %v2790 = vsel %vm2722, %v2788, %v2789
      %v2791 = vrot.slane %v2661, 1
      %v2792 = vsel %vm2722, %v2789, %v2791
      %v2793 = vrot.slane %v2662, 1
      %v2794 = vrot.slane %v2663, 1
      %v2795 = vsel %vm2722, %v2793, %v2794
      %v2796 = vrot.slane %v2664, 1
      %v2797 = vsel %vm2722, %v2794, %v2796
      %v2798 = vrot.slane %v2665, 1
      %v2799 = vrot.slane %v2666, 1
      %v2800 = vsel %vm2722, %v2798, %v2799
      %v2801 = vrot.slane %v2667, 1
      %v2802 = vsel %vm2722, %v2799, %v2801
      %vm2803 = vcmask 1045504
      %v2804 = vrot.slane %v2620, 2
      %v2805 = vrot.slane %v2621, 2
      %v2806 = vsel %vm2803, %v2804, %v2805
      %v2807 = vrot.slane %v2622, 2
      %v2808 = vsel %vm2803, %v2805, %v2807
      %v2809 = vrot.slane %v2623, 2
      %v2810 = vrot.slane %v2624, 2
      %v2811 = vsel %vm2803, %v2809, %v2810
      %v2812 = vrot.slane %v2625, 2
      %v2813 = vsel %vm2803, %v2810, %v2812
      %v2814 = vrot.slane %v2626, 2
      %v2815 = vrot.slane %v2627, 2
      %v2816 = vsel %vm2803, %v2814, %v2815
      %v2817 = vrot.slane %v2628, 2
      %v2818 = vsel %vm2803, %v2815, %v2817
      %v2819 = vrot.slane %v2629, 2
      %v2820 = vrot.slane %v2630, 2
      %v2821 = vsel %vm2803, %v2819, %v2820
      %v2822 = vrot.slane %v2631, 2
      %v2823 = vsel %vm2803, %v2820, %v2822
      %v2824 = vrot.slane %v2632, 2
      %v2825 = vrot.slane %v2633, 2
      %v2826 = vsel %vm2803, %v2824, %v2825
      %v2827 = vrot.slane %v2634, 2
      %v2828 = vsel %vm2803, %v2825, %v2827
      %v2829 = vrot.slane %v2635, 2
      %v2830 = vrot.slane %v2636, 2
      %v2831 = vsel %vm2803, %v2829, %v2830
      %v2832 = vrot.slane %v2637, 2
      %v2833 = vsel %vm2803, %v2830, %v2832
      %v2834 = vrot.slane %v2638, 2
      %v2835 = vrot.slane %v2639, 2
      %v2836 = vsel %vm2803, %v2834, %v2835
      %v2837 = vrot.slane %v2640, 2
      %v2838 = vsel %vm2803, %v2835, %v2837
      %v2839 = vrot.slane %v2641, 2
      %v2840 = vrot.slane %v2642, 2
      %v2841 = vsel %vm2803, %v2839, %v2840
      %v2842 = vrot.slane %v2643, 2
      %v2843 = vsel %vm2803, %v2840, %v2842
      %v2844 = vrot.slane %v2644, 2
      %v2845 = vrot.slane %v2645, 2
      %v2846 = vsel %vm2803, %v2844, %v2845
      %v2847 = vrot.slane %v2646, 2
      %v2848 = vsel %vm2803, %v2845, %v2847
      %v2849 = vrot.slane %v2647, 2
      %v2850 = vrot.slane %v2648, 2
      %v2851 = vsel %vm2803, %v2849, %v2850
      %v2852 = vrot.slane %v2649, 2
      %v2853 = vsel %vm2803, %v2850, %v2852
      %v2854 = vrot.slane %v2650, 2
      %v2855 = vrot.slane %v2651, 2
      %v2856 = vsel %vm2803, %v2854, %v2855
      %v2857 = vrot.slane %v2652, 2
      %v2858 = vsel %vm2803, %v2855, %v2857
      %v2859 = vrot.slane %v2653, 2
      %v2860 = vrot.slane %v2654, 2
      %v2861 = vsel %vm2803, %v2859, %v2860
      %v2862 = vrot.slane %v2655, 2
      %v2863 = vsel %vm2803, %v2860, %v2862
      %v2864 = vrot.slane %v2656, 2
      %v2865 = vrot.slane %v2657, 2
      %v2866 = vsel %vm2803, %v2864, %v2865
      %v2867 = vrot.slane %v2658, 2
      %v2868 = vsel %vm2803, %v2865, %v2867
      %v2869 = vrot.slane %v2659, 2
      %v2870 = vrot.slane %v2660, 2
      %v2871 = vsel %vm2803, %v2869, %v2870
      %v2872 = vrot.slane %v2661, 2
      %v2873 = vsel %vm2803, %v2870, %v2872
      %v2874 = vrot.slane %v2662, 2
      %v2875 = vrot.slane %v2663, 2
      %v2876 = vsel %vm2803, %v2874, %v2875
      %v2877 = vrot.slane %v2664, 2
      %v2878 = vsel %vm2803, %v2875, %v2877
      %v2879 = vrot.slane %v2665, 2
      %v2880 = vrot.slane %v2666, 2
      %v2881 = vsel %vm2803, %v2879, %v2880
      %v2882 = vrot.slane %v2667, 2
      %v2883 = vsel %vm2803, %v2880, %v2882
      %v2887 = vrot.slane %v2668, 1
      %v2888 = vrot.slane %v2669, 1
      %v2889 = vsel %vm2722, %v2887, %v2888
      %v2890 = vrot.slane %v2670, 1
      %v2891 = vsel %vm2722, %v2888, %v2890
      %v2892 = vrot.slane %v2668, 2
      %v2893 = vrot.slane %v2669, 2
      %v2894 = vsel %vm2803, %v2892, %v2893
      %v2895 = vrot.slane %v2670, 2
      %v2896 = vsel %vm2803, %v2893, %v2895
      %v2900 = vrot.slane %v2671, 1
      %v2901 = vrot.slane %v2672, 1
      %v2902 = vsel %vm2722, %v2900, %v2901
      %v2903 = vrot.slane %v2673, 1
      %v2904 = vsel %vm2722, %v2901, %v2903
      %v2905 = vrot.slane %v2671, 2
      %v2906 = vrot.slane %v2672, 2
      %v2907 = vsel %vm2803, %v2905, %v2906
      %v2908 = vrot.slane %v2673, 2
      %v2909 = vsel %vm2803, %v2906, %v2908
      %2910 = vrot.lane.b32.xlu0 %v2725, 8
      %v2911 = vpop.permute.xlu0 %2910
      %2912 = vrot.lane.b32.xlu0 %v2727, 8
      %v2913 = vpop.permute.xlu0 %2912
      %2914 = vrot.lane.b32.xlu0 %v2730, 8
      %v2915 = vpop.permute.xlu0 %2914
      %2916 = vrot.lane.b32.xlu0 %v2732, 8
      %v2917 = vpop.permute.xlu0 %2916
      %2918 = vrot.lane.b32.xlu0 %v2735, 8
      %v2919 = vpop.permute.xlu0 %2918
      %2920 = vrot.lane.b32.xlu0 %v2737, 8
      %v2921 = vpop.permute.xlu0 %2920
      %2922 = vrot.lane.b32.xlu0 %v2740, 8
      %v2923 = vpop.permute.xlu0 %2922
      %2924 = vrot.lane.b32.xlu0 %v2742, 8
      %v2925 = vpop.permute.xlu0 %2924
      %2926 = vrot.lane.b32.xlu0 %v2745, 8
      %v2927 = vpop.permute.xlu0 %2926
      %2928 = vrot.lane.b32.xlu0 %v2747, 8
      %v2929 = vpop.permute.xlu0 %2928
      %2930 = vrot.lane.b32.xlu0 %v2750, 8
      %v2931 = vpop.permute.xlu0 %2930
      %2932 = vrot.lane.b32.xlu0 %v2752, 8
      %v2933 = vpop.permute.xlu0 %2932
      %2934 = vrot.lane.b32.xlu0 %v2755, 8
      %v2935 = vpop.permute.xlu0 %2934
      %2936 = vrot.lane.b32.xlu0 %v2757, 8
      %v2937 = vpop.permute.xlu0 %2936
      %2938 = vrot.lane.b32.xlu0 %v2760, 8
      %v2939 = vpop.permute.xlu0 %2938
      %2940 = vrot.lane.b32.xlu0 %v2762, 8
      %v2941 = vpop.permute.xlu0 %2940
      %2942 = vrot.lane.b32.xlu0 %v2765, 8
      %v2943 = vpop.permute.xlu0 %2942
      %2944 = vrot.lane.b32.xlu0 %v2767, 8
      %v2945 = vpop.permute.xlu0 %2944
      %2946 = vrot.lane.b32.xlu0 %v2770, 8
      %v2947 = vpop.permute.xlu0 %2946
      %2948 = vrot.lane.b32.xlu0 %v2772, 8
      %v2949 = vpop.permute.xlu0 %2948
      %2950 = vrot.lane.b32.xlu0 %v2775, 8
      %v2951 = vpop.permute.xlu0 %2950
      %2952 = vrot.lane.b32.xlu0 %v2777, 8
      %v2953 = vpop.permute.xlu0 %2952
      %2954 = vrot.lane.b32.xlu0 %v2780, 8
      %v2955 = vpop.permute.xlu0 %2954
      %2956 = vrot.lane.b32.xlu0 %v2782, 8
      %v2957 = vpop.permute.xlu0 %2956
      %2958 = vrot.lane.b32.xlu0 %v2785, 8
      %v2959 = vpop.permute.xlu0 %2958
      %2960 = vrot.lane.b32.xlu0 %v2787, 8
      %v2961 = vpop.permute.xlu0 %2960
      %2962 = vrot.lane.b32.xlu0 %v2790, 8
      %v2963 = vpop.permute.xlu0 %2962
      %2964 = vrot.lane.b32.xlu0 %v2792, 8
      %v2965 = vpop.permute.xlu0 %2964
      %2966 = vrot.lane.b32.xlu0 %v2795, 8
      %v2967 = vpop.permute.xlu0 %2966
      %2968 = vrot.lane.b32.xlu0 %v2797, 8
      %v2969 = vpop.permute.xlu0 %2968
      %2970 = vrot.lane.b32.xlu0 %v2800, 8
      %v2971 = vpop.permute.xlu0 %2970
      %2972 = vrot.lane.b32.xlu0 %v2802, 8
      %v2973 = vpop.permute.xlu0 %2972
      %3006 = vrot.lane.b32.xlu0 %v2806, 16
      %v3007 = vpop.permute.xlu0 %3006
      %3008 = vrot.lane.b32.xlu0 %v2808, 16
      %v3009 = vpop.permute.xlu0 %3008
      %3010 = vrot.lane.b32.xlu0 %v2811, 16
      %v3011 = vpop.permute.xlu0 %3010
      %3012 = vrot.lane.b32.xlu0 %v2813, 16
      %v3013 = vpop.permute.xlu0 %3012
      %3014 = vrot.lane.b32.xlu0 %v2816, 16
      %v3015 = vpop.permute.xlu0 %3014
      %3016 = vrot.lane.b32.xlu0 %v2818, 16
      %v3017 = vpop.permute.xlu0 %3016
      %3018 = vrot.lane.b32.xlu0 %v2821, 16
      %v3019 = vpop.permute.xlu0 %3018
      %3020 = vrot.lane.b32.xlu0 %v2823, 16
      %v3021 = vpop.permute.xlu0 %3020
      %3022 = vrot.lane.b32.xlu0 %v2826, 16
      %v3023 = vpop.permute.xlu0 %3022
      %3024 = vrot.lane.b32.xlu0 %v2828, 16
      %v3025 = vpop.permute.xlu0 %3024
      %3026 = vrot.lane.b32.xlu0 %v2831, 16
      %v3027 = vpop.permute.xlu0 %3026
      %3028 = vrot.lane.b32.xlu0 %v2833, 16
      %v3029 = vpop.permute.xlu0 %3028
      %3030 = vrot.lane.b32.xlu0 %v2836, 16
      %v3031 = vpop.permute.xlu0 %3030
      %3032 = vrot.lane.b32.xlu0 %v2838, 16
      %v3033 = vpop.permute.xlu0 %3032
      %3034 = vrot.lane.b32.xlu0 %v2841, 16
      %v3035 = vpop.permute.xlu0 %3034
      %3036 = vrot.lane.b32.xlu0 %v2843, 16
      %v3037 = vpop.permute.xlu0 %3036
      %3038 = vrot.lane.b32.xlu0 %v2846, 16
      %v3039 = vpop.permute.xlu0 %3038
      %3040 = vrot.lane.b32.xlu0 %v2848, 16
      %v3041 = vpop.permute.xlu0 %3040
      %3042 = vrot.lane.b32.xlu0 %v2851, 16
      %v3043 = vpop.permute.xlu0 %3042
      %3044 = vrot.lane.b32.xlu0 %v2853, 16
      %v3045 = vpop.permute.xlu0 %3044
      %3046 = vrot.lane.b32.xlu0 %v2856, 16
      %v3047 = vpop.permute.xlu0 %3046
      %3048 = vrot.lane.b32.xlu0 %v2858, 16
      %v3049 = vpop.permute.xlu0 %3048
      %3050 = vrot.lane.b32.xlu0 %v2861, 16
      %v3051 = vpop.permute.xlu0 %3050
      %3052 = vrot.lane.b32.xlu0 %v2863, 16
      %v3053 = vpop.permute.xlu0 %3052
      %3054 = vrot.lane.b32.xlu0 %v2866, 16
      %v3055 = vpop.permute.xlu0 %3054
      %3056 = vrot.lane.b32.xlu0 %v2868, 16
      %v3057 = vpop.permute.xlu0 %3056
      %3058 = vrot.lane.b32.xlu0 %v2871, 16
      %v3059 = vpop.permute.xlu0 %3058
      %3060 = vrot.lane.b32.xlu0 %v2873, 16
      %v3061 = vpop.permute.xlu0 %3060
      %3062 = vrot.lane.b32.xlu0 %v2876, 16
      %v3063 = vpop.permute.xlu0 %3062
      %3064 = vrot.lane.b32.xlu0 %v2878, 16
      %v3065 = vpop.permute.xlu0 %3064
      %3066 = vrot.lane.b32.xlu0 %v2881, 16
      %v3067 = vpop.permute.xlu0 %3066
      %3068 = vrot.lane.b32.xlu0 %v2883, 16
      %v3069 = vpop.permute.xlu0 %3068
      %3102 = vrot.lane.b32.xlu0 %v2623, 24
      %v3103 = vpop.permute.xlu0 %3102
      %3104 = vrot.lane.b32.xlu0 %v2624, 24
      %v3105 = vpop.permute.xlu0 %3104
      %3106 = vrot.lane.b32.xlu0 %v2626, 24
      %v3107 = vpop.permute.xlu0 %3106
      %3108 = vrot.lane.b32.xlu0 %v2627, 24
      %v3109 = vpop.permute.xlu0 %3108
      %3110 = vrot.lane.b32.xlu0 %v2629, 24
      %v3111 = vpop.permute.xlu0 %3110
      %3112 = vrot.lane.b32.xlu0 %v2630, 24
      %v3113 = vpop.permute.xlu0 %3112
      %3114 = vrot.lane.b32.xlu0 %v2632, 24
      %v3115 = vpop.permute.xlu0 %3114
      %3116 = vrot.lane.b32.xlu0 %v2633, 24
      %v3117 = vpop.permute.xlu0 %3116
      %3118 = vrot.lane.b32.xlu0 %v2635, 24
      %v3119 = vpop.permute.xlu0 %3118
      %3120 = vrot.lane.b32.xlu0 %v2636, 24
      %v3121 = vpop.permute.xlu0 %3120
      %3122 = vrot.lane.b32.xlu0 %v2638, 24
      %v3123 = vpop.permute.xlu0 %3122
      %3124 = vrot.lane.b32.xlu0 %v2639, 24
      %v3125 = vpop.permute.xlu0 %3124
      %3126 = vrot.lane.b32.xlu0 %v2641, 24
      %v3127 = vpop.permute.xlu0 %3126
      %3128 = vrot.lane.b32.xlu0 %v2642, 24
      %v3129 = vpop.permute.xlu0 %3128
      %3130 = vrot.lane.b32.xlu0 %v2644, 24
      %v3131 = vpop.permute.xlu0 %3130
      %3132 = vrot.lane.b32.xlu0 %v2645, 24
      %v3133 = vpop.permute.xlu0 %3132
      %3134 = vrot.lane.b32.xlu0 %v2647, 24
      %v3135 = vpop.permute.xlu0 %3134
      %3136 = vrot.lane.b32.xlu0 %v2648, 24
      %v3137 = vpop.permute.xlu0 %3136
      %3138 = vrot.lane.b32.xlu0 %v2650, 24
      %v3139 = vpop.permute.xlu0 %3138
      %3140 = vrot.lane.b32.xlu0 %v2651, 24
      %v3141 = vpop.permute.xlu0 %3140
      %3142 = vrot.lane.b32.xlu0 %v2653, 24
      %v3143 = vpop.permute.xlu0 %3142
      %3144 = vrot.lane.b32.xlu0 %v2654, 24
      %v3145 = vpop.permute.xlu0 %3144
      %3146 = vrot.lane.b32.xlu0 %v2656, 24
      %v3147 = vpop.permute.xlu0 %3146
      %3148 = vrot.lane.b32.xlu0 %v2657, 24
      %v3149 = vpop.permute.xlu0 %3148
      %3150 = vrot.lane.b32.xlu0 %v2659, 24
      %v3151 = vpop.permute.xlu0 %3150
      %3152 = vrot.lane.b32.xlu0 %v2660, 24
      %v3153 = vpop.permute.xlu0 %3152
      %3154 = vrot.lane.b32.xlu0 %v2662, 24
      %v3155 = vpop.permute.xlu0 %3154
      %3156 = vrot.lane.b32.xlu0 %v2663, 24
      %v3157 = vpop.permute.xlu0 %3156
      %3158 = vrot.lane.b32.xlu0 %v2665, 24
      %v3159 = vpop.permute.xlu0 %3158
      %3160 = vrot.lane.b32.xlu0 %v2666, 24
      %v3161 = vpop.permute.xlu0 %3160
      %3162 = vrot.lane.b32.xlu0 %v2668, 24
      %v3163 = vpop.permute.xlu0 %3162
      %3164 = vrot.lane.b32.xlu0 %v2669, 24
      %v3165 = vpop.permute.xlu0 %3164
      %3198 = vrot.lane.b32.xlu0 %v2730, 32
      %v3199 = vpop.permute.xlu0 %3198
      %3200 = vrot.lane.b32.xlu0 %v2732, 32
      %v3201 = vpop.permute.xlu0 %3200
      %3202 = vrot.lane.b32.xlu0 %v2735, 32
      %v3203 = vpop.permute.xlu0 %3202
      %3204 = vrot.lane.b32.xlu0 %v2737, 32
      %v3205 = vpop.permute.xlu0 %3204
      %3206 = vrot.lane.b32.xlu0 %v2740, 32
      %v3207 = vpop.permute.xlu0 %3206
      %3208 = vrot.lane.b32.xlu0 %v2742, 32
      %v3209 = vpop.permute.xlu0 %3208
      %3210 = vrot.lane.b32.xlu0 %v2745, 32
      %v3211 = vpop.permute.xlu0 %3210
      %3212 = vrot.lane.b32.xlu0 %v2747, 32
      %v3213 = vpop.permute.xlu0 %3212
      %3214 = vrot.lane.b32.xlu0 %v2750, 32
      %v3215 = vpop.permute.xlu0 %3214
      %3216 = vrot.lane.b32.xlu0 %v2752, 32
      %v3217 = vpop.permute.xlu0 %3216
      %3218 = vrot.lane.b32.xlu0 %v2755, 32
      %v3219 = vpop.permute.xlu0 %3218
      %3220 = vrot.lane.b32.xlu0 %v2757, 32
      %v3221 = vpop.permute.xlu0 %3220
      %3222 = vrot.lane.b32.xlu0 %v2760, 32
      %v3223 = vpop.permute.xlu0 %3222
      %3224 = vrot.lane.b32.xlu0 %v2762, 32
      %v3225 = vpop.permute.xlu0 %3224
      %3226 = vrot.lane.b32.xlu0 %v2765, 32
      %v3227 = vpop.permute.xlu0 %3226
      %3228 = vrot.lane.b32.xlu0 %v2767, 32
      %v3229 = vpop.permute.xlu0 %3228
      %3230 = vrot.lane.b32.xlu0 %v2770, 32
      %v3231 = vpop.permute.xlu0 %3230
      %3232 = vrot.lane.b32.xlu0 %v2772, 32
      %v3233 = vpop.permute.xlu0 %3232
      %3234 = vrot.lane.b32.xlu0 %v2775, 32
      %v3235 = vpop.permute.xlu0 %3234
      %3236 = vrot.lane.b32.xlu0 %v2777, 32
      %v3237 = vpop.permute.xlu0 %3236
      %3238 = vrot.lane.b32.xlu0 %v2780, 32
      %v3239 = vpop.permute.xlu0 %3238
      %3240 = vrot.lane.b32.xlu0 %v2782, 32
      %v3241 = vpop.permute.xlu0 %3240
      %3242 = vrot.lane.b32.xlu0 %v2785, 32
      %v3243 = vpop.permute.xlu0 %3242
      %3244 = vrot.lane.b32.xlu0 %v2787, 32
      %v3245 = vpop.permute.xlu0 %3244
      %3246 = vrot.lane.b32.xlu0 %v2790, 32
      %v3247 = vpop.permute.xlu0 %3246
      %3248 = vrot.lane.b32.xlu0 %v2792, 32
      %v3249 = vpop.permute.xlu0 %3248
      %3250 = vrot.lane.b32.xlu0 %v2795, 32
      %v3251 = vpop.permute.xlu0 %3250
      %3252 = vrot.lane.b32.xlu0 %v2797, 32
      %v3253 = vpop.permute.xlu0 %3252
      %3254 = vrot.lane.b32.xlu0 %v2800, 32
      %v3255 = vpop.permute.xlu0 %3254
      %3256 = vrot.lane.b32.xlu0 %v2802, 32
      %v3257 = vpop.permute.xlu0 %3256
      %3258 = vrot.lane.b32.xlu0 %v2889, 32
      %v3259 = vpop.permute.xlu0 %3258
      %3260 = vrot.lane.b32.xlu0 %v2891, 32
      %v3261 = vpop.permute.xlu0 %3260
      %3294 = vrot.lane.b32.xlu0 %v2811, 40
      %v3295 = vpop.permute.xlu0 %3294
      %3296 = vrot.lane.b32.xlu0 %v2813, 40
      %v3297 = vpop.permute.xlu0 %3296
      %3298 = vrot.lane.b32.xlu0 %v2816, 40
      %v3299 = vpop.permute.xlu0 %3298
      %3300 = vrot.lane.b32.xlu0 %v2818, 40
      %v3301 = vpop.permute.xlu0 %3300
      %3302 = vrot.lane.b32.xlu0 %v2821, 40
      %v3303 = vpop.permute.xlu0 %3302
      %3304 = vrot.lane.b32.xlu0 %v2823, 40
      %v3305 = vpop.permute.xlu0 %3304
      %3306 = vrot.lane.b32.xlu0 %v2826, 40
      %v3307 = vpop.permute.xlu0 %3306
      %3308 = vrot.lane.b32.xlu0 %v2828, 40
      %v3309 = vpop.permute.xlu0 %3308
      %3310 = vrot.lane.b32.xlu0 %v2831, 40
      %v3311 = vpop.permute.xlu0 %3310
      %3312 = vrot.lane.b32.xlu0 %v2833, 40
      %v3313 = vpop.permute.xlu0 %3312
      %3314 = vrot.lane.b32.xlu0 %v2836, 40
      %v3315 = vpop.permute.xlu0 %3314
      %3316 = vrot.lane.b32.xlu0 %v2838, 40
      %v3317 = vpop.permute.xlu0 %3316
      %3318 = vrot.lane.b32.xlu0 %v2841, 40
      %v3319 = vpop.permute.xlu0 %3318
      %3320 = vrot.lane.b32.xlu0 %v2843, 40
      %v3321 = vpop.permute.xlu0 %3320
      %3322 = vrot.lane.b32.xlu0 %v2846, 40
      %v3323 = vpop.permute.xlu0 %3322
      %3324 = vrot.lane.b32.xlu0 %v2848, 40
      %v3325 = vpop.permute.xlu0 %3324
      %3326 = vrot.lane.b32.xlu0 %v2851, 40
      %v3327 = vpop.permute.xlu0 %3326
      %3328 = vrot.lane.b32.xlu0 %v2853, 40
      %v3329 = vpop.permute.xlu0 %3328
      %3330 = vrot.lane.b32.xlu0 %v2856, 40
      %v3331 = vpop.permute.xlu0 %3330
      %3332 = vrot.lane.b32.xlu0 %v2858, 40
      %v3333 = vpop.permute.xlu0 %3332
      %3334 = vrot.lane.b32.xlu0 %v2861, 40
      %v3335 = vpop.permute.xlu0 %3334
      %3336 = vrot.lane.b32.xlu0 %v2863, 40
      %v3337 = vpop.permute.xlu0 %3336
      %3338 = vrot.lane.b32.xlu0 %v2866, 40
      %v3339 = vpop.permute.xlu0 %3338
      %3340 = vrot.lane.b32.xlu0 %v2868, 40
      %v3341 = vpop.permute.xlu0 %3340
      %3342 = vrot.lane.b32.xlu0 %v2871, 40
      %v3343 = vpop.permute.xlu0 %3342
      %3344 = vrot.lane.b32.xlu0 %v2873, 40
      %v3345 = vpop.permute.xlu0 %3344
      %3346 = vrot.lane.b32.xlu0 %v2876, 40
      %v3347 = vpop.permute.xlu0 %3346
      %3348 = vrot.lane.b32.xlu0 %v2878, 40
      %v3349 = vpop.permute.xlu0 %3348
      %3350 = vrot.lane.b32.xlu0 %v2881, 40
      %v3351 = vpop.permute.xlu0 %3350
      %3352 = vrot.lane.b32.xlu0 %v2883, 40
      %v3353 = vpop.permute.xlu0 %3352
      %3354 = vrot.lane.b32.xlu0 %v2894, 40
      %v3355 = vpop.permute.xlu0 %3354
      %3356 = vrot.lane.b32.xlu0 %v2896, 40
      %v3357 = vpop.permute.xlu0 %3356
      %3390 = vrot.lane.b32.xlu0 %v2626, 48
      %v3391 = vpop.permute.xlu0 %3390
      %3392 = vrot.lane.b32.xlu0 %v2627, 48
      %v3393 = vpop.permute.xlu0 %3392
      %3394 = vrot.lane.b32.xlu0 %v2629, 48
      %v3395 = vpop.permute.xlu0 %3394
      %3396 = vrot.lane.b32.xlu0 %v2630, 48
      %v3397 = vpop.permute.xlu0 %3396
      %3398 = vrot.lane.b32.xlu0 %v2632, 48
      %v3399 = vpop.permute.xlu0 %3398
      %3400 = vrot.lane.b32.xlu0 %v2633, 48
      %v3401 = vpop.permute.xlu0 %3400
      %3402 = vrot.lane.b32.xlu0 %v2635, 48
      %v3403 = vpop.permute.xlu0 %3402
      %3404 = vrot.lane.b32.xlu0 %v2636, 48
      %v3405 = vpop.permute.xlu0 %3404
      %3406 = vrot.lane.b32.xlu0 %v2638, 48
      %v3407 = vpop.permute.xlu0 %3406
      %3408 = vrot.lane.b32.xlu0 %v2639, 48
      %v3409 = vpop.permute.xlu0 %3408
      %3410 = vrot.lane.b32.xlu0 %v2641, 48
      %v3411 = vpop.permute.xlu0 %3410
      %3412 = vrot.lane.b32.xlu0 %v2642, 48
      %v3413 = vpop.permute.xlu0 %3412
      %3414 = vrot.lane.b32.xlu0 %v2644, 48
      %v3415 = vpop.permute.xlu0 %3414
      %3416 = vrot.lane.b32.xlu0 %v2645, 48
      %v3417 = vpop.permute.xlu0 %3416
      %3418 = vrot.lane.b32.xlu0 %v2647, 48
      %v3419 = vpop.permute.xlu0 %3418
      %3420 = vrot.lane.b32.xlu0 %v2648, 48
      %v3421 = vpop.permute.xlu0 %3420
      %3422 = vrot.lane.b32.xlu0 %v2650, 48
      %v3423 = vpop.permute.xlu0 %3422
      %3424 = vrot.lane.b32.xlu0 %v2651, 48
      %v3425 = vpop.permute.xlu0 %3424
      %3426 = vrot.lane.b32.xlu0 %v2653, 48
      %v3427 = vpop.permute.xlu0 %3426
      %3428 = vrot.lane.b32.xlu0 %v2654, 48
      %v3429 = vpop.permute.xlu0 %3428
      %3430 = vrot.lane.b32.xlu0 %v2656, 48
      %v3431 = vpop.permute.xlu0 %3430
      %3432 = vrot.lane.b32.xlu0 %v2657, 48
      %v3433 = vpop.permute.xlu0 %3432
      %3434 = vrot.lane.b32.xlu0 %v2659, 48
      %v3435 = vpop.permute.xlu0 %3434
      %3436 = vrot.lane.b32.xlu0 %v2660, 48
      %v3437 = vpop.permute.xlu0 %3436
      %3438 = vrot.lane.b32.xlu0 %v2662, 48
      %v3439 = vpop.permute.xlu0 %3438
      %3440 = vrot.lane.b32.xlu0 %v2663, 48
      %v3441 = vpop.permute.xlu0 %3440
      %3442 = vrot.lane.b32.xlu0 %v2665, 48
      %v3443 = vpop.permute.xlu0 %3442
      %3444 = vrot.lane.b32.xlu0 %v2666, 48
      %v3445 = vpop.permute.xlu0 %3444
      %3446 = vrot.lane.b32.xlu0 %v2668, 48
      %v3447 = vpop.permute.xlu0 %3446
      %3448 = vrot.lane.b32.xlu0 %v2669, 48
      %v3449 = vpop.permute.xlu0 %3448
      %3450 = vrot.lane.b32.xlu0 %v2671, 48
      %v3451 = vpop.permute.xlu0 %3450
      %3452 = vrot.lane.b32.xlu0 %v2672, 48
      %v3453 = vpop.permute.xlu0 %3452
      %3486 = vrot.lane.b32.xlu0 %v2735, 56
      %v3487 = vpop.permute.xlu0 %3486
      %3488 = vrot.lane.b32.xlu0 %v2737, 56
      %v3489 = vpop.permute.xlu0 %3488
      %3490 = vrot.lane.b32.xlu0 %v2740, 56
      %v3491 = vpop.permute.xlu0 %3490
      %3492 = vrot.lane.b32.xlu0 %v2742, 56
      %v3493 = vpop.permute.xlu0 %3492
      %3494 = vrot.lane.b32.xlu0 %v2745, 56
      %v3495 = vpop.permute.xlu0 %3494
      %3496 = vrot.lane.b32.xlu0 %v2747, 56
      %v3497 = vpop.permute.xlu0 %3496
      %3498 = vrot.lane.b32.xlu0 %v2750, 56
      %v3499 = vpop.permute.xlu0 %3498
      %3500 = vrot.lane.b32.xlu0 %v2752, 56
      %v3501 = vpop.permute.xlu0 %3500
      %3502 = vrot.lane.b32.xlu0 %v2755, 56
      %v3503 = vpop.permute.xlu0 %3502
      %3504 = vrot.lane.b32.xlu0 %v2757, 56
      %v3505 = vpop.permute.xlu0 %3504
      %3506 = vrot.lane.b32.xlu0 %v2760, 56
      %v3507 = vpop.permute.xlu0 %3506
      %3508 = vrot.lane.b32.xlu0 %v2762, 56
      %v3509 = vpop.permute.xlu0 %3508
      %3510 = vrot.lane.b32.xlu0 %v2765, 56
      %v3511 = vpop.permute.xlu0 %3510
      %3512 = vrot.lane.b32.xlu0 %v2767, 56
      %v3513 = vpop.permute.xlu0 %3512
      %3514 = vrot.lane.b32.xlu0 %v2770, 56
      %v3515 = vpop.permute.xlu0 %3514
      %3516 = vrot.lane.b32.xlu0 %v2772, 56
      %v3517 = vpop.permute.xlu0 %3516
      %3518 = vrot.lane.b32.xlu0 %v2775, 56
      %v3519 = vpop.permute.xlu0 %3518
      %3520 = vrot.lane.b32.xlu0 %v2777, 56
      %v3521 = vpop.permute.xlu0 %3520
      %3522 = vrot.lane.b32.xlu0 %v2780, 56
      %v3523 = vpop.permute.xlu0 %3522
      %3524 = vrot.lane.b32.xlu0 %v2782, 56
      %v3525 = vpop.permute.xlu0 %3524
      %3526 = vrot.lane.b32.xlu0 %v2785, 56
      %v3527 = vpop.permute.xlu0 %3526
      %3528 = vrot.lane.b32.xlu0 %v2787, 56
      %v3529 = vpop.permute.xlu0 %3528
      %3530 = vrot.lane.b32.xlu0 %v2790, 56
      %v3531 = vpop.permute.xlu0 %3530
      %3532 = vrot.lane.b32.xlu0 %v2792, 56
      %v3533 = vpop.permute.xlu0 %3532
      %3534 = vrot.lane.b32.xlu0 %v2795, 56
      %v3535 = vpop.permute.xlu0 %3534
      %3536 = vrot.lane.b32.xlu0 %v2797, 56
      %v3537 = vpop.permute.xlu0 %3536
      %3538 = vrot.lane.b32.xlu0 %v2800, 56
      %v3539 = vpop.permute.xlu0 %3538
      %3540 = vrot.lane.b32.xlu0 %v2802, 56
      %v3541 = vpop.permute.xlu0 %3540
      %3542 = vrot.lane.b32.xlu0 %v2889, 56
      %v3543 = vpop.permute.xlu0 %3542
      %3544 = vrot.lane.b32.xlu0 %v2891, 56
      %v3545 = vpop.permute.xlu0 %3544
      %3546 = vrot.lane.b32.xlu0 %v2902, 56
      %v3547 = vpop.permute.xlu0 %3546
      %3548 = vrot.lane.b32.xlu0 %v2904, 56
      %v3549 = vpop.permute.xlu0 %3548
      %3582 = vrot.lane.b32.xlu0 %v2816, 64
      %v3583 = vpop.permute.xlu0 %3582
      %3584 = vrot.lane.b32.xlu0 %v2818, 64
      %v3585 = vpop.permute.xlu0 %3584
      %3586 = vrot.lane.b32.xlu0 %v2821, 64
      %v3587 = vpop.permute.xlu0 %3586
      %3588 = vrot.lane.b32.xlu0 %v2823, 64
      %v3589 = vpop.permute.xlu0 %3588
      %3590 = vrot.lane.b32.xlu0 %v2826, 64
      %v3591 = vpop.permute.xlu0 %3590
      %3592 = vrot.lane.b32.xlu0 %v2828, 64
      %v3593 = vpop.permute.xlu0 %3592
      %3594 = vrot.lane.b32.xlu0 %v2831, 64
      %v3595 = vpop.permute.xlu0 %3594
      %3596 = vrot.lane.b32.xlu0 %v2833, 64
      %v3597 = vpop.permute.xlu0 %3596
      %3598 = vrot.lane.b32.xlu0 %v2836, 64
      %v3599 = vpop.permute.xlu0 %3598
      %3600 = vrot.lane.b32.xlu0 %v2838, 64
      %v3601 = vpop.permute.xlu0 %3600
      %3602 = vrot.lane.b32.xlu0 %v2841, 64
      %v3603 = vpop.permute.xlu0 %3602
      %3604 = vrot.lane.b32.xlu0 %v2843, 64
      %v3605 = vpop.permute.xlu0 %3604
      %3606 = vrot.lane.b32.xlu0 %v2846, 64
      %v3607 = vpop.permute.xlu0 %3606
      %3608 = vrot.lane.b32.xlu0 %v2848, 64
      %v3609 = vpop.permute.xlu0 %3608
      %3610 = vrot.lane.b32.xlu0 %v2851, 64
      %v3611 = vpop.permute.xlu0 %3610
      %3612 = vrot.lane.b32.xlu0 %v2853, 64
      %v3613 = vpop.permute.xlu0 %3612
      %3614 = vrot.lane.b32.xlu0 %v2856, 64
      %v3615 = vpop.permute.xlu0 %3614
      %3616 = vrot.lane.b32.xlu0 %v2858, 64
      %v3617 = vpop.permute.xlu0 %3616
      %3618 = vrot.lane.b32.xlu0 %v2861, 64
      %v3619 = vpop.permute.xlu0 %3618
      %3620 = vrot.lane.b32.xlu0 %v2863, 64
      %v3621 = vpop.permute.xlu0 %3620
      %3622 = vrot.lane.b32.xlu0 %v2866, 64
      %v3623 = vpop.permute.xlu0 %3622
      %3624 = vrot.lane.b32.xlu0 %v2868, 64
      %v3625 = vpop.permute.xlu0 %3624
      %3626 = vrot.lane.b32.xlu0 %v2871, 64
      %v3627 = vpop.permute.xlu0 %3626
      %3628 = vrot.lane.b32.xlu0 %v2873, 64
      %v3629 = vpop.permute.xlu0 %3628
      %3630 = vrot.lane.b32.xlu0 %v2876, 64
      %v3631 = vpop.permute.xlu0 %3630
      %3632 = vrot.lane.b32.xlu0 %v2878, 64
      %v3633 = vpop.permute.xlu0 %3632
      %3634 = vrot.lane.b32.xlu0 %v2881, 64
      %v3635 = vpop.permute.xlu0 %3634
      %3636 = vrot.lane.b32.xlu0 %v2883, 64
      %v3637 = vpop.permute.xlu0 %3636
      %3638 = vrot.lane.b32.xlu0 %v2894, 64
      %v3639 = vpop.permute.xlu0 %3638
      %3640 = vrot.lane.b32.xlu0 %v2896, 64
      %v3641 = vpop.permute.xlu0 %3640
      %3642 = vrot.lane.b32.xlu0 %v2907, 64
      %v3643 = vpop.permute.xlu0 %3642
      %3644 = vrot.lane.b32.xlu0 %v2909, 64
      %v3645 = vpop.permute.xlu0 %3644
      %v3678 = vsel %vm1427, %v2620, %v2911
      %v3679 = vsel %vm1427, %v2621, %v2913
      %v3680 = vsel %vm1427, %v2623, %v2915
      %v3681 = vsel %vm1427, %v2624, %v2917
      %v3682 = vsel %vm1427, %v2626, %v2919
      %v3683 = vsel %vm1427, %v2627, %v2921
      %v3684 = vsel %vm1427, %v2629, %v2923
      %v3685 = vsel %vm1427, %v2630, %v2925
      %v3686 = vsel %vm1427, %v2632, %v2927
      %v3687 = vsel %vm1427, %v2633, %v2929
      %v3688 = vsel %vm1427, %v2635, %v2931
      %v3689 = vsel %vm1427, %v2636, %v2933
      %v3690 = vsel %vm1427, %v2638, %v2935
      %v3691 = vsel %vm1427, %v2639, %v2937
      %v3692 = vsel %vm1427, %v2641, %v2939
      %v3693 = vsel %vm1427, %v2642, %v2941
      %v3694 = vsel %vm1427, %v2644, %v2943
      %v3695 = vsel %vm1427, %v2645, %v2945
      %v3696 = vsel %vm1427, %v2647, %v2947
      %v3697 = vsel %vm1427, %v2648, %v2949
      %v3698 = vsel %vm1427, %v2650, %v2951
      %v3699 = vsel %vm1427, %v2651, %v2953
      %v3700 = vsel %vm1427, %v2653, %v2955
      %v3701 = vsel %vm1427, %v2654, %v2957
      %v3702 = vsel %vm1427, %v2656, %v2959
      %v3703 = vsel %vm1427, %v2657, %v2961
      %v3704 = vsel %vm1427, %v2659, %v2963
      %v3705 = vsel %vm1427, %v2660, %v2965
      %v3706 = vsel %vm1427, %v2662, %v2967
      %v3707 = vsel %vm1427, %v2663, %v2969
      %v3708 = vsel %vm1427, %v2665, %v2971
      %v3709 = vsel %vm1427, %v2666, %v2973
      %v3710 = vsel %vm1493, %v3678, %v3007
      %v3711 = vsel %vm1493, %v3679, %v3009
      %v3712 = vsel %vm1493, %v3680, %v3011
      %v3713 = vsel %vm1493, %v3681, %v3013
      %v3714 = vsel %vm1493, %v3682, %v3015
      %v3715 = vsel %vm1493, %v3683, %v3017
      %v3716 = vsel %vm1493, %v3684, %v3019
      %v3717 = vsel %vm1493, %v3685, %v3021
      %v3718 = vsel %vm1493, %v3686, %v3023
      %v3719 = vsel %vm1493, %v3687, %v3025
      %v3720 = vsel %vm1493, %v3688, %v3027
      %v3721 = vsel %vm1493, %v3689, %v3029
      %v3722 = vsel %vm1493, %v3690, %v3031
      %v3723 = vsel %vm1493, %v3691, %v3033
      %v3724 = vsel %vm1493, %v3692, %v3035
      %v3725 = vsel %vm1493, %v3693, %v3037
      %v3726 = vsel %vm1493, %v3694, %v3039
      %v3727 = vsel %vm1493, %v3695, %v3041
      %v3728 = vsel %vm1493, %v3696, %v3043
      %v3729 = vsel %vm1493, %v3697, %v3045
      %v3730 = vsel %vm1493, %v3698, %v3047
      %v3731 = vsel %vm1493, %v3699, %v3049
      %v3732 = vsel %vm1493, %v3700, %v3051
      %v3733 = vsel %vm1493, %v3701, %v3053
      %v3734 = vsel %vm1493, %v3702, %v3055
      %v3735 = vsel %vm1493, %v3703, %v3057
      %v3736 = vsel %vm1493, %v3704, %v3059
      %v3737 = vsel %vm1493, %v3705, %v3061
      %v3738 = vsel %vm1493, %v3706, %v3063
      %v3739 = vsel %vm1493, %v3707, %v3065
      %v3740 = vsel %vm1493, %v3708, %v3067
      %v3741 = vsel %vm1493, %v3709, %v3069
      %v3742 = vsel %vm1559, %v3710, %v3103
      %v3743 = vsel %vm1559, %v3711, %v3105
      %v3744 = vsel %vm1559, %v3712, %v3107
      %v3745 = vsel %vm1559, %v3713, %v3109
      %v3746 = vsel %vm1559, %v3714, %v3111
      %v3747 = vsel %vm1559, %v3715, %v3113
      %v3748 = vsel %vm1559, %v3716, %v3115
      %v3749 = vsel %vm1559, %v3717, %v3117
      %v3750 = vsel %vm1559, %v3718, %v3119
      %v3751 = vsel %vm1559, %v3719, %v3121
      %v3752 = vsel %vm1559, %v3720, %v3123
      %v3753 = vsel %vm1559, %v3721, %v3125
      %v3754 = vsel %vm1559, %v3722, %v3127
      %v3755 = vsel %vm1559, %v3723, %v3129
      %v3756 = vsel %vm1559, %v3724, %v3131
      %v3757 = vsel %vm1559, %v3725, %v3133
      %v3758 = vsel %vm1559, %v3726, %v3135
      %v3759 = vsel %vm1559, %v3727, %v3137
      %v3760 = vsel %vm1559, %v3728, %v3139
      %v3761 = vsel %vm1559, %v3729, %v3141
      %v3762 = vsel %vm1559, %v3730, %v3143
      %v3763 = vsel %vm1559, %v3731, %v3145
      %v3764 = vsel %vm1559, %v3732, %v3147
      %v3765 = vsel %vm1559, %v3733, %v3149
      %v3766 = vsel %vm1559, %v3734, %v3151
      %v3767 = vsel %vm1559, %v3735, %v3153
      %v3768 = vsel %vm1559, %v3736, %v3155
      %v3769 = vsel %vm1559, %v3737, %v3157
      %v3770 = vsel %vm1559, %v3738, %v3159
      %v3771 = vsel %vm1559, %v3739, %v3161
      %v3772 = vsel %vm1559, %v3740, %v3163
      %v3773 = vsel %vm1559, %v3741, %v3165
      %v3774 = vsel %vm1625, %v3742, %v3199
      %v3775 = vsel %vm1625, %v3743, %v3201
      %v3776 = vsel %vm1625, %v3744, %v3203
      %v3777 = vsel %vm1625, %v3745, %v3205
      %v3778 = vsel %vm1625, %v3746, %v3207
      %v3779 = vsel %vm1625, %v3747, %v3209
      %v3780 = vsel %vm1625, %v3748, %v3211
      %v3781 = vsel %vm1625, %v3749, %v3213
      %v3782 = vsel %vm1625, %v3750, %v3215
      %v3783 = vsel %vm1625, %v3751, %v3217
      %v3784 = vsel %vm1625, %v3752, %v3219
      %v3785 = vsel %vm1625, %v3753, %v3221
      %v3786 = vsel %vm1625, %v3754, %v3223
      %v3787 = vsel %vm1625, %v3755, %v3225
      %v3788 = vsel %vm1625, %v3756, %v3227
      %v3789 = vsel %vm1625, %v3757, %v3229
      %v3790 = vsel %vm1625, %v3758, %v3231
      %v3791 = vsel %vm1625, %v3759, %v3233
      %v3792 = vsel %vm1625, %v3760, %v3235
      %v3793 = vsel %vm1625, %v3761, %v3237
      %v3794 = vsel %vm1625, %v3762, %v3239
      %v3795 = vsel %vm1625, %v3763, %v3241
      %v3796 = vsel %vm1625, %v3764, %v3243
      %v3797 = vsel %vm1625, %v3765, %v3245
      %v3798 = vsel %vm1625, %v3766, %v3247
      %v3799 = vsel %vm1625, %v3767, %v3249
      %v3800 = vsel %vm1625, %v3768, %v3251
      %v3801 = vsel %vm1625, %v3769, %v3253
      %v3802 = vsel %vm1625, %v3770, %v3255
      %v3803 = vsel %vm1625, %v3771, %v3257
      %v3804 = vsel %vm1625, %v3772, %v3259
      %v3805 = vsel %vm1625, %v3773, %v3261
      %vm3806 = vcmask 326656
      %v3807 = vsel %vm3806, %v3774, %v3295
      %v3808 = vsel %vm3806, %v3775, %v3297
      %v3809 = vsel %vm3806, %v3776, %v3299
      %v3810 = vsel %vm3806, %v3777, %v3301
      %v3811 = vsel %vm3806, %v3778, %v3303
      %v3812 = vsel %vm3806, %v3779, %v3305
      %v3813 = vsel %vm3806, %v3780, %v3307
      %v3814 = vsel %vm3806, %v3781, %v3309
      %v3815 = vsel %vm3806, %v3782, %v3311
      %v3816 = vsel %vm3806, %v3783, %v3313
      %v3817 = vsel %vm3806, %v3784, %v3315
      %v3818 = vsel %vm3806, %v3785, %v3317
      %v3819 = vsel %vm3806, %v3786, %v3319
      %v3820 = vsel %vm3806, %v3787, %v3321
      %v3821 = vsel %vm3806, %v3788, %v3323
      %v3822 = vsel %vm3806, %v3789, %v3325
      %v3823 = vsel %vm3806, %v3790, %v3327
      %v3824 = vsel %vm3806, %v3791, %v3329
      %v3825 = vsel %vm3806, %v3792, %v3331
      %v3826 = vsel %vm3806, %v3793, %v3333
      %v3827 = vsel %vm3806, %v3794, %v3335
      %v3828 = vsel %vm3806, %v3795, %v3337
      %v3829 = vsel %vm3806, %v3796, %v3339
      %v3830 = vsel %vm3806, %v3797, %v3341
      %v3831 = vsel %vm3806, %v3798, %v3343
      %v3832 = vsel %vm3806, %v3799, %v3345
      %v3833 = vsel %vm3806, %v3800, %v3347
      %v3834 = vsel %vm3806, %v3801, %v3349
      %v3835 = vsel %vm3806, %v3802, %v3351
      %v3836 = vsel %vm3806, %v3803, %v3353
      %v3837 = vsel %vm3806, %v3804, %v3355
      %v3838 = vsel %vm3806, %v3805, %v3357
      %vm3839 = vcmask 392192
      %v3840 = vsel %vm3839, %v3807, %v3391
      %v3841 = vsel %vm3839, %v3808, %v3393
      %v3842 = vsel %vm3839, %v3809, %v3395
      %v3843 = vsel %vm3839, %v3810, %v3397
      %v3844 = vsel %vm3839, %v3811, %v3399
      %v3845 = vsel %vm3839, %v3812, %v3401
      %v3846 = vsel %vm3839, %v3813, %v3403
      %v3847 = vsel %vm3839, %v3814, %v3405
      %v3848 = vsel %vm3839, %v3815, %v3407
      %v3849 = vsel %vm3839, %v3816, %v3409
      %v3850 = vsel %vm3839, %v3817, %v3411
      %v3851 = vsel %vm3839, %v3818, %v3413
      %v3852 = vsel %vm3839, %v3819, %v3415
      %v3853 = vsel %vm3839, %v3820, %v3417
      %v3854 = vsel %vm3839, %v3821, %v3419
      %v3855 = vsel %vm3839, %v3822, %v3421
      %v3856 = vsel %vm3839, %v3823, %v3423
      %v3857 = vsel %vm3839, %v3824, %v3425
      %v3858 = vsel %vm3839, %v3825, %v3427
      %v3859 = vsel %vm3839, %v3826, %v3429
      %v3860 = vsel %vm3839, %v3827, %v3431
      %v3861 = vsel %vm3839, %v3828, %v3433
      %v3862 = vsel %vm3839, %v3829, %v3435
      %v3863 = vsel %vm3839, %v3830, %v3437
      %v3864 = vsel %vm3839, %v3831, %v3439
      %v3865 = vsel %vm3839, %v3832, %v3441
      %v3866 = vsel %vm3839, %v3833, %v3443
      %v3867 = vsel %vm3839, %v3834, %v3445
      %v3868 = vsel %vm3839, %v3835, %v3447
      %v3869 = vsel %vm3839, %v3836, %v3449
      %v3870 = vsel %vm3839, %v3837, %v3451
      %v3871 = vsel %vm3839, %v3838, %v3453
      %vm3872 = vcmask 457728
      %v3873 = vsel %vm3872, %v3840, %v3487
      %v3874 = vsel %vm3872, %v3841, %v3489
      %v3875 = vsel %vm3872, %v3842, %v3491
      %v3876 = vsel %vm3872, %v3843, %v3493
      %v3877 = vsel %vm3872, %v3844, %v3495
      %v3878 = vsel %vm3872, %v3845, %v3497
      %v3879 = vsel %vm3872, %v3846, %v3499
      %v3880 = vsel %vm3872, %v3847, %v3501
      %v3881 = vsel %vm3872, %v3848, %v3503
      %v3882 = vsel %vm3872, %v3849, %v3505
      %v3883 = vsel %vm3872, %v3850, %v3507
      %v3884 = vsel %vm3872, %v3851, %v3509
      %v3885 = vsel %vm3872, %v3852, %v3511
      %v3886 = vsel %vm3872, %v3853, %v3513
      %v3887 = vsel %vm3872, %v3854, %v3515
      %v3888 = vsel %vm3872, %v3855, %v3517
      %v3889 = vsel %vm3872, %v3856, %v3519
      %v3890 = vsel %vm3872, %v3857, %v3521
      %v3891 = vsel %vm3872, %v3858, %v3523
      %v3892 = vsel %vm3872, %v3859, %v3525
      %v3893 = vsel %vm3872, %v3860, %v3527
      %v3894 = vsel %vm3872, %v3861, %v3529
      %v3895 = vsel %vm3872, %v3862, %v3531
      %v3896 = vsel %vm3872, %v3863, %v3533
      %v3897 = vsel %vm3872, %v3864, %v3535
      %v3898 = vsel %vm3872, %v3865, %v3537
      %v3899 = vsel %vm3872, %v3866, %v3539
      %v3900 = vsel %vm3872, %v3867, %v3541
      %v3901 = vsel %vm3872, %v3868, %v3543
      %v3902 = vsel %vm3872, %v3869, %v3545
      %v3903 = vsel %vm3872, %v3870, %v3547
      %v3904 = vsel %vm3872, %v3871, %v3549
      %vm3905 = vcmask 523264
      %v3906 = vsel %vm3905, %v3873, %v3583
      %v3907 = vsel %vm3905, %v3874, %v3585
      %v3908 = vsel %vm3905, %v3875, %v3587
      %v3909 = vsel %vm3905, %v3876, %v3589
      %v3910 = vsel %vm3905, %v3877, %v3591
      %v3911 = vsel %vm3905, %v3878, %v3593
      %v3912 = vsel %vm3905, %v3879, %v3595
      %v3913 = vsel %vm3905, %v3880, %v3597
      %v3914 = vsel %vm3905, %v3881, %v3599
      %v3915 = vsel %vm3905, %v3882, %v3601
      %v3916 = vsel %vm3905, %v3883, %v3603
      %v3917 = vsel %vm3905, %v3884, %v3605
      %v3918 = vsel %vm3905, %v3885, %v3607
      %v3919 = vsel %vm3905, %v3886, %v3609
      %v3920 = vsel %vm3905, %v3887, %v3611
      %v3921 = vsel %vm3905, %v3888, %v3613
      %v3922 = vsel %vm3905, %v3889, %v3615
      %v3923 = vsel %vm3905, %v3890, %v3617
      %v3924 = vsel %vm3905, %v3891, %v3619
      %v3925 = vsel %vm3905, %v3892, %v3621
      %v3926 = vsel %vm3905, %v3893, %v3623
      %v3927 = vsel %vm3905, %v3894, %v3625
      %v3928 = vsel %vm3905, %v3895, %v3627
      %v3929 = vsel %vm3905, %v3896, %v3629
      %v3930 = vsel %vm3905, %v3897, %v3631
      %v3931 = vsel %vm3905, %v3898, %v3633
      %v3932 = vsel %vm3905, %v3899, %v3635
      %v3933 = vsel %vm3905, %v3900, %v3637
      %v3934 = vsel %vm3905, %v3901, %v3639
      %v3935 = vsel %vm3905, %v3902, %v3641
      %v3936 = vsel %vm3905, %v3903, %v3643
      %v3937 = vsel %vm3905, %v3904, %v3645
      %v3938 = vpack.c.bf16 %v3907, %v3906
      %v3939 = vpack.c.bf16 %v3909, %v3908
      %v3940 = vpack.c.bf16 %v3911, %v3910
      %v3941 = vpack.c.bf16 %v3913, %v3912
      %v3942 = vpack.c.bf16 %v3915, %v3914
      %v3943 = vpack.c.bf16 %v3917, %v3916
      %v3944 = vpack.c.bf16 %v3919, %v3918
      %v3945 = vpack.c.bf16 %v3921, %v3920
      %v3946 = vpack.c.bf16 %v3923, %v3922
      %v3947 = vpack.c.bf16 %v3925, %v3924
      %v3948 = vpack.c.bf16 %v3927, %v3926
      %v3949 = vpack.c.bf16 %v3929, %v3928
      %v3950 = vpack.c.bf16 %v3931, %v3930
      %v3951 = vpack.c.bf16 %v3933, %v3932
      %v3952 = vpack.c.bf16 %v3935, %v3934
      %v3953 = vpack.c.bf16 %v3937, %v3936
      %v3954 = vld [vmem:[%s3] sm:$0xf]
      %v3955 = vld [vmem:[%s3 + $0x4] sm:$0xf]
      %v3956 = vld [vmem:[%s3 + $0x8] sm:$0xf]
      %v3957 = vld [vmem:[%s3 + $0xc] sm:$0xf]
      %v3958 = vld [vmem:[%s3 + $0x10] sm:$0xf]
      %v3959 = vld [vmem:[%s3 + $0x14] sm:$0xf]
      %v3960 = vld [vmem:[%s3 + $0x18] sm:$0xf]
      %v3961 = vld [vmem:[%s3 + $0x1c] sm:$0xf]
      %v3962 = vld [vmem:[%s3 + $0x20] sm:$0xf]
      %v3972 = vunpack.c.l.b16 %v3954
      %v3973 = vunpack.c.l.b16 %v3955
      %v3974 = vunpack.c.l.b16 %v3956
      %v3975 = vunpack.c.l.b16 %v3957
      %v3976 = vunpack.c.l.b16 %v3958
      %v3977 = vunpack.c.l.b16 %v3959
      %v3978 = vunpack.c.l.b16 %v3960
      %v3979 = vunpack.c.l.b16 %v3961
      %v3980 = vunpack.c.l.b16 %v3962
      %v3981 = vpack.c.b16 %v3973, %v3972
      %v3982 = vpack.c.b16 %v3975, %v3974
      %v3983 = vpack.c.b16 %v3977, %v3976
      %v3984 = vpack.c.b16 %v3979, %v3978
      %v3985 = vpack.c.b16 %v3980, %v3980
      %vm3990 = vcmask 588800
      %v3992 = vsel %vm3990, %v3938, 0
      %v3995 = vsel %vm3990, %v3939, 0
      %v3998 = vsel %vm3990, %v3940, 0
      %v4001 = vsel %vm3990, %v3941, 0
      %v4004 = vsel %vm3990, %v3942, 0
      %v4007 = vsel %vm3990, %v3943, 0
      %v4010 = vsel %vm3990, %v3944, 0
      %v4013 = vsel %vm3990, %v3945, 0
      %v4016 = vsel %vm3990, %v3946, 0
      %v4019 = vsel %vm3990, %v3947, 0
      %v4022 = vsel %vm3990, %v3948, 0
      %v4025 = vsel %vm3990, %v3949, 0
      %v4028 = vsel %vm3990, %v3950, 0
      %v4031 = vsel %vm3990, %v3951, 0
      %v4034 = vsel %vm3990, %v3952, 0
      %v4037 = vsel %vm3990, %v3953, 0
      %v4040 = vsel %vm2032, %v3985, 0
      %4042 = vmatprep.subr.bf16.mxu0 0
      %4043 = vmatpush1.bf16.msra.mxu0 0
      %4044 = vmatprep.subr.bf16.mxu0 0
      %4045 = vmatpush1.bf16.msra.mxu0 0
      %4046 = vmatprep.subr.bf16.mxu0 0
      %4047 = vmatpush1.bf16.msra.mxu0 0
      %4048 = vmatprep.subr.bf16.mxu0 0
      %4049 = vmatpush1.bf16.msra.mxu0 %v4040
      %4050 = vmatprep.subr.bf16.mxu0 0
      %4051 = vmatpush1.bf16.msra.mxu0 %v3984
      %4052 = vmatprep.subr.bf16.mxu0 0
      %4053 = vmatpush1.bf16.msra.mxu0 %v3983
      %4054 = vmatprep.subr.bf16.mxu0 0
      %4055 = vmatpush1.bf16.msra.mxu0 %v3982
      %4056 = vmatprep.subr.bf16.mxu0 0
      %4057 = vmatpush1.bf16.msra.mxu0 %v3981
      %4058 = vmatprep.subr.bf16.mxu0 0
      %4059 = vmatpush2.bf16.msra.mxu0 0
      %4060 = vmatprep.subr.bf16.mxu0 0
      %4061 = vmatpush2.bf16.msra.mxu0 0
      %4062 = vmatprep.subr.bf16.mxu0 0
      %4063 = vmatpush2.bf16.msra.mxu0 0
      %4064 = vmatprep.subr.bf16.mxu0 0
      %4065 = vmatpush2.bf16.msra.mxu0 0
      %4066 = vmatprep.subr.bf16.mxu0 0
      %4067 = vmatpush2.bf16.msra.mxu0 0
      %4068 = vmatprep.subr.bf16.mxu0 0
      %4069 = vmatpush2.bf16.msra.mxu0 0
      %4070 = vmatprep.subr.bf16.mxu0 0
      %4071 = vmatpush2.bf16.msra.mxu0 0
      %4072 = vmatprep.subr.bf16.mxu0 0
      %4073 = vmatpush2.bf16.msra.mxu0 0
      %4074 = vmatprep.mubr.bf16.mxu0 0
      %4075 = vmatmul.mubr.bf16.gmra.mxu0 %v3992
      %v4076 = vpop.f32.mrf.mxu0
      %v4077 = vadd.f32 0.0, %v4076
      %v4078 = vpop.f32.mrf.mxu0
      %v4079 = vpop.f32.mrf.mxu0
      %v4080 = vadd.f32 0.0, %v4079
      %v4081 = vpop.f32.mrf.mxu0
      %4082 = vmatprep.mubr.bf16.mxu0 0
      %4083 = vmatmul.mubr.bf16.gmra.mxu0 %v3995
      %v4084 = vpop.f32.mrf.mxu0
      %v4085 = vadd.f32 0.0, %v4084
      %v4086 = vpop.f32.mrf.mxu0
      %v4087 = vpop.f32.mrf.mxu0
      %v4088 = vadd.f32 0.0, %v4087
      %v4089 = vpop.f32.mrf.mxu0
      %4090 = vmatprep.mubr.bf16.mxu0 0
      %4091 = vmatmul.mubr.bf16.gmra.mxu0 %v3998
      %v4092 = vpop.f32.mrf.mxu0
      %v4093 = vadd.f32 0.0, %v4092
      %v4094 = vpop.f32.mrf.mxu0
      %v4095 = vpop.f32.mrf.mxu0
      %v4096 = vadd.f32 0.0, %v4095
      %v4097 = vpop.f32.mrf.mxu0
      %4098 = vmatprep.mubr.bf16.mxu0 0
      %4099 = vmatmul.mubr.bf16.gmra.mxu0 %v4001
      %v4100 = vpop.f32.mrf.mxu0
      %v4101 = vadd.f32 0.0, %v4100
      %v4102 = vpop.f32.mrf.mxu0
      %v4103 = vpop.f32.mrf.mxu0
      %v4104 = vadd.f32 0.0, %v4103
      %v4105 = vpop.f32.mrf.mxu0
      %4106 = vmatprep.mubr.bf16.mxu0 0
      %4107 = vmatmul.mubr.bf16.gmra.mxu0 %v4004
      %v4108 = vpop.f32.mrf.mxu0
      %v4109 = vadd.f32 0.0, %v4108
      %v4110 = vpop.f32.mrf.mxu0
      %v4111 = vpop.f32.mrf.mxu0
      %v4112 = vadd.f32 0.0, %v4111
      %v4113 = vpop.f32.mrf.mxu0
      %4114 = vmatprep.mubr.bf16.mxu0 0
      %4115 = vmatmul.mubr.bf16.gmra.mxu0 %v4007
      %v4116 = vpop.f32.mrf.mxu0
      %v4117 = vadd.f32 0.0, %v4116
      %v4118 = vpop.f32.mrf.mxu0
      %v4119 = vpop.f32.mrf.mxu0
      %v4120 = vadd.f32 0.0, %v4119
      %v4121 = vpop.f32.mrf.mxu0
      %4122 = vmatprep.mubr.bf16.mxu0 0
      %4123 = vmatmul.mubr.bf16.gmra.mxu0 %v4010
      %v4124 = vpop.f32.mrf.mxu0
      %v4125 = vadd.f32 0.0, %v4124
      %v4126 = vpop.f32.mrf.mxu0
      %v4127 = vpop.f32.mrf.mxu0
      %v4128 = vadd.f32 0.0, %v4127
      %v4129 = vpop.f32.mrf.mxu0
      %4130 = vmatprep.mubr.bf16.mxu0 0
      %4131 = vmatmul.mubr.bf16.gmra.mxu0 %v4013
      %v4132 = vpop.f32.mrf.mxu0
      %v4133 = vadd.f32 0.0, %v4132
      %v4134 = vpop.f32.mrf.mxu0
      %v4135 = vpop.f32.mrf.mxu0
      %v4136 = vadd.f32 0.0, %v4135
      %v4137 = vpop.f32.mrf.mxu0
      %4138 = vmatprep.mubr.bf16.mxu0 0
      %4139 = vmatmul.mubr.bf16.gmra.mxu0 %v4016
      %v4140 = vpop.f32.mrf.mxu0
      %v4141 = vadd.f32 0.0, %v4140
      %v4142 = vpop.f32.mrf.mxu0
      %v4143 = vpop.f32.mrf.mxu0
      %v4144 = vadd.f32 0.0, %v4143
      %v4145 = vpop.f32.mrf.mxu0
      %4146 = vmatprep.mubr.bf16.mxu0 0
      %4147 = vmatmul.mubr.bf16.gmra.mxu0 %v4019
      %v4148 = vpop.f32.mrf.mxu0
      %v4149 = vadd.f32 0.0, %v4148
      %v4150 = vpop.f32.mrf.mxu0
      %v4151 = vpop.f32.mrf.mxu0
      %v4152 = vadd.f32 0.0, %v4151
      %v4153 = vpop.f32.mrf.mxu0
      %4154 = vmatprep.mubr.bf16.mxu0 0
      %4155 = vmatmul.mubr.bf16.gmra.mxu0 %v4022
      %v4156 = vpop.f32.mrf.mxu0
      %v4157 = vadd.f32 0.0, %v4156
      %v4158 = vpop.f32.mrf.mxu0
      %v4159 = vpop.f32.mrf.mxu0
      %v4160 = vadd.f32 0.0, %v4159
      %v4161 = vpop.f32.mrf.mxu0
      %4162 = vmatprep.mubr.bf16.mxu0 0
      %4163 = vmatmul.mubr.bf16.gmra.mxu0 %v4025
      %v4164 = vpop.f32.mrf.mxu0
      %v4165 = vadd.f32 0.0, %v4164
      %v4166 = vpop.f32.mrf.mxu0
      %v4167 = vpop.f32.mrf.mxu0
      %v4168 = vadd.f32 0.0, %v4167
      %v4169 = vpop.f32.mrf.mxu0
      %4170 = vmatprep.mubr.bf16.mxu0 0
      %4171 = vmatmul.mubr.bf16.gmra.mxu0 %v4028
      %v4172 = vpop.f32.mrf.mxu0
      %v4173 = vadd.f32 0.0, %v4172
      %v4174 = vpop.f32.mrf.mxu0
      %v4175 = vpop.f32.mrf.mxu0
      %v4176 = vadd.f32 0.0, %v4175
      %v4177 = vpop.f32.mrf.mxu0
      %4178 = vmatprep.mubr.bf16.mxu0 0
      %4179 = vmatmul.mubr.bf16.gmra.mxu0 %v4031
      %v4180 = vpop.f32.mrf.mxu0
      %v4181 = vadd.f32 0.0, %v4180
      %v4182 = vpop.f32.mrf.mxu0
      %v4183 = vpop.f32.mrf.mxu0
      %v4184 = vadd.f32 0.0, %v4183
      %v4185 = vpop.f32.mrf.mxu0
      %4186 = vmatprep.mubr.bf16.mxu0 0
      %4187 = vmatmul.mubr.bf16.gmra.mxu0 %v4034
      %v4188 = vpop.f32.mrf.mxu0
      %v4189 = vadd.f32 0.0, %v4188
      %v4190 = vpop.f32.mrf.mxu0
      %v4191 = vpop.f32.mrf.mxu0
      %v4192 = vadd.f32 0.0, %v4191
      %v4193 = vpop.f32.mrf.mxu0
      %4194 = vmatprep.mubr.bf16.mxu0 0
      %4195 = vmatmul.mubr.bf16.gmra.mxu0 %v4037
      %v4196 = vpop.f32.mrf.mxu0
      %v4197 = vadd.f32 0.0, %v4196
      %v4198 = vpop.f32.mrf.mxu0
      %v4199 = vpop.f32.mrf.mxu0
      %v4200 = vadd.f32 0.0, %v4199
      %v4201 = vpop.f32.mrf.mxu0
      %4202 = vdwg.mxu0
      %v4208 = vunpack.c.l.b16 %v1880
      %v4209 = vunpack.c.l.b16 %v1881
      %v4210 = vunpack.c.l.b16 %v1882
      %v4211 = vunpack.c.l.b16 %v1883
      %v4212 = vunpack.c.l.b16 %v1884
      %v4213 = vpack.c.b16 %v4209, %v4208
      %v4214 = vpack.c.b16 %v4211, %v4210
      %v4215 = vpack.c.b16 %v4212, %v4212
      %v4219 = vsel %vm1715, %v4215, 0
      %4221 = vmatprep.subr.bf16.mxu0 0
      %4222 = vmatpush1.bf16.msra.mxu0 0
      %4223 = vmatprep.subr.bf16.mxu0 0
      %4224 = vmatpush1.bf16.msra.mxu0 0
      %4225 = vmatprep.subr.bf16.mxu0 0
      %4226 = vmatpush1.bf16.msra.mxu0 0
      %4227 = vmatprep.subr.bf16.mxu0 0
      %4228 = vmatpush1.bf16.msra.mxu0 0
      %4229 = vmatprep.subr.bf16.mxu0 0
      %4230 = vmatpush1.bf16.msra.mxu0 0
      %4231 = vmatprep.subr.bf16.mxu0 0
      %4232 = vmatpush1.bf16.msra.mxu0 %v4219
      %4233 = vmatprep.subr.bf16.mxu0 0
      %4234 = vmatpush1.bf16.msra.mxu0 %v4214
      %4235 = vmatprep.subr.bf16.mxu0 0
      %4236 = vmatpush1.bf16.msra.mxu0 %v4213
      %4237 = vmatprep.subr.bf16.mxu0 0
      %4238 = vmatpush2.bf16.msra.mxu0 0
      %4239 = vmatprep.subr.bf16.mxu0 0
      %4240 = vmatpush2.bf16.msra.mxu0 0
      %4241 = vmatprep.subr.bf16.mxu0 0
      %4242 = vmatpush2.bf16.msra.mxu0 0
      %4243 = vmatprep.subr.bf16.mxu0 0
      %4244 = vmatpush2.bf16.msra.mxu0 0
      %4245 = vmatprep.subr.bf16.mxu0 0
      %4246 = vmatpush2.bf16.msra.mxu0 0
      %4247 = vmatprep.subr.bf16.mxu0 0
      %4248 = vmatpush2.bf16.msra.mxu0 0
      %4249 = vmatprep.subr.bf16.mxu0 0
      %4250 = vmatpush2.bf16.msra.mxu0 0
      %4251 = vmatprep.subr.bf16.mxu0 0
      %4252 = vmatpush2.bf16.msra.mxu0 0
      %4253 = vmatprep.mubr.bf16.mxu0 0
      %4254 = vmatmul.mubr.bf16.gmra.mxu0 %v1683
      %v4255 = vpop.f32.mrf.mxu0
      %v4256 = vadd.f32 %v4077, %v4255
      %v4257 = vpop.f32.mrf.mxu0
      %v4258 = vpop.f32.mrf.mxu0
      %v4259 = vadd.f32 %v4080, %v4258
      %v4260 = vpop.f32.mrf.mxu0
      %4261 = vmatprep.mubr.bf16.mxu0 0
      %4262 = vmatmul.mubr.bf16.gmra.mxu0 %v1685
      %v4263 = vpop.f32.mrf.mxu0
      %v4264 = vadd.f32 %v4085, %v4263
      %v4265 = vpop.f32.mrf.mxu0
      %v4266 = vpop.f32.mrf.mxu0
      %v4267 = vadd.f32 %v4088, %v4266
      %v4268 = vpop.f32.mrf.mxu0
      %4269 = vmatprep.mubr.bf16.mxu0 0
      %4270 = vmatmul.mubr.bf16.gmra.mxu0 %v1687
      %v4271 = vpop.f32.mrf.mxu0
      %v4272 = vadd.f32 %v4093, %v4271
      %v4273 = vpop.f32.mrf.mxu0
      %v4274 = vpop.f32.mrf.mxu0
      %v4275 = vadd.f32 %v4096, %v4274
      %v4276 = vpop.f32.mrf.mxu0
      %4277 = vmatprep.mubr.bf16.mxu0 0
      %4278 = vmatmul.mubr.bf16.gmra.mxu0 %v1689
      %v4279 = vpop.f32.mrf.mxu0
      %v4280 = vadd.f32 %v4101, %v4279
      %v4281 = vpop.f32.mrf.mxu0
      %v4282 = vpop.f32.mrf.mxu0
      %v4283 = vadd.f32 %v4104, %v4282
      %v4284 = vpop.f32.mrf.mxu0
      %4285 = vmatprep.mubr.bf16.mxu0 0
      %4286 = vmatmul.mubr.bf16.gmra.mxu0 %v1691
      %v4287 = vpop.f32.mrf.mxu0
      %v4288 = vadd.f32 %v4109, %v4287
      %v4289 = vpop.f32.mrf.mxu0
      %v4290 = vpop.f32.mrf.mxu0
      %v4291 = vadd.f32 %v4112, %v4290
      %v4292 = vpop.f32.mrf.mxu0
      %4293 = vmatprep.mubr.bf16.mxu0 0
      %4294 = vmatmul.mubr.bf16.gmra.mxu0 %v1693
      %v4295 = vpop.f32.mrf.mxu0
      %v4296 = vadd.f32 %v4117, %v4295
      %v4297 = vpop.f32.mrf.mxu0
      %v4298 = vpop.f32.mrf.mxu0
      %v4299 = vadd.f32 %v4120, %v4298
      %v4300 = vpop.f32.mrf.mxu0
      %4301 = vmatprep.mubr.bf16.mxu0 0
      %4302 = vmatmul.mubr.bf16.gmra.mxu0 %v1695
      %v4303 = vpop.f32.mrf.mxu0
      %v4304 = vadd.f32 %v4125, %v4303
      %v4305 = vpop.f32.mrf.mxu0
      %v4306 = vpop.f32.mrf.mxu0
      %v4307 = vadd.f32 %v4128, %v4306
      %v4308 = vpop.f32.mrf.mxu0
      %4309 = vmatprep.mubr.bf16.mxu0 0
      %4310 = vmatmul.mubr.bf16.gmra.mxu0 %v1697
      %v4311 = vpop.f32.mrf.mxu0
      %v4312 = vadd.f32 %v4133, %v4311
      %v4313 = vpop.f32.mrf.mxu0
      %v4314 = vpop.f32.mrf.mxu0
      %v4315 = vadd.f32 %v4136, %v4314
      %v4316 = vpop.f32.mrf.mxu0
      %4317 = vmatprep.mubr.bf16.mxu0 0
      %4318 = vmatmul.mubr.bf16.gmra.mxu0 %v1699
      %v4319 = vpop.f32.mrf.mxu0
      %v4320 = vadd.f32 %v4141, %v4319
      %v4321 = vpop.f32.mrf.mxu0
      %v4322 = vpop.f32.mrf.mxu0
      %v4323 = vadd.f32 %v4144, %v4322
      %v4324 = vpop.f32.mrf.mxu0
      %4325 = vmatprep.mubr.bf16.mxu0 0
      %4326 = vmatmul.mubr.bf16.gmra.mxu0 %v1701
      %v4327 = vpop.f32.mrf.mxu0
      %v4328 = vadd.f32 %v4149, %v4327
      %v4329 = vpop.f32.mrf.mxu0
      %v4330 = vpop.f32.mrf.mxu0
      %v4331 = vadd.f32 %v4152, %v4330
      %v4332 = vpop.f32.mrf.mxu0
      %4333 = vmatprep.mubr.bf16.mxu0 0
      %4334 = vmatmul.mubr.bf16.gmra.mxu0 %v1703
      %v4335 = vpop.f32.mrf.mxu0
      %v4336 = vadd.f32 %v4157, %v4335
      %v4337 = vpop.f32.mrf.mxu0
      %v4338 = vpop.f32.mrf.mxu0
      %v4339 = vadd.f32 %v4160, %v4338
      %v4340 = vpop.f32.mrf.mxu0
      %4341 = vmatprep.mubr.bf16.mxu0 0
      %4342 = vmatmul.mubr.bf16.gmra.mxu0 %v1705
      %v4343 = vpop.f32.mrf.mxu0
      %v4344 = vadd.f32 %v4165, %v4343
      %v4345 = vpop.f32.mrf.mxu0
      %v4346 = vpop.f32.mrf.mxu0
      %v4347 = vadd.f32 %v4168, %v4346
      %v4348 = vpop.f32.mrf.mxu0
      %4349 = vmatprep.mubr.bf16.mxu0 0
      %4350 = vmatmul.mubr.bf16.gmra.mxu0 %v1707
      %v4351 = vpop.f32.mrf.mxu0
      %v4352 = vadd.f32 %v4173, %v4351
      %v4353 = vpop.f32.mrf.mxu0
      %v4354 = vpop.f32.mrf.mxu0
      %v4355 = vadd.f32 %v4176, %v4354
      %v4356 = vpop.f32.mrf.mxu0
      %4357 = vmatprep.mubr.bf16.mxu0 0
      %4358 = vmatmul.mubr.bf16.gmra.mxu0 %v1709
      %v4359 = vpop.f32.mrf.mxu0
      %v4360 = vadd.f32 %v4181, %v4359
      %v4361 = vpop.f32.mrf.mxu0
      %v4362 = vpop.f32.mrf.mxu0
      %v4363 = vadd.f32 %v4184, %v4362
      %v4364 = vpop.f32.mrf.mxu0
      %4365 = vmatprep.mubr.bf16.mxu0 0
      %4366 = vmatmul.mubr.bf16.gmra.mxu0 %v1711
      %v4367 = vpop.f32.mrf.mxu0
      %v4368 = vadd.f32 %v4189, %v4367
      %v4369 = vpop.f32.mrf.mxu0
      %v4370 = vpop.f32.mrf.mxu0
      %v4371 = vadd.f32 %v4192, %v4370
      %v4372 = vpop.f32.mrf.mxu0
      %4373 = vmatprep.mubr.bf16.mxu0 0
      %4374 = vmatmul.mubr.bf16.gmra.mxu0 %v1713
      %v4375 = vpop.f32.mrf.mxu0
      %v4376 = vadd.f32 %v4197, %v4375
      %v4377 = vpop.f32.mrf.mxu0
      %v4378 = vpop.f32.mrf.mxu0
      %v4379 = vadd.f32 %v4200, %v4378
      %v4380 = vpop.f32.mrf.mxu0
      %4381 = vdwg.mxu0
      %v4382 = vlaneseq
      %v4383 = vshrl.u32 %v4382, 7
      %v4384 = vsub.s32 0, %v4383
      %v4385 = vrot.slane %v285, %v4384
      %v4386 = vadd.f32 %v4256, %v4385
      %v4387 = vadd.f32 %v4259, %v4385
      %v4388 = vadd.f32 %v4264, %v4385
      %v4389 = vadd.f32 %v4267, %v4385
      %v4390 = vadd.f32 %v4272, %v4385
      %v4391 = vadd.f32 %v4275, %v4385
      %v4392 = vadd.f32 %v4280, %v4385
      %v4393 = vadd.f32 %v4283, %v4385
      %v4394 = vadd.f32 %v4288, %v4385
      %v4395 = vadd.f32 %v4291, %v4385
      %v4396 = vadd.f32 %v4296, %v4385
      %v4397 = vadd.f32 %v4299, %v4385
      %v4398 = vadd.f32 %v4304, %v4385
      %v4399 = vadd.f32 %v4307, %v4385
      %v4400 = vadd.f32 %v4312, %v4385
      %v4401 = vadd.f32 %v4315, %v4385
      %v4402 = vadd.f32 %v4320, %v4385
      %v4403 = vadd.f32 %v4323, %v4385
      %v4404 = vadd.f32 %v4328, %v4385
      %v4405 = vadd.f32 %v4331, %v4385
      %v4406 = vadd.f32 %v4336, %v4385
      %v4407 = vadd.f32 %v4339, %v4385
      %v4408 = vadd.f32 %v4344, %v4385
      %v4409 = vadd.f32 %v4347, %v4385
      %v4410 = vadd.f32 %v4352, %v4385
      %v4411 = vadd.f32 %v4355, %v4385
      %v4412 = vadd.f32 %v4360, %v4385
      %v4413 = vadd.f32 %v4363, %v4385
      %v4414 = vadd.f32 %v4368, %v4385
      %v4415 = vadd.f32 %v4371, %v4385
      %v4416 = vadd.f32 %v4376, %v4385
      %v4417 = vadd.f32 %v4379, %v4385
      %v4418 = vsel %vm1427, %v4386, 0.0
      %v4419 = vsel %vm1427, %v4387, 0.0
      %v4420 = vadd.f32 %v4418, %v4419
      %v4421 = vsel %vm1427, %v4388, 0.0
      %v4422 = vadd.f32 %v4420, %v4421
      %v4423 = vsel %vm1427, %v4389, 0.0
      %v4424 = vadd.f32 %v4422, %v4423
      %v4425 = vsel %vm1427, %v4390, 0.0
      %v4426 = vadd.f32 %v4424, %v4425
      %v4427 = vsel %vm1427, %v4391, 0.0
      %v4428 = vadd.f32 %v4426, %v4427
      %v4429 = vsel %vm1427, %v4392, 0.0
      %v4430 = vadd.f32 %v4428, %v4429
      %v4431 = vsel %vm1427, %v4393, 0.0
      %v4432 = vadd.f32 %v4430, %v4431
      %v4433 = vsel %vm1427, %v4394, 0.0
      %v4434 = vadd.f32 %v4432, %v4433
      %v4435 = vsel %vm1427, %v4395, 0.0
      %v4436 = vadd.f32 %v4434, %v4435
      %v4437 = vsel %vm1427, %v4396, 0.0
      %v4438 = vadd.f32 %v4436, %v4437
      %v4439 = vsel %vm1427, %v4397, 0.0
      %v4440 = vadd.f32 %v4438, %v4439
      %v4441 = vsel %vm1427, %v4398, 0.0
      %v4442 = vadd.f32 %v4440, %v4441
      %v4443 = vsel %vm1427, %v4399, 0.0
      %v4444 = vadd.f32 %v4442, %v4443
      %v4445 = vsel %vm1427, %v4400, 0.0
      %v4446 = vadd.f32 %v4444, %v4445
      %v4447 = vsel %vm1427, %v4401, 0.0
      %v4448 = vadd.f32 %v4446, %v4447
      %v4449 = vsel %vm1427, %v4402, 0.0
      %v4450 = vadd.f32 %v4448, %v4449
      %v4451 = vsel %vm1427, %v4403, 0.0
      %v4452 = vadd.f32 %v4450, %v4451
      %v4453 = vsel %vm1427, %v4404, 0.0
      %v4454 = vadd.f32 %v4452, %v4453
      %v4455 = vsel %vm1427, %v4405, 0.0
      %v4456 = vadd.f32 %v4454, %v4455
      %v4457 = vsel %vm1427, %v4406, 0.0
      %v4458 = vadd.f32 %v4456, %v4457
      %v4459 = vsel %vm1427, %v4407, 0.0
      %v4460 = vadd.f32 %v4458, %v4459
      %v4461 = vsel %vm1427, %v4408, 0.0
      %v4462 = vadd.f32 %v4460, %v4461
      %v4463 = vsel %vm1427, %v4409, 0.0
      %v4464 = vadd.f32 %v4462, %v4463
      %v4465 = vsel %vm1427, %v4410, 0.0
      %v4466 = vadd.f32 %v4464, %v4465
      %v4467 = vsel %vm1427, %v4411, 0.0
      %v4468 = vadd.f32 %v4466, %v4467
      %v4469 = vsel %vm1427, %v4412, 0.0
      %v4470 = vadd.f32 %v4468, %v4469
      %v4471 = vsel %vm1427, %v4413, 0.0
      %v4472 = vadd.f32 %v4470, %v4471
      %v4473 = vsel %vm1427, %v4414, 0.0
      %v4474 = vadd.f32 %v4472, %v4473
      %v4475 = vsel %vm1427, %v4415, 0.0
      %v4476 = vadd.f32 %v4474, %v4475
      %v4477 = vsel %vm1427, %v4416, 0.0
      %v4478 = vadd.f32 %v4476, %v4477
      %v4479 = vsel %vm1427, %v4417, 0.0
      %v4480 = vadd.f32 %v4478, %v4479
      %v4481 = vrot.slane %v4480, 4
      %v4482 = vadd.f32 %v4480, %v4481
      %v4483 = vrot.slane %v4482, 2
      %v4484 = vadd.f32 %v4482, %v4483
      %v4485 = vrot.slane %v4484, 1
      %v4486 = vadd.f32 %v4484, %v4485
      %v4488 = vsel %vm1427, %v4486, 0
      %4490 = vmatprep.subr.mxu0 0.0
      %4491 = vmatpush1.msra.mxu0 0.0
      %4492 = vmatprep.subr.mxu0 0.0
      %4493 = vmatpush1.msra.mxu0 0.0
      %4494 = vmatprep.subr.mxu0 0.0
      %4495 = vmatpush1.msra.mxu0 0.0
      %4496 = vmatprep.subr.mxu0 0.0
      %4497 = vmatpush1.msra.mxu0 0.0
      %4498 = vmatprep.subr.mxu0 0.0
      %4499 = vmatpush1.msra.mxu0 0.0
      %4500 = vmatprep.subr.mxu0 0.0
      %4501 = vmatpush1.msra.mxu0 0.0
      %4502 = vmatprep.subr.mxu0 0.0
      %4503 = vmatpush1.msra.mxu0 0.0
      %4504 = vmatprep.subr.mxu0 0.0
      %4505 = vmatpush1.msra.mxu0 0.0
      %4506 = vmatprep.subr.mxu0 0.0
      %4507 = vmatpush1.msra.mxu0 0.0
      %4508 = vmatprep.subr.mxu0 0.0
      %4509 = vmatpush1.msra.mxu0 0.0
      %4510 = vmatprep.subr.mxu0 0.0
      %4511 = vmatpush1.msra.mxu0 0.0
      %4512 = vmatprep.subr.mxu0 0.0
      %4513 = vmatpush1.msra.mxu0 0.0
      %4514 = vmatprep.subr.mxu0 0.0
      %4515 = vmatpush1.msra.mxu0 0.0
      %4516 = vmatprep.subr.mxu0 0.0
      %4517 = vmatpush1.msra.mxu0 0.0
      %4518 = vmatprep.subr.mxu0 0.0
      %4519 = vmatpush1.msra.mxu0 0.0
      %4520 = vmatprep.subr.mxu0 0.0
      %4521 = vmatpush1.msra.mxu0 %v280
      %4522 = vmatprep.subr.mxu0 0.0
      %4523 = vmatpush2.msra.mxu0 0.0
      %4524 = vmatprep.subr.mxu0 0.0
      %4525 = vmatpush2.msra.mxu0 0.0
      %4526 = vmatprep.subr.mxu0 0.0
      %4527 = vmatpush2.msra.mxu0 0.0
      %4528 = vmatprep.subr.mxu0 0.0
      %4529 = vmatpush2.msra.mxu0 0.0
      %4530 = vmatprep.subr.mxu0 0.0
      %4531 = vmatpush2.msra.mxu0 0.0
      %4532 = vmatprep.subr.mxu0 0.0
      %4533 = vmatpush2.msra.mxu0 0.0
      %4534 = vmatprep.subr.mxu0 0.0
      %4535 = vmatpush2.msra.mxu0 0.0
      %4536 = vmatprep.subr.mxu0 0.0
      %4537 = vmatpush2.msra.mxu0 0.0
      %4538 = vmatprep.subr.mxu0 0.0
      %4539 = vmatpush2.msra.mxu0 0.0
      %4540 = vmatprep.subr.mxu0 0.0
      %4541 = vmatpush2.msra.mxu0 0.0
      %4542 = vmatprep.subr.mxu0 0.0
      %4543 = vmatpush2.msra.mxu0 0.0
      %4544 = vmatprep.subr.mxu0 0.0
      %4545 = vmatpush2.msra.mxu0 0.0
      %4546 = vmatprep.subr.mxu0 0.0
      %4547 = vmatpush2.msra.mxu0 0.0
      %4548 = vmatprep.subr.mxu0 0.0
      %4549 = vmatpush2.msra.mxu0 0.0
      %4550 = vmatprep.subr.mxu0 0.0
      %4551 = vmatpush2.msra.mxu0 0.0
      %4552 = vmatprep.subr.mxu0 0.0
      %4553 = vmatpush2.msra.mxu0 0.0
      %4554 = vmatprep.mubr.f32.mxu0 0.0
      %4555 = vmatmul.mubr.f32.gmra.mxu0 %v4488
      %v4556 = vpop.f32.mrf.mxu0
      %v4557 = vadd.f32 0.0, %v4556
      %v4558 = vpop.f32.mrf.mxu0
      %4559 = vdwg.mxu0
      %v4560 = vmul.f32 %v4557, %v2027
      %v4562 = vsel %vm1378, %v4560, 0
      %4564 = vmatprep.subr.mxu0 0.0
      %4565 = vmatpush1.msra.mxu0 0.0
      %4566 = vmatprep.subr.mxu0 0.0
      %4567 = vmatpush1.msra.mxu0 0.0
      %4568 = vmatprep.subr.mxu0 0.0
      %4569 = vmatpush1.msra.mxu0 0.0
      %4570 = vmatprep.subr.mxu0 0.0
      %4571 = vmatpush1.msra.mxu0 0.0
      %4572 = vmatprep.subr.mxu0 0.0
      %4573 = vmatpush1.msra.mxu0 0.0
      %4574 = vmatprep.subr.mxu0 0.0
      %4575 = vmatpush1.msra.mxu0 0.0
      %4576 = vmatprep.subr.mxu0 0.0
      %4577 = vmatpush1.msra.mxu0 0.0
      %4578 = vmatprep.subr.mxu0 0.0
      %4579 = vmatpush1.msra.mxu0 0.0
      %4580 = vmatprep.subr.mxu0 0.0
      %4581 = vmatpush1.msra.mxu0 0.0
      %4582 = vmatprep.subr.mxu0 0.0
      %4583 = vmatpush1.msra.mxu0 0.0
      %4584 = vmatprep.subr.mxu0 0.0
      %4585 = vmatpush1.msra.mxu0 0.0
      %4586 = vmatprep.subr.mxu0 0.0
      %4587 = vmatpush1.msra.mxu0 0.0
      %4588 = vmatprep.subr.mxu0 0.0
      %4589 = vmatpush1.msra.mxu0 0.0
      %4590 = vmatprep.subr.mxu0 0.0
      %4591 = vmatpush1.msra.mxu0 0.0
      %4592 = vmatprep.subr.mxu0 0.0
      %4593 = vmatpush1.msra.mxu0 0.0
      %4594 = vmatprep.subr.mxu0 0.0
      %4595 = vmatpush1.msra.mxu0 %v2034
      %4596 = vmatprep.subr.mxu0 0.0
      %4597 = vmatpush2.msra.mxu0 0.0
      %4598 = vmatprep.subr.mxu0 0.0
      %4599 = vmatpush2.msra.mxu0 0.0
      %4600 = vmatprep.subr.mxu0 0.0
      %4601 = vmatpush2.msra.mxu0 0.0
      %4602 = vmatprep.subr.mxu0 0.0
      %4603 = vmatpush2.msra.mxu0 0.0
      %4604 = vmatprep.subr.mxu0 0.0
      %4605 = vmatpush2.msra.mxu0 0.0
      %4606 = vmatprep.subr.mxu0 0.0
      %4607 = vmatpush2.msra.mxu0 0.0
      %4608 = vmatprep.subr.mxu0 0.0
      %4609 = vmatpush2.msra.mxu0 0.0
      %4610 = vmatprep.subr.mxu0 0.0
      %4611 = vmatpush2.msra.mxu0 0.0
      %4612 = vmatprep.subr.mxu0 0.0
      %4613 = vmatpush2.msra.mxu0 0.0
      %4614 = vmatprep.subr.mxu0 0.0
      %4615 = vmatpush2.msra.mxu0 0.0
      %4616 = vmatprep.subr.mxu0 0.0
      %4617 = vmatpush2.msra.mxu0 0.0
      %4618 = vmatprep.subr.mxu0 0.0
      %4619 = vmatpush2.msra.mxu0 0.0
      %4620 = vmatprep.subr.mxu0 0.0
      %4621 = vmatpush2.msra.mxu0 0.0
      %4622 = vmatprep.subr.mxu0 0.0
      %4623 = vmatpush2.msra.mxu0 0.0
      %4624 = vmatprep.subr.mxu0 0.0
      %4625 = vmatpush2.msra.mxu0 0.0
      %4626 = vmatprep.subr.mxu0 0.0
      %4627 = vmatpush2.msra.mxu0 0.0
      %4628 = vmatprep.mubr.f32.mxu0 0.0
      %4629 = vmatmul.mubr.f32.gmra.mxu0 %v4562
      %v4630 = vpop.f32.mrf.mxu0
      %v4631 = vadd.f32 0.0, %v4630
      %v4632 = vpop.f32.mrf.mxu0
      %4633 = vdwg.mxu0
      %v4634 = vlaneseq
      %v4635 = vshrl.u32 %v4634, 7
      %v4636 = vsub.s32 0, %v4635
      %v4637 = vrot.slane %v4631, %v4636
      %v4638 = vsub.f32 %v4386, %v4637
      %v4639 = vsub.f32 %v4387, %v4637
      %v4640 = vsub.f32 %v4388, %v4637
      %v4641 = vsub.f32 %v4389, %v4637
      %v4642 = vsub.f32 %v4390, %v4637
      %v4643 = vsub.f32 %v4391, %v4637
      %v4644 = vsub.f32 %v4392, %v4637
      %v4645 = vsub.f32 %v4393, %v4637
      %v4646 = vsub.f32 %v4394, %v4637
      %v4647 = vsub.f32 %v4395, %v4637
      %v4648 = vsub.f32 %v4396, %v4637
      %v4649 = vsub.f32 %v4397, %v4637
      %v4650 = vsub.f32 %v4398, %v4637
      %v4651 = vsub.f32 %v4399, %v4637
      %v4652 = vsub.f32 %v4400, %v4637
      %v4653 = vsub.f32 %v4401, %v4637
      %v4654 = vsub.f32 %v4402, %v4637
      %v4655 = vsub.f32 %v4403, %v4637
      %v4656 = vsub.f32 %v4404, %v4637
      %v4657 = vsub.f32 %v4405, %v4637
      %v4658 = vsub.f32 %v4406, %v4637
      %v4659 = vsub.f32 %v4407, %v4637
      %v4660 = vsub.f32 %v4408, %v4637
      %v4661 = vsub.f32 %v4409, %v4637
      %v4662 = vsub.f32 %v4410, %v4637
      %v4663 = vsub.f32 %v4411, %v4637
      %v4664 = vsub.f32 %v4412, %v4637
      %v4665 = vsub.f32 %v4413, %v4637
      %v4666 = vsub.f32 %v4414, %v4637
      %v4667 = vsub.f32 %v4415, %v4637
      %v4668 = vsub.f32 %v4416, %v4637
      %v4669 = vsub.f32 %v4417, %v4637
      %v4670 = vmul.f32 %v4638, %v4638
      %v4671 = vmul.f32 %v4639, %v4639
      %v4672 = vmul.f32 %v4640, %v4640
      %v4673 = vmul.f32 %v4641, %v4641
      %v4674 = vmul.f32 %v4642, %v4642
      %v4675 = vmul.f32 %v4643, %v4643
      %v4676 = vmul.f32 %v4644, %v4644
      %v4677 = vmul.f32 %v4645, %v4645
      %v4678 = vmul.f32 %v4646, %v4646
      %v4679 = vmul.f32 %v4647, %v4647
      %v4680 = vmul.f32 %v4648, %v4648
      %v4681 = vmul.f32 %v4649, %v4649
      %v4682 = vmul.f32 %v4650, %v4650
      %v4683 = vmul.f32 %v4651, %v4651
      %v4684 = vmul.f32 %v4652, %v4652
      %v4685 = vmul.f32 %v4653, %v4653
      %v4686 = vmul.f32 %v4654, %v4654
      %v4687 = vmul.f32 %v4655, %v4655
      %v4688 = vmul.f32 %v4656, %v4656
      %v4689 = vmul.f32 %v4657, %v4657
      %v4690 = vmul.f32 %v4658, %v4658
      %v4691 = vmul.f32 %v4659, %v4659
      %v4692 = vmul.f32 %v4660, %v4660
      %v4693 = vmul.f32 %v4661, %v4661
      %v4694 = vmul.f32 %v4662, %v4662
      %v4695 = vmul.f32 %v4663, %v4663
      %v4696 = vmul.f32 %v4664, %v4664
      %v4697 = vmul.f32 %v4665, %v4665
      %v4698 = vmul.f32 %v4666, %v4666
      %v4699 = vmul.f32 %v4667, %v4667
      %v4700 = vmul.f32 %v4668, %v4668
      %v4701 = vmul.f32 %v4669, %v4669
      %v4702 = vsel %vm1427, %v4670, 0.0
      %v4703 = vsel %vm1427, %v4671, 0.0
      %v4704 = vadd.f32 %v4702, %v4703
      %v4705 = vsel %vm1427, %v4672, 0.0
      %v4706 = vadd.f32 %v4704, %v4705
      %v4707 = vsel %vm1427, %v4673, 0.0
      %v4708 = vadd.f32 %v4706, %v4707
      %v4709 = vsel %vm1427, %v4674, 0.0
      %v4710 = vadd.f32 %v4708, %v4709
      %v4711 = vsel %vm1427, %v4675, 0.0
      %v4712 = vadd.f32 %v4710, %v4711
      %v4713 = vsel %vm1427, %v4676, 0.0
      %v4714 = vadd.f32 %v4712, %v4713
      %v4715 = vsel %vm1427, %v4677, 0.0
      %v4716 = vadd.f32 %v4714, %v4715
      %v4717 = vsel %vm1427, %v4678, 0.0
      %v4718 = vadd.f32 %v4716, %v4717
      %v4719 = vsel %vm1427, %v4679, 0.0
      %v4720 = vadd.f32 %v4718, %v4719
      %v4721 = vsel %vm1427, %v4680, 0.0
      %v4722 = vadd.f32 %v4720, %v4721
      %v4723 = vsel %vm1427, %v4681, 0.0
      %v4724 = vadd.f32 %v4722, %v4723
      %v4725 = vsel %vm1427, %v4682, 0.0
      %v4726 = vadd.f32 %v4724, %v4725
      %v4727 = vsel %vm1427, %v4683, 0.0
      %v4728 = vadd.f32 %v4726, %v4727
      %v4729 = vsel %vm1427, %v4684, 0.0
      %v4730 = vadd.f32 %v4728, %v4729
      %v4731 = vsel %vm1427, %v4685, 0.0
      %v4732 = vadd.f32 %v4730, %v4731
      %v4733 = vsel %vm1427, %v4686, 0.0
      %v4734 = vadd.f32 %v4732, %v4733
      %v4735 = vsel %vm1427, %v4687, 0.0
      %v4736 = vadd.f32 %v4734, %v4735
      %v4737 = vsel %vm1427, %v4688, 0.0
      %v4738 = vadd.f32 %v4736, %v4737
      %v4739 = vsel %vm1427, %v4689, 0.0
      %v4740 = vadd.f32 %v4738, %v4739
      %v4741 = vsel %vm1427, %v4690, 0.0
      %v4742 = vadd.f32 %v4740, %v4741
      %v4743 = vsel %vm1427, %v4691, 0.0
      %v4744 = vadd.f32 %v4742, %v4743
      %v4745 = vsel %vm1427, %v4692, 0.0
      %v4746 = vadd.f32 %v4744, %v4745
      %v4747 = vsel %vm1427, %v4693, 0.0
      %v4748 = vadd.f32 %v4746, %v4747
      %v4749 = vsel %vm1427, %v4694, 0.0
      %v4750 = vadd.f32 %v4748, %v4749
      %v4751 = vsel %vm1427, %v4695, 0.0
      %v4752 = vadd.f32 %v4750, %v4751
      %v4753 = vsel %vm1427, %v4696, 0.0
      %v4754 = vadd.f32 %v4752, %v4753
      %v4755 = vsel %vm1427, %v4697, 0.0
      %v4756 = vadd.f32 %v4754, %v4755
      %v4757 = vsel %vm1427, %v4698, 0.0
      %v4758 = vadd.f32 %v4756, %v4757
      %v4759 = vsel %vm1427, %v4699, 0.0
      %v4760 = vadd.f32 %v4758, %v4759
      %v4761 = vsel %vm1427, %v4700, 0.0
      %v4762 = vadd.f32 %v4760, %v4761
      %v4763 = vsel %vm1427, %v4701, 0.0
      %v4764 = vadd.f32 %v4762, %v4763
      %v4765 = vrot.slane %v4764, 4
      %v4766 = vadd.f32 %v4764, %v4765
      %v4767 = vrot.slane %v4766, 2
      %v4768 = vadd.f32 %v4766, %v4767
      %v4769 = vrot.slane %v4768, 1
      %v4770 = vadd.f32 %v4768, %v4769
      %v4772 = vsel %vm1427, %v4770, 0
      %4774 = vmatprep.subr.mxu0 0.0
      %4775 = vmatpush1.msra.mxu0 0.0
      %4776 = vmatprep.subr.mxu0 0.0
      %4777 = vmatpush1.msra.mxu0 0.0
      %4778 = vmatprep.subr.mxu0 0.0
      %4779 = vmatpush1.msra.mxu0 0.0
      %4780 = vmatprep.subr.mxu0 0.0
      %4781 = vmatpush1.msra.mxu0 0.0
      %4782 = vmatprep.subr.mxu0 0.0
      %4783 = vmatpush1.msra.mxu0 0.0
      %4784 = vmatprep.subr.mxu0 0.0
      %4785 = vmatpush1.msra.mxu0 0.0
      %4786 = vmatprep.subr.mxu0 0.0
      %4787 = vmatpush1.msra.mxu0 0.0
      %4788 = vmatprep.subr.mxu0 0.0
      %4789 = vmatpush1.msra.mxu0 0.0
      %4790 = vmatprep.subr.mxu0 0.0
      %4791 = vmatpush1.msra.mxu0 0.0
      %4792 = vmatprep.subr.mxu0 0.0
      %4793 = vmatpush1.msra.mxu0 0.0
      %4794 = vmatprep.subr.mxu0 0.0
      %4795 = vmatpush1.msra.mxu0 0.0
      %4796 = vmatprep.subr.mxu0 0.0
      %4797 = vmatpush1.msra.mxu0 0.0
      %4798 = vmatprep.subr.mxu0 0.0
      %4799 = vmatpush1.msra.mxu0 0.0
      %4800 = vmatprep.subr.mxu0 0.0
      %4801 = vmatpush1.msra.mxu0 0.0
      %4802 = vmatprep.subr.mxu0 0.0
      %4803 = vmatpush1.msra.mxu0 0.0
      %4804 = vmatprep.subr.mxu0 0.0
      %4805 = vmatpush1.msra.mxu0 %v280
      %4806 = vmatprep.subr.mxu0 0.0
      %4807 = vmatpush2.msra.mxu0 0.0
      %4808 = vmatprep.subr.mxu0 0.0
      %4809 = vmatpush2.msra.mxu0 0.0
      %4810 = vmatprep.subr.mxu0 0.0
      %4811 = vmatpush2.msra.mxu0 0.0
      %4812 = vmatprep.subr.mxu0 0.0
      %4813 = vmatpush2.msra.mxu0 0.0
      %4814 = vmatprep.subr.mxu0 0.0
      %4815 = vmatpush2.msra.mxu0 0.0
      %4816 = vmatprep.subr.mxu0 0.0
      %4817 = vmatpush2.msra.mxu0 0.0
      %4818 = vmatprep.subr.mxu0 0.0
      %4819 = vmatpush2.msra.mxu0 0.0
      %4820 = vmatprep.subr.mxu0 0.0
      %4821 = vmatpush2.msra.mxu0 0.0
      %4822 = vmatprep.subr.mxu0 0.0
      %4823 = vmatpush2.msra.mxu0 0.0
      %4824 = vmatprep.subr.mxu0 0.0
      %4825 = vmatpush2.msra.mxu0 0.0
      %4826 = vmatprep.subr.mxu0 0.0
      %4827 = vmatpush2.msra.mxu0 0.0
      %4828 = vmatprep.subr.mxu0 0.0
      %4829 = vmatpush2.msra.mxu0 0.0
      %4830 = vmatprep.subr.mxu0 0.0
      %4831 = vmatpush2.msra.mxu0 0.0
      %4832 = vmatprep.subr.mxu0 0.0
      %4833 = vmatpush2.msra.mxu0 0.0
      %4834 = vmatprep.subr.mxu0 0.0
      %4835 = vmatpush2.msra.mxu0 0.0
      %4836 = vmatprep.subr.mxu0 0.0
      %4837 = vmatpush2.msra.mxu0 0.0
      %4838 = vmatprep.mubr.f32.mxu0 0.0
      %4839 = vmatmul.mubr.f32.gmra.mxu0 %v4772
      %v4840 = vpop.f32.mrf.mxu0
      %v4841 = vadd.f32 0.0, %v4840
      %v4842 = vpop.f32.mrf.mxu0
      %4843 = vdwg.mxu0
      %v4844 = vmul.f32 %v4841, %v2027
      %v4845 = vadd.f32 %v4844, 1e-05
      %v4846 = vrsqrt.pop %v4845
      %v4848 = vsel %vm1378, %v4846, 0
      %4850 = vmatprep.subr.mxu0 0.0
      %4851 = vmatpush1.msra.mxu0 0.0
      %4852 = vmatprep.subr.mxu0 0.0
      %4853 = vmatpush1.msra.mxu0 0.0
      %4854 = vmatprep.subr.mxu0 0.0
      %4855 = vmatpush1.msra.mxu0 0.0
      %4856 = vmatprep.subr.mxu0 0.0
      %4857 = vmatpush1.msra.mxu0 0.0
      %4858 = vmatprep.subr.mxu0 0.0
      %4859 = vmatpush1.msra.mxu0 0.0
      %4860 = vmatprep.subr.mxu0 0.0
      %4861 = vmatpush1.msra.mxu0 0.0
      %4862 = vmatprep.subr.mxu0 0.0
      %4863 = vmatpush1.msra.mxu0 0.0
      %4864 = vmatprep.subr.mxu0 0.0
      %4865 = vmatpush1.msra.mxu0 0.0
      %4866 = vmatprep.subr.mxu0 0.0
      %4867 = vmatpush1.msra.mxu0 0.0
      %4868 = vmatprep.subr.mxu0 0.0
      %4869 = vmatpush1.msra.mxu0 0.0
      %4870 = vmatprep.subr.mxu0 0.0
      %4871 = vmatpush1.msra.mxu0 0.0
      %4872 = vmatprep.subr.mxu0 0.0
      %4873 = vmatpush1.msra.mxu0 0.0
      %4874 = vmatprep.subr.mxu0 0.0
      %4875 = vmatpush1.msra.mxu0 0.0
      %4876 = vmatprep.subr.mxu0 0.0
      %4877 = vmatpush1.msra.mxu0 0.0
      %4878 = vmatprep.subr.mxu0 0.0
      %4879 = vmatpush1.msra.mxu0 0.0
      %4880 = vmatprep.subr.mxu0 0.0
      %4881 = vmatpush1.msra.mxu0 %v2034
      %4882 = vmatprep.subr.mxu0 0.0
      %4883 = vmatpush2.msra.mxu0 0.0
      %4884 = vmatprep.subr.mxu0 0.0
      %4885 = vmatpush2.msra.mxu0 0.0
      %4886 = vmatprep.subr.mxu0 0.0
      %4887 = vmatpush2.msra.mxu0 0.0
      %4888 = vmatprep.subr.mxu0 0.0
      %4889 = vmatpush2.msra.mxu0 0.0
      %4890 = vmatprep.subr.mxu0 0.0
      %4891 = vmatpush2.msra.mxu0 0.0
      %4892 = vmatprep.subr.mxu0 0.0
      %4893 = vmatpush2.msra.mxu0 0.0
      %4894 = vmatprep.subr.mxu0 0.0
      %4895 = vmatpush2.msra.mxu0 0.0
      %4896 = vmatprep.subr.mxu0 0.0
      %4897 = vmatpush2.msra.mxu0 0.0
      %4898 = vmatprep.subr.mxu0 0.0
      %4899 = vmatpush2.msra.mxu0 0.0
      %4900 = vmatprep.subr.mxu0 0.0
      %4901 = vmatpush2.msra.mxu0 0.0
      %4902 = vmatprep.subr.mxu0 0.0
      %4903 = vmatpush2.msra.mxu0 0.0
      %4904 = vmatprep.subr.mxu0 0.0
      %4905 = vmatpush2.msra.mxu0 0.0
      %4906 = vmatprep.subr.mxu0 0.0
      %4907 = vmatpush2.msra.mxu0 0.0
      %4908 = vmatprep.subr.mxu0 0.0
      %4909 = vmatpush2.msra.mxu0 0.0
      %4910 = vmatprep.subr.mxu0 0.0
      %4911 = vmatpush2.msra.mxu0 0.0
      %4912 = vmatprep.subr.mxu0 0.0
      %4913 = vmatpush2.msra.mxu0 0.0
      %4914 = vmatprep.mubr.f32.mxu0 0.0
      %4915 = vmatmul.mubr.f32.gmra.mxu0 %v4848
      %v4916 = vpop.f32.mrf.mxu0
      %v4917 = vadd.f32 0.0, %v4916
      %v4918 = vpop.f32.mrf.mxu0
      %4919 = vdwg.mxu0
      %v4920 = vlaneseq
      %v4921 = vshrl.u32 %v4920, 7
      %v4922 = vsub.s32 0, %v4921
      %v4923 = vrot.slane %v4917, %v4922
      %v4924 = vmul.f32 %v4638, %v4923
      %v4925 = vmul.f32 %v4639, %v4923
      %v4926 = vmul.f32 %v4640, %v4923
      %v4927 = vmul.f32 %v4641, %v4923
      %v4928 = vmul.f32 %v4642, %v4923
      %v4929 = vmul.f32 %v4643, %v4923
      %v4930 = vmul.f32 %v4644, %v4923
      %v4931 = vmul.f32 %v4645, %v4923
      %v4932 = vmul.f32 %v4646, %v4923
      %v4933 = vmul.f32 %v4647, %v4923
      %v4934 = vmul.f32 %v4648, %v4923
      %v4935 = vmul.f32 %v4649, %v4923
      %v4936 = vmul.f32 %v4650, %v4923
      %v4937 = vmul.f32 %v4651, %v4923
      %v4938 = vmul.f32 %v4652, %v4923
      %v4939 = vmul.f32 %v4653, %v4923
      %v4940 = vmul.f32 %v4654, %v4923
      %v4941 = vmul.f32 %v4655, %v4923
      %v4942 = vmul.f32 %v4656, %v4923
      %v4943 = vmul.f32 %v4657, %v4923
      %v4944 = vmul.f32 %v4658, %v4923
      %v4945 = vmul.f32 %v4659, %v4923
      %v4946 = vmul.f32 %v4660, %v4923
      %v4947 = vmul.f32 %v4661, %v4923
      %v4948 = vmul.f32 %v4662, %v4923
      %v4949 = vmul.f32 %v4663, %v4923
      %v4950 = vmul.f32 %v4664, %v4923
      %v4951 = vmul.f32 %v4665, %v4923
      %v4952 = vmul.f32 %v4666, %v4923
      %v4953 = vmul.f32 %v4667, %v4923
      %v4954 = vmul.f32 %v4668, %v4923
      %v4955 = vmul.f32 %v4669, %v4923
      %v4956 = vlaneseq
      %v4957 = vshrl.u32 %v4956, 7
      %v4958 = vsub.s32 0, %v4957
      %v4959 = vrot.slane %v286, %v4958
      %v4960 = vmul.f32 %v4924, %v4959
      %v4961 = vmul.f32 %v4925, %v4959
      %v4962 = vmul.f32 %v4926, %v4959
      %v4963 = vmul.f32 %v4927, %v4959
      %v4964 = vmul.f32 %v4928, %v4959
      %v4965 = vmul.f32 %v4929, %v4959
      %v4966 = vmul.f32 %v4930, %v4959
      %v4967 = vmul.f32 %v4931, %v4959
      %v4968 = vmul.f32 %v4932, %v4959
      %v4969 = vmul.f32 %v4933, %v4959
      %v4970 = vmul.f32 %v4934, %v4959
      %v4971 = vmul.f32 %v4935, %v4959
      %v4972 = vmul.f32 %v4936, %v4959
      %v4973 = vmul.f32 %v4937, %v4959
      %v4974 = vmul.f32 %v4938, %v4959
      %v4975 = vmul.f32 %v4939, %v4959
      %v4976 = vmul.f32 %v4940, %v4959
      %v4977 = vmul.f32 %v4941, %v4959
      %v4978 = vmul.f32 %v4942, %v4959
      %v4979 = vmul.f32 %v4943, %v4959
      %v4980 = vmul.f32 %v4944, %v4959
      %v4981 = vmul.f32 %v4945, %v4959
      %v4982 = vmul.f32 %v4946, %v4959
      %v4983 = vmul.f32 %v4947, %v4959
      %v4984 = vmul.f32 %v4948, %v4959
      %v4985 = vmul.f32 %v4949, %v4959
      %v4986 = vmul.f32 %v4950, %v4959
      %v4987 = vmul.f32 %v4951, %v4959
      %v4988 = vmul.f32 %v4952, %v4959
      %v4989 = vmul.f32 %v4953, %v4959
      %v4990 = vmul.f32 %v4954, %v4959
      %v4991 = vmul.f32 %v4955, %v4959
      %v4992 = vlaneseq
      %v4993 = vshrl.u32 %v4992, 7
      %v4994 = vsub.s32 0, %v4993
      %v4995 = vrot.slane %v287, %v4994
      %v4996 = vadd.f32 %v4960, %v4995
      %v4997 = vadd.f32 %v4961, %v4995
      %v4998 = vadd.f32 %v4962, %v4995
      %v4999 = vadd.f32 %v4963, %v4995
      %v5000 = vadd.f32 %v4964, %v4995
      %v5001 = vadd.f32 %v4965, %v4995
      %v5002 = vadd.f32 %v4966, %v4995
      %v5003 = vadd.f32 %v4967, %v4995
      %v5004 = vadd.f32 %v4968, %v4995
      %v5005 = vadd.f32 %v4969, %v4995
      %v5006 = vadd.f32 %v4970, %v4995
      %v5007 = vadd.f32 %v4971, %v4995
      %v5008 = vadd.f32 %v4972, %v4995
      %v5009 = vadd.f32 %v4973, %v4995
      %v5010 = vadd.f32 %v4974, %v4995
      %v5011 = vadd.f32 %v4975, %v4995
      %v5012 = vadd.f32 %v4976, %v4995
      %v5013 = vadd.f32 %v4977, %v4995
      %v5014 = vadd.f32 %v4978, %v4995
      %v5015 = vadd.f32 %v4979, %v4995
      %v5016 = vadd.f32 %v4980, %v4995
      %v5017 = vadd.f32 %v4981, %v4995
      %v5018 = vadd.f32 %v4982, %v4995
      %v5019 = vadd.f32 %v4983, %v4995
      %v5020 = vadd.f32 %v4984, %v4995
      %v5021 = vadd.f32 %v4985, %v4995
      %v5022 = vadd.f32 %v4986, %v4995
      %v5023 = vadd.f32 %v4987, %v4995
      %v5024 = vadd.f32 %v4988, %v4995
      %v5025 = vadd.f32 %v4989, %v4995
      %v5026 = vadd.f32 %v4990, %v4995
      %v5027 = vadd.f32 %v4991, %v4995
      %v5028 = vmax.f32 %v4996, 0.0
      %v5029 = vmax.f32 %v4997, 0.0
      %v5030 = vmax.f32 %v4998, 0.0
      %v5031 = vmax.f32 %v4999, 0.0
      %v5032 = vmax.f32 %v5000, 0.0
      %v5033 = vmax.f32 %v5001, 0.0
      %v5034 = vmax.f32 %v5002, 0.0
      %v5035 = vmax.f32 %v5003, 0.0
      %v5036 = vmax.f32 %v5004, 0.0
      %v5037 = vmax.f32 %v5005, 0.0
      %v5038 = vmax.f32 %v5006, 0.0
      %v5039 = vmax.f32 %v5007, 0.0
      %v5040 = vmax.f32 %v5008, 0.0
      %v5041 = vmax.f32 %v5009, 0.0
      %v5042 = vmax.f32 %v5010, 0.0
      %v5043 = vmax.f32 %v5011, 0.0
      %v5044 = vmax.f32 %v5012, 0.0
      %v5045 = vmax.f32 %v5013, 0.0
      %v5046 = vmax.f32 %v5014, 0.0
      %v5047 = vmax.f32 %v5015, 0.0
      %v5048 = vmax.f32 %v5016, 0.0
      %v5049 = vmax.f32 %v5017, 0.0
      %v5050 = vmax.f32 %v5018, 0.0
      %v5051 = vmax.f32 %v5019, 0.0
      %v5052 = vmax.f32 %v5020, 0.0
      %v5053 = vmax.f32 %v5021, 0.0
      %v5054 = vmax.f32 %v5022, 0.0
      %v5055 = vmax.f32 %v5023, 0.0
      %v5056 = vmax.f32 %v5024, 0.0
      %v5057 = vmax.f32 %v5025, 0.0
      %v5058 = vmax.f32 %v5026, 0.0
      %v5059 = vmax.f32 %v5027, 0.0
      %5060 = vst.msk [vmem:[%s278] sm:$0xff] %vm1427, %v5028
      %5061 = vst.msk [vmem:[%s278 + $0x8] sm:$0xff] %vm1427, %v5029
      %5062 = vst.msk [vmem:[%s278 + $0x10] sm:$0xff] %vm1427, %v5030
      %5063 = vst.msk [vmem:[%s278 + $0x18] sm:$0xff] %vm1427, %v5031
      %5064 = vst.msk [vmem:[%s278 + $0x20] sm:$0xff] %vm1427, %v5032
      %5065 = vst.msk [vmem:[%s278 + $0x28] sm:$0xff] %vm1427, %v5033
      %5066 = vst.msk [vmem:[%s278 + $0x30] sm:$0xff] %vm1427, %v5034
      %5067 = vst.msk [vmem:[%s278 + $0x38] sm:$0xff] %vm1427, %v5035
      %5068 = vst.msk [vmem:[%s278 + $0x40] sm:$0xff] %vm1427, %v5036
      %5069 = vst.msk [vmem:[%s278 + $0x48] sm:$0xff] %vm1427, %v5037
      %5070 = vst.msk [vmem:[%s278 + $0x50] sm:$0xff] %vm1427, %v5038
      %5071 = vst.msk [vmem:[%s278 + $0x58] sm:$0xff] %vm1427, %v5039
      %5072 = vst.msk [vmem:[%s278 + $0x60] sm:$0xff] %vm1427, %v5040
      %5073 = vst.msk [vmem:[%s278 + $0x68] sm:$0xff] %vm1427, %v5041
      %5074 = vst.msk [vmem:[%s278 + $0x70] sm:$0xff] %vm1427, %v5042
      %5075 = vst.msk [vmem:[%s278 + $0x78] sm:$0xff] %vm1427, %v5043
      %5076 = vst.msk [vmem:[%s278 + $0x80] sm:$0xff] %vm1427, %v5044
      %5077 = vst.msk [vmem:[%s278 + $0x88] sm:$0xff] %vm1427, %v5045
      %5078 = vst.msk [vmem:[%s278 + $0x90] sm:$0xff] %vm1427, %v5046
      %5079 = vst.msk [vmem:[%s278 + $0x98] sm:$0xff] %vm1427, %v5047
      %5080 = vst.msk [vmem:[%s278 + $0xa0] sm:$0xff] %vm1427, %v5048
      %5081 = vst.msk [vmem:[%s278 + $0xa8] sm:$0xff] %vm1427, %v5049
      %5082 = vst.msk [vmem:[%s278 + $0xb0] sm:$0xff] %vm1427, %v5050
      %5083 = vst.msk [vmem:[%s278 + $0xb8] sm:$0xff] %vm1427, %v5051
      %5084 = vst.msk [vmem:[%s278 + $0xc0] sm:$0xff] %vm1427, %v5052
      %5085 = vst.msk [vmem:[%s278 + $0xc8] sm:$0xff] %vm1427, %v5053
      %5086 = vst.msk [vmem:[%s278 + $0xd0] sm:$0xff] %vm1427, %v5054
      %5087 = vst.msk [vmem:[%s278 + $0xd8] sm:$0xff] %vm1427, %v5055
      %5088 = vst.msk [vmem:[%s278 + $0xe0] sm:$0xff] %vm1427, %v5056
      %5089 = vst.msk [vmem:[%s278 + $0xe8] sm:$0xff] %vm1427, %v5057
      %5090 = vst.msk [vmem:[%s278 + $0xf0] sm:$0xff] %vm1427, %v5058
      %5091 = vst.msk [vmem:[%s278 + $0xf8] sm:$0xff] %vm1427, %v5059
      %p5092 = scmp.lt.s32.totalorder %s18, 1
      %s5093 = scalar_select %p5092, %s18, 1
      %s5094 = smul.addr %s5093, 32
      %s5095 = smul.addr %s5094, 8
      %s5096 = scalar_lea.vmem %s7, %s5095
      // Predicated region
      $region49: #{unet_conv_block.1} parent=47 // pred_check
        %p5097 = pneg %p188
      $region50: #{unet_conv_block.1} parent=47 // pred_check_branch
        %5099 = sbr.rel (%p5097) target = $region52
      $region51: #{unet_conv_block.1} parent=47 // pred_region
        _
      $region52: #{unet_conv_block.1} parent=47 // pred_fallthru
        _
    $region48: #{unet_conv_block.1} parent=5 // pred_fallthru
      _
    %p5100 = scmp.le.s32.totalorder 2, %s13
    // Predicated region
    $region53: #{unet_conv_block.1} parent=5 // pred_check
      %p5101 = pneg %p5100
    $region54: #{unet_conv_block.1} parent=5 // pred_check_branch
      %5103 = sbr.rel (%p5101) target = $region56
    $region55: #{unet_conv_block.1} parent=5 // pred_region
      %s5104 = ssub.s32 %s13, 2
      // Predicated region
      $region57: #{unet_conv_block.1} parent=55 // pred_check
        %p5105 = pneg %p194
      $region58: #{unet_conv_block.1} parent=55 // pred_check_branch
        %5107 = sbr.rel (%p5105) target = $region60
      $region59: #{unet_conv_block.1} parent=55 // pred_region
        %p5108 = scmp.lt.s32.totalorder %s19, 1
        %s5109 = scalar_select %p5108, %s19, 1
        %s5110 = smul.addr %s5109, 32
        %s5111 = smul.addr %s5110, 8
        %s5112 = scalar_lea.vmem %s7, %s5111
      $region60: #{unet_conv_block.1} parent=55 // pred_fallthru
        _
    $region56: #{unet_conv_block.1} parent=5 // pred_fallthru
      _
  $region6: #{unet_conv_block.1} parent=0 // loop_footer
    %s17 = sadd.s32 1, %s13
  $region7: #{unet_conv_block.1} parent=0 // loop_footer_branch
    %12 = sbr.rel target = $region3
  $region8: #{unet_conv_block.1} parent=0 // loop_exit
    _

</llo_original>
